<compile_context>
chip_gen: v5e
topology: v5e:2x2
jax: 0.10.0
libtpu: 0.0.40
codegen_flags: <defaults>
</compile_context>

<pallas_src>
import functools

import jax
import jax.numpy as jnp
from jax import lax
from jax.experimental import pallas as pl
from jax.experimental.pallas import tpu as pltpu


# -----------------------------------------------------------------------------
# Small helpers.
# -----------------------------------------------------------------------------
def _round_up(x, m):
    return ((x + m - 1) // m) * m


def _nbytes(shape, dtype):
    n = 1
    for s in shape:
        n *= int(s)
    return n * jnp.dtype(dtype).itemsize


def _pad_gate_cols(w, h, hp):
    """(..., 4h) -> (..., 4hp): zero-pad each of the i/f/g/o gate blocks."""
    if hp == h:
        return w
    lead = w.shape[:-1]
    w4 = w.reshape(*lead, 4, h)
    pad = [(0, 0)] * (w4.ndim - 1) + [(0, hp - h)]
    return jnp.pad(w4, pad).reshape(*lead, 4 * hp)


def _tpu_hw_info():
    """(vmem_capacity_bytes, num_tensorcores); generation-aware, safe fallback."""
    vmem_cap = 128 * 2 ** 20
    n_tc = 1
    try:
        info = pltpu.get_tpu_info()
        vmem_cap = int(getattr(info, "vmem_capacity_bytes", vmem_cap))
    except Exception:
        pass
    try:
        kind = jax.devices()[0].device_kind.lower()
    except Exception:
        kind = ""
    if "v7" in kind or "7x" in kind:
        n_tc = 2
        vmem_cap = min(vmem_cap, 64 * 2 ** 20)
    return vmem_cap, n_tc


# -----------------------------------------------------------------------------
# Pallas kernel: bidirectional single-layer LSTM + final Linear (one batch tile).
# -----------------------------------------------------------------------------
def _bilstm_fc_kernel(
    x_ref,      # (T, tb, I)   bf16
    wi_f_ref,   # (I, 4Hp)     bf16
    wi_b_ref,   # (I, 4Hp)     bf16
    wh_f_ref,   # (Hp, 4Hp)    bf16
    wh_b_ref,   # (Hp, 4Hp)    bf16
    b_f_ref,    # (1, 4Hp)     f32   b_ih + b_hh, forward
    b_b_ref,    # (1, 4Hp)     f32   b_ih + b_hh, backward
    wfc_ref,    # (2Hp, Op)    bf16  [forward rows ; backward rows]
    bfc_ref,    # (1, Op)      f32
    out_ref,    # (T, tb, Op)  f32
    gxf_ref,    # (T*tb, 4Hp)  f32   scratch: forward input-projected gates
    gxb_ref,    # (T*tb, 4Hp)  f32   scratch: backward input-projected gates
    h_ref,      # (T*tb, 2Hp)  bf16  scratch: [h_fwd | h_bwd]
    *,
    seq_len: int,
    batch_tile: int,
    hidden_p: int,
    unrolled: bool,
):
    T, tb, Hp = seq_len, batch_tile, hidden_p
    f32, bf16 = jnp.float32, jnp.bfloat16

    # ---- 1. Input projection + fused biases, hoisted out of the recurrence.
    # Merging (T, tb) -> (T*tb,) is layout-free because tb % 8 == 0.
    x2d = x_ref[...].reshape(T * tb, x_ref.shape[-1])
    gxf_ref[...] = (jnp.dot(x2d, wi_f_ref[...], preferred_element_type=f32)
                    + b_f_ref[...])
    gxb_ref[...] = (jnp.dot(x2d, wi_b_ref[...], preferred_element_type=f32)
                    + b_b_ref[...])

    def gate_update(gates, c):
        # PyTorch gate order: i, f, g, o.
        i_g = jax.nn.sigmoid(gates[:, 0 * Hp:1 * Hp])
        f_g = jax.nn.sigmoid(gates[:, 1 * Hp:2 * Hp])
        g_g = jnp.tanh(gates[:, 2 * Hp:3 * Hp])
        o_g = jax.nn.sigmoid(gates[:, 3 * Hp:4 * Hp])
        c_new = f_g * c + i_g * g_g
        h_new = o_g * jnp.tanh(c_new)
        return h_new, c_new

    def step(i, hf, cf, hb, cb):
        rf = i * tb               # forward direction: time step i
        rb = (T - 1 - i) * tb     # backward direction: time step T-1-i
        if not unrolled:          # traced offsets -> aligned, unmasked slices
            rf = pl.multiple_of(rf, 8)
            rb = pl.multiple_of(rb, 8)
        # Recurrent matmuls: bf16 operands, f32 accumulation (per direction).
        gh_f = jnp.dot(hf, wh_f_ref[...], preferred_element_type=f32)
        gh_b = jnp.dot(hb, wh_b_ref[...], preferred_element_type=f32)
        # Only the needed (tb, 4Hp) half of the precomputed gates is loaded.
        hf_new, cf = gate_update(gxf_ref[pl.ds(rf, tb), :] + gh_f, cf)
        hb_new, cb = gate_update(gxb_ref[pl.ds(rb, tb), :] + gh_b, cb)
        hf = hf_new.astype(bf16)
        hb = hb_new.astype(bf16)
        h_ref[pl.ds(rf, tb), 0:Hp] = hf           # lane-aligned (Hp % 128 == 0)
        h_ref[pl.ds(rb, tb), Hp:2 * Hp] = hb
        return hf, cf, hb, cb

    h0 = jnp.zeros((tb, Hp), bf16)
    c0 = jnp.zeros((tb, Hp), f32)
    carry = (h0, c0, h0, c0)
    # ---- 2. Fused fwd/bwd recurrence (two independent dependence chains).
    if unrolled:
        for i in range(T):                         # tiny tiles only
            carry = step(i, *carry)
    else:
        carry = lax.fori_loop(0, T, lambda i, c: step(i, *c), carry, unroll=2)

    # ---- 3. Final Linear hoisted out of the loop: one matmul + one lane-dense
    # store. fc(concat(h_fwd, h_bwd)) == [h_fwd | h_bwd] @ [Wfc_f ; Wfc_b] + b.
    out2d = (jnp.dot(h_ref[...], wfc_ref[...], preferred_element_type=f32)
             + bfc_ref[...])
    out_ref[...] = out2d.reshape(T, tb, out_ref.shape[-1]).astype(out_ref.dtype)


# -----------------------------------------------------------------------------
# Wrapper: weight packing/padding, generation-aware batch tiling, pallas_call.
# -----------------------------------------------------------------------------
def bilstm_fc_pallas(x, params):
    """x: (T, B, I) embedded input. Returns (T, B, O) f32 predictions."""
    T, B, I = x.shape
    H = params["wh_f"].shape[0]
    O = params["bfc"].shape[-1]
    f32, bf16 = jnp.float32, jnp.bfloat16

    # Lane-dense padding of hidden / output features (padded gate columns get
    # zero weights & biases, so the padded h/c columns stay exactly zero).
    Hp = _round_up(H, 128)
    Op = _round_up(O, 128)

    wi_f = _pad_gate_cols(params["wi_f"], H, Hp).astype(bf16)            # (I, 4Hp)
    wi_b = _pad_gate_cols(params["wi_b"], H, Hp).astype(bf16)
    wh_f = _pad_gate_cols(
        jnp.pad(params["wh_f"], ((0, Hp - H), (0, 0))), H, Hp).astype(bf16)
    wh_b = _pad_gate_cols(
        jnp.pad(params["wh_b"], ((0, Hp - H), (0, 0))), H, Hp).astype(bf16)
    b_f = _pad_gate_cols(params["b_f"], H, Hp).astype(f32)               # (1, 4Hp)
    b_b = _pad_gate_cols(params["b_b"], H, Hp).astype(f32)
    wfc = jnp.concatenate(
        [jnp.pad(params["wfc_f"], ((0, Hp - H), (0, Op - O))),
         jnp.pad(params["wfc_b"], ((0, Hp - H), (0, Op - O)))],
        axis=0).astype(bf16)                                             # (2Hp, Op)
    bfc = jnp.pad(params["bfc"], ((0, 0), (0, Op - O))).astype(f32)      # (1, Op)
    weights = (wi_f, wi_b, wh_f, wh_b, b_f, b_b, wfc, bfc)

    # Generation-aware batch tiling. Every tile has tb % 8 == 0 rows.
    vmem_cap, n_tc = _tpu_hw_info()
    b_align = 8 * n_tc                       # 16 on v7x -> >=2 aligned tiles
    B_pad = _round_up(max(B, b_align), b_align)
    x = x.astype(bf16)
    if B_pad != B:
        x = jnp.pad(x, ((0, 0), (0, B_pad - B), (0, 0)))

    w_bytes = sum(_nbytes(w.shape, w.dtype) for w in weights)

    def tile_bytes(tb):
        return (2 * _nbytes((T, tb, I), bf16)          # x block (double-buffered)
                + 2 * _nbytes((T, tb, Op), f32)        # out block (double-buffered)
                + 2 * _nbytes((T * tb, 4 * Hp), f32)   # gxf + gxb scratch
                + _nbytes((T * tb, 2 * Hp), bf16))     # hidden-state stash

    vmem_budget = int(vmem_cap * 0.85)       # ~110 MiB on v5e/v6e, ~54 MiB on v7x
    cands = [n for n in range(1, B_pad // 8 + 1)
             if B_pad % n == 0 and (B_pad // n) % 8 == 0]
    min_nbt = n_tc if any(n >= n_tc for n in cands) else 1
    nbt = cands[-1]
    for n in cands:                          # smallest nbt that fits -> biggest tb
        if n >= min_nbt and 2 * w_bytes + tile_bytes(B_pad // n) <= vmem_budget:
            nbt = n
            break
    tb = B_pad // nbt

    # Fully unroll the time loop only for tiny tiles; otherwise a lightly
    # unrolled fori_loop keeps vreg live ranges bounded.
    unrolled = (T <= 16) and (tb * Hp <= 2048)

    kernel = functools.partial(
        _bilstm_fc_kernel, seq_len=T, batch_tile=tb, hidden_p=Hp,
        unrolled=unrolled)

    cost = pl.CostEstimate(
        flops=int(4 * T * B_pad * I * 4 * Hp          # input projections (2 dirs)
                  + 4 * T * B_pad * Hp * 4 * Hp       # recurrence (2 dirs)
                  + 2 * T * B_pad * 2 * Hp * Op),     # final fc
        transcendentals=int(10 * T * B_pad * Hp),
        bytes_accessed=int(_nbytes((T, B_pad, I), bf16) + w_bytes
                           + _nbytes((T, B_pad, Op), f32)),
    )

    out = pl.pallas_call(
        kernel,
        out_shape=jax.ShapeDtypeStruct((T, B_pad, Op), f32),
        grid=(nbt,),
        in_specs=[pl.BlockSpec((T, tb, I), lambda bt: (0, bt, 0))]
                 + [pl.BlockSpec(w.shape, lambda bt: (0, 0)) for w in weights],
        out_specs=pl.BlockSpec((T, tb, Op), lambda bt: (0, bt, 0)),
        scratch_shapes=[
            pltpu.VMEM((T * tb, 4 * Hp), f32),    # gxf: fwd input gates
            pltpu.VMEM((T * tb, 4 * Hp), f32),    # gxb: bwd input gates
            pltpu.VMEM((T * tb, 2 * Hp), bf16),   # [h_fwd | h_bwd] stash
        ],
        compiler_params=pltpu.CompilerParams(
            dimension_semantics=("parallel",),
            vmem_limit_bytes=vmem_budget,
        ),
        cost_estimate=cost,
    )(x, *weights)

    return out[:, :B, :O]


# -----------------------------------------------------------------------------
# Module: parameter init (deterministic) + forward (embedding glue + kernel).
# -----------------------------------------------------------------------------
def init_params(key, *, input_dim, embedding_dim, hidden_dim, output_dim,
                nb_langs, lang_embedding_dim, pad_idx):
    ks = jax.random.split(key, 13)
    H = hidden_dim
    I = embedding_dim + lang_embedding_dim
    s = 1.0 / jnp.sqrt(H)

    def u(k, shape):
        return jax.random.uniform(k, shape, jnp.float32, -s, s)

    emb = jax.random.normal(ks[0], (input_dim, embedding_dim), jnp.float32)
    emb = emb.at[pad_idx].set(0.0)            # nn.Embedding padding_idx row = 0
    lang_emb = jax.random.normal(ks[1], (nb_langs, lang_embedding_dim),
                                 jnp.float32)

    return {
        # Embedding tables stored bf16 so the gathers emit bf16 directly.
        "embedding": emb.astype(jnp.bfloat16),
        "lang_embedding": lang_emb.astype(jnp.bfloat16),
        # LSTM weights stored pre-transposed: (in, 4H)/(H, 4H); b_ih+b_hh fused.
        "wi_f": u(ks[2], (I, 4 * H)),
        "wh_f": u(ks[3], (H, 4 * H)),
        "b_f": u(ks[4], (1, 4 * H)) + u(ks[5], (1, 4 * H)),
        "wi_b": u(ks[6], (I, 4 * H)),
        "wh_b": u(ks[7], (H, 4 * H)),
        "b_b": u(ks[8], (1, 4 * H)) + u(ks[9], (1, 4 * H)),
        # fc: (2H, O) split into forward/backward halves, plus bias.
        "wfc_f": u(ks[10], (H, output_dim)),
        "wfc_b": u(ks[11], (H, output_dim)),
        "bfc": u(ks[12], (1, output_dim)),
    }


def forward(params, text, lang_idx):
    """text: (T, B) int32 token ids.  Returns (T, B, output_dim) f32."""
    embedded = jnp.take(params["embedding"], text, axis=0)            # (T,B,E) bf16
    lang_vec = params["lang_embedding"][lang_idx]                     # (L,)    bf16
    lang_embedded = jnp.broadcast_to(
        lang_vec, embedded.shape[:2] + (lang_vec.shape[0],))          # (T,B,L)
    x = jnp.concatenate([embedded, lang_embedded], axis=2)            # (T,B,E+L)
    # TODO(synk): nn.Dropout is identity here (eval mode).
    return bilstm_fc_pallas(x, params)


# -----------------------------------------------------------------------------
# Pure-JAX reference with matching numerics (bf16 operands, f32 accumulation).
# -----------------------------------------------------------------------------
def _ref_lstm_dir(x_bf16, wi, wh, b, H, reverse):
    wi = wi.astype(jnp.bfloat16)
    wh = wh.astype(jnp.bfloat16)
    gx = lax.dot_general(x_bf16, wi, (((2,), (0,)), ((), ())),
                         preferred_element_type=jnp.float32) + b       # (T,B,4H)

    def step(carry, g_t):
        h_bf16, c = carry
        gates = g_t + jnp.dot(h_bf16, wh, preferred_element_type=jnp.float32)
        i = jax.nn.sigmoid(gates[:, 0 * H:1 * H])
        f = jax.nn.sigmoid(gates[:, 1 * H:2 * H])
        g = jnp.tanh(gates[:, 2 * H:3 * H])
        o = jax.nn.sigmoid(gates[:, 3 * H:4 * H])
        c_new = f * c + i * g
        h_new = o * jnp.tanh(c_new)
        h_bf16 = h_new.astype(jnp.bfloat16)
        return (h_bf16, c_new), h_bf16

    B = x_bf16.shape[1]
    init = (jnp.zeros((B, H), jnp.bfloat16), jnp.zeros((B, H), jnp.float32))
    _, hs = lax.scan(step, init, gx, reverse=reverse)
    return hs                                                          # (T,B,H) bf16


def forward_reference(params, text, lang_idx):
    embedded = jnp.take(params["embedding"], text, axis=0)
    lang_vec = params["lang_embedding"][lang_idx]
    lang_embedded = jnp.broadcast_to(
        lang_vec, embedded.shape[:2] + (lang_vec.shape[0],))
    x = jnp.concatenate([embedded, lang_embedded], axis=2)             # bf16
    H = params["wh_f"].shape[0]
    hf = _ref_lstm_dir(x, params["wi_f"], params["wh_f"], params["b_f"], H, False)
    hb = _ref_lstm_dir(x, params["wi_b"], params["wh_b"], params["b_b"], H, True)
    cdims = (((2,), (0,)), ((), ()))
    return (lax.dot_general(hf, params["wfc_f"].astype(jnp.bfloat16), cdims,
                            preferred_element_type=jnp.float32)
            + lax.dot_general(hb, params["wfc_b"].astype(jnp.bfloat16), cdims,
                              preferred_element_type=jnp.float32)
            + params["bfc"])


if __name__ == "__main__":
    # Small, forward-consistent shapes (seq_len, batch) — PyTorch LSTM layout.
    T, B = 8, 2
    INPUT_DIM = 100          # vocab
    EMB_DIM = 32
    LANG_EMB_DIM = 16
    HIDDEN = 32
    OUTPUT_DIM = 16
    NB_LANGS = 4
    PAD_IDX = 0
    LANG_IDX = 1

    key = jax.random.PRNGKey(0)
    k_param, k_text = jax.random.split(key)
    params = init_params(
        k_param,
        input_dim=INPUT_DIM,
        embedding_dim=EMB_DIM,
        hidden_dim=HIDDEN,
        output_dim=OUTPUT_DIM,
        nb_langs=NB_LANGS,
        lang_embedding_dim=LANG_EMB_DIM,
        pad_idx=PAD_IDX,
    )
    text = jax.random.randint(k_text, (T, B), 0, INPUT_DIM, dtype=jnp.int32)

    preds = jax.jit(functools.partial(forward, params))(text, LANG_IDX)
    preds = jax.block_until_ready(preds)
    assert preds.shape == (T, B, OUTPUT_DIM), preds.shape

    ref = forward_reference(params, text, LANG_IDX)
    max_err = float(jnp.max(jnp.abs(preds - ref)))
    assert max_err < 2e-2, max_err

    print("KERNEL_OK")
</pallas_src>

<mosaic_0001>
module attributes {stable_mosaic.version = 11 : i64} {
  func.func @_bilstm_fc_kernel(%arg0: i32, %arg1: memref<8x8x48xbf16, #tpu.memory_space<vmem>>, %arg2: memref<48x512xbf16, #tpu.memory_space<vmem>>, %arg3: memref<48x512xbf16, #tpu.memory_space<vmem>>, %arg4: memref<128x512xbf16, #tpu.memory_space<vmem>>, %arg5: memref<128x512xbf16, #tpu.memory_space<vmem>>, %arg6: memref<1x512xf32, #tpu.memory_space<vmem>>, %arg7: memref<1x512xf32, #tpu.memory_space<vmem>>, %arg8: memref<256x128xbf16, #tpu.memory_space<vmem>>, %arg9: memref<1x128xf32, #tpu.memory_space<vmem>>, %arg10: memref<8x8x128xf32, #tpu.memory_space<vmem>>, %arg11: memref<64x512xf32, #tpu.memory_space<vmem>>, %arg12: memref<64x512xf32, #tpu.memory_space<vmem>>, %arg13: memref<64x256xbf16, #tpu.memory_space<vmem>>) attributes {dimension_semantics = [#tpu.dimension_semantics<parallel>], iteration_bounds = array<i64: 1>, scalar_prefetch = 0 : i64, scratch_operands = 3 : i64, tpu.core_type = #tpu.core_type<tc>, window_params = [{transform_indices = @transform_0, window_bounds = array<i64: 8, 8, 48>}, {pipeline_mode = #tpu.pipeline_mode<synchronous>, transform_indices = @transform_1, window_bounds = array<i64: 48, 512>}, {pipeline_mode = #tpu.pipeline_mode<synchronous>, transform_indices = @transform_2, window_bounds = array<i64: 48, 512>}, {pipeline_mode = #tpu.pipeline_mode<synchronous>, transform_indices = @transform_3, window_bounds = array<i64: 128, 512>}, {pipeline_mode = #tpu.pipeline_mode<synchronous>, transform_indices = @transform_4, window_bounds = array<i64: 128, 512>}, {pipeline_mode = #tpu.pipeline_mode<synchronous>, transform_indices = @transform_5, window_bounds = array<i64: 1, 512>}, {pipeline_mode = #tpu.pipeline_mode<synchronous>, transform_indices = @transform_6, window_bounds = array<i64: 1, 512>}, {pipeline_mode = #tpu.pipeline_mode<synchronous>, transform_indices = @transform_7, window_bounds = array<i64: 256, 128>}, {pipeline_mode = #tpu.pipeline_mode<synchronous>, transform_indices = @transform_8, window_bounds = array<i64: 1, 128>}, {transform_indices = @transform_9, window_bounds = array<i64: 8, 8, 128>}]} {
    %c0 = arith.constant 0 : index
    %c0_0 = arith.constant 0 : index
    %c0_1 = arith.constant 0 : index
    %0 = vector.load %arg1[%c0, %c0_0, %c0_1] : memref<8x8x48xbf16, #tpu.memory_space<vmem>>, vector<8x8x48xbf16>
    %1 = vector.shape_cast %0 : vector<8x8x48xbf16> to vector<64x48xbf16>
    %c0_2 = arith.constant 0 : index
    %c0_3 = arith.constant 0 : index
    %2 = vector.load %arg2[%c0_2, %c0_3] : memref<48x512xbf16, #tpu.memory_space<vmem>>, vector<48x512xbf16>
    %cst = arith.constant dense<0.000000e+00> : vector<64x512xf32>
    %3 = tpu.matmul %1, %2, %cst {dimension_numbers = #tpu.dot_dimension_numbers<[1], [0], [0], [1], [0, 0, 1, 1], [], []>} : vector<64x48xbf16>, vector<48x512xbf16>, vector<64x512xf32> -> vector<64x512xf32>
    %c0_4 = arith.constant 0 : index
    %c0_5 = arith.constant 0 : index
    %4 = vector.load %arg6[%c0_4, %c0_5] : memref<1x512xf32, #tpu.memory_space<vmem>>, vector<1x512xf32>
    %5 = vector.broadcast %4 : vector<1x512xf32> to vector<64x512xf32>
    %6 = arith.addf %3, %5 : vector<64x512xf32>
    %c0_6 = arith.constant 0 : index
    %c0_7 = arith.constant 0 : index
    %7 = vector.load %arg11[%c0_6, %c0_7] : memref<64x512xf32, #tpu.memory_space<vmem>>, vector<64x512xf32>
    tpu.vector_store %arg11[%c0_6, %c0_7], %6 {strides = array<i32>} : memref<64x512xf32, #tpu.memory_space<vmem>>, vector<64x512xf32>,
    %c0_8 = arith.constant 0 : index
    %c0_9 = arith.constant 0 : index
    %8 = vector.load %arg3[%c0_8, %c0_9] : memref<48x512xbf16, #tpu.memory_space<vmem>>, vector<48x512xbf16>
    %cst_10 = arith.constant dense<0.000000e+00> : vector<64x512xf32>
    %9 = tpu.matmul %1, %8, %cst_10 {dimension_numbers = #tpu.dot_dimension_numbers<[1], [0], [0], [1], [0, 0, 1, 1], [], []>} : vector<64x48xbf16>, vector<48x512xbf16>, vector<64x512xf32> -> vector<64x512xf32>
    %c0_11 = arith.constant 0 : index
    %c0_12 = arith.constant 0 : index
    %10 = vector.load %arg7[%c0_11, %c0_12] : memref<1x512xf32, #tpu.memory_space<vmem>>, vector<1x512xf32>
    %11 = vector.broadcast %10 : vector<1x512xf32> to vector<64x512xf32>
    %12 = arith.addf %9, %11 : vector<64x512xf32>
    %c0_13 = arith.constant 0 : index
    %c0_14 = arith.constant 0 : index
    %13 = vector.load %arg12[%c0_13, %c0_14] : memref<64x512xf32, #tpu.memory_space<vmem>>, vector<64x512xf32>
    tpu.vector_store %arg12[%c0_13, %c0_14], %12 {strides = array<i32>} : memref<64x512xf32, #tpu.memory_space<vmem>>, vector<64x512xf32>,
    %cst_15 = arith.constant 0.000000e+00 : bf16
    %14 = vector.broadcast %cst_15 : bf16 to vector<8x128xbf16>
    %cst_16 = arith.constant 0.000000e+00 : f32
    %15 = vector.broadcast %cst_16 : f32 to vector<8x128xf32>
    %c0_17 = arith.constant 0 : index
    %c0_18 = arith.constant 0 : index
    %16 = vector.load %arg4[%c0_17, %c0_18] : memref<128x512xbf16, #tpu.memory_space<vmem>>, vector<128x512xbf16>
    %cst_19 = arith.constant dense<0.000000e+00> : vector<8x512xf32>
    %17 = tpu.matmul %14, %16, %cst_19 {dimension_numbers = #tpu.dot_dimension_numbers<[1], [0], [0], [1], [0, 0, 1, 1], [], []>} : vector<8x128xbf16>, vector<128x512xbf16>, vector<8x512xf32> -> vector<8x512xf32>
    %c0_20 = arith.constant 0 : index
    %c0_21 = arith.constant 0 : index
    %18 = vector.load %arg5[%c0_20, %c0_21] : memref<128x512xbf16, #tpu.memory_space<vmem>>, vector<128x512xbf16>
    %cst_22 = arith.constant dense<0.000000e+00> : vector<8x512xf32>
    %19 = tpu.matmul %14, %18, %cst_22 {dimension_numbers = #tpu.dot_dimension_numbers<[1], [0], [0], [1], [0, 0, 1, 1], [], []>} : vector<8x128xbf16>, vector<128x512xbf16>, vector<8x512xf32> -> vector<8x512xf32>
    %c0_23 = arith.constant 0 : index
    %c0_24 = arith.constant 0 : index
    %20 = vector.load %arg11[%c0_23, %c0_24] : memref<64x512xf32, #tpu.memory_space<vmem>>, vector<8x512xf32>
    %21 = arith.addf %20, %17 : vector<8x512xf32>
    %22 = vector.extract_strided_slice %21 {offsets = [0, 0], sizes = [8, 128], strides = [1, 1]} : vector<8x512xf32> to vector<8x128xf32>
    %23 = arith.negf %22 : vector<8x128xf32>
    %24 = math.exp %23 : vector<8x128xf32>
    %cst_25 = arith.constant 1.000000e+00 : f32
    %25 = vector.broadcast %cst_25 : f32 to vector<8x128xf32>
    %26 = arith.addf %25, %24 : vector<8x128xf32>
    %27 = arith.divf %25, %26 : vector<8x128xf32>
    %28 = vector.extract_strided_slice %21 {offsets = [0, 128], sizes = [8, 128], strides = [1, 1]} : vector<8x512xf32> to vector<8x128xf32>
    %29 = arith.negf %28 : vector<8x128xf32>
    %30 = math.exp %29 : vector<8x128xf32>
    %cst_26 = arith.constant 1.000000e+00 : f32
    %31 = vector.broadcast %cst_26 : f32 to vector<8x128xf32>
    %32 = arith.addf %31, %30 : vector<8x128xf32>
    %33 = arith.divf %31, %32 : vector<8x128xf32>
    %34 = vector.extract_strided_slice %21 {offsets = [0, 256], sizes = [8, 128], strides = [1, 1]} : vector<8x512xf32> to vector<8x128xf32>
    %35 = math.tanh %34 : vector<8x128xf32>
    %36 = vector.extract_strided_slice %21 {offsets = [0, 384], sizes = [8, 128], strides = [1, 1]} : vector<8x512xf32> to vector<8x128xf32>
    %37 = arith.negf %36 : vector<8x128xf32>
    %38 = math.exp %37 : vector<8x128xf32>
    %cst_27 = arith.constant 1.000000e+00 : f32
    %39 = vector.broadcast %cst_27 : f32 to vector<8x128xf32>
    %40 = arith.addf %39, %38 : vector<8x128xf32>
    %41 = arith.divf %39, %40 : vector<8x128xf32>
    %42 = arith.mulf %33, %15 : vector<8x128xf32>
    %43 = arith.mulf %27, %35 : vector<8x128xf32>
    %44 = arith.addf %42, %43 : vector<8x128xf32>
    %45 = math.tanh %44 : vector<8x128xf32>
    %46 = arith.mulf %41, %45 : vector<8x128xf32>
    %c56 = arith.constant 56 : index
    %c0_28 = arith.constant 0 : index
    %47 = vector.load %arg12[%c56, %c0_28] : memref<64x512xf32, #tpu.memory_space<vmem>>, vector<8x512xf32>
    %48 = arith.addf %47, %19 : vector<8x512xf32>
    %49 = vector.extract_strided_slice %48 {offsets = [0, 0], sizes = [8, 128], strides = [1, 1]} : vector<8x512xf32> to vector<8x128xf32>
    %50 = arith.negf %49 : vector<8x128xf32>
    %51 = math.exp %50 : vector<8x128xf32>
    %cst_29 = arith.constant 1.000000e+00 : f32
    %52 = vector.broadcast %cst_29 : f32 to vector<8x128xf32>
    %53 = arith.addf %52, %51 : vector<8x128xf32>
    %54 = arith.divf %52, %53 : vector<8x128xf32>
    %55 = vector.extract_strided_slice %48 {offsets = [0, 128], sizes = [8, 128], strides = [1, 1]} : vector<8x512xf32> to vector<8x128xf32>
    %56 = arith.negf %55 : vector<8x128xf32>
    %57 = math.exp %56 : vector<8x128xf32>
    %cst_30 = arith.constant 1.000000e+00 : f32
    %58 = vector.broadcast %cst_30 : f32 to vector<8x128xf32>
    %59 = arith.addf %58, %57 : vector<8x128xf32>
    %60 = arith.divf %58, %59 : vector<8x128xf32>
    %61 = vector.extract_strided_slice %48 {offsets = [0, 256], sizes = [8, 128], strides = [1, 1]} : vector<8x512xf32> to vector<8x128xf32>
    %62 = math.tanh %61 : vector<8x128xf32>
    %63 = vector.extract_strided_slice %48 {offsets = [0, 384], sizes = [8, 128], strides = [1, 1]} : vector<8x512xf32> to vector<8x128xf32>
    %64 = arith.negf %63 : vector<8x128xf32>
    %65 = math.exp %64 : vector<8x128xf32>
    %cst_31 = arith.constant 1.000000e+00 : f32
    %66 = vector.broadcast %cst_31 : f32 to vector<8x128xf32>
    %67 = arith.addf %66, %65 : vector<8x128xf32>
    %68 = arith.divf %66, %67 : vector<8x128xf32>
    %69 = arith.mulf %60, %15 : vector<8x128xf32>
    %70 = arith.mulf %54, %62 : vector<8x128xf32>
    %71 = arith.addf %69, %70 : vector<8x128xf32>
    %72 = math.tanh %71 : vector<8x128xf32>
    %73 = arith.mulf %68, %72 : vector<8x128xf32>
    %74 = arith.truncf %46 : vector<8x128xf32> to vector<8x128xbf16>
    %75 = arith.truncf %73 : vector<8x128xf32> to vector<8x128xbf16>
    %c0_32 = arith.constant 0 : index
    %c0_33 = arith.constant 0 : index
    %76 = vector.load %arg13[%c0_32, %c0_33] : memref<64x256xbf16, #tpu.memory_space<vmem>>, vector<8x128xbf16>
    tpu.vector_store %arg13[%c0_32, %c0_33], %74 {strides = array<i32>} : memref<64x256xbf16, #tpu.memory_space<vmem>>, vector<8x128xbf16>,
    %c56_34 = arith.constant 56 : index
    %c128 = arith.constant 128 : index
    %77 = vector.load %arg13[%c56_34, %c128] : memref<64x256xbf16, #tpu.memory_space<vmem>>, vector<8x128xbf16>
    tpu.vector_store %arg13[%c56_34, %c128], %75 {strides = array<i32>} : memref<64x256xbf16, #tpu.memory_space<vmem>>, vector<8x128xbf16>,
    %c0_35 = arith.constant 0 : index
    %c0_36 = arith.constant 0 : index
    %78 = vector.load %arg4[%c0_35, %c0_36] : memref<128x512xbf16, #tpu.memory_space<vmem>>, vector<128x512xbf16>
    %cst_37 = arith.constant dense<0.000000e+00> : vector<8x512xf32>
    %79 = tpu.matmul %74, %78, %cst_37 {dimension_numbers = #tpu.dot_dimension_numbers<[1], [0], [0], [1], [0, 0, 1, 1], [], []>} : vector<8x128xbf16>, vector<128x512xbf16>, vector<8x512xf32> -> vector<8x512xf32>
    %c0_38 = arith.constant 0 : index
    %c0_39 = arith.constant 0 : index
    %80 = vector.load %arg5[%c0_38, %c0_39] : memref<128x512xbf16, #tpu.memory_space<vmem>>, vector<128x512xbf16>
    %cst_40 = arith.constant dense<0.000000e+00> : vector<8x512xf32>
    %81 = tpu.matmul %75, %80, %cst_40 {dimension_numbers = #tpu.dot_dimension_numbers<[1], [0], [0], [1], [0, 0, 1, 1], [], []>} : vector<8x128xbf16>, vector<128x512xbf16>, vector<8x512xf32> -> vector<8x512xf32>
    %c8 = arith.constant 8 : index
    %c0_41 = arith.constant 0 : index
    %82 = vector.load %arg11[%c8, %c0_41] : memref<64x512xf32, #tpu.memory_space<vmem>>, vector<8x512xf32>
    %83 = arith.addf %82, %79 : vector<8x512xf32>
    %84 = vector.extract_strided_slice %83 {offsets = [0, 0], sizes = [8, 128], strides = [1, 1]} : vector<8x512xf32> to vector<8x128xf32>
    %85 = arith.negf %84 : vector<8x128xf32>
    %86 = math.exp %85 : vector<8x128xf32>
    %cst_42 = arith.constant 1.000000e+00 : f32
    %87 = vector.broadcast %cst_42 : f32 to vector<8x128xf32>
    %88 = arith.addf %87, %86 : vector<8x128xf32>
    %89 = arith.divf %87, %88 : vector<8x128xf32>
    %90 = vector.extract_strided_slice %83 {offsets = [0, 128], sizes = [8, 128], strides = [1, 1]} : vector<8x512xf32> to vector<8x128xf32>
    %91 = arith.negf %90 : vector<8x128xf32>
    %92 = math.exp %91 : vector<8x128xf32>
    %cst_43 = arith.constant 1.000000e+00 : f32
    %93 = vector.broadcast %cst_43 : f32 to vector<8x128xf32>
    %94 = arith.addf %93, %92 : vector<8x128xf32>
    %95 = arith.divf %93, %94 : vector<8x128xf32>
    %96 = vector.extract_strided_slice %83 {offsets = [0, 256], sizes = [8, 128], strides = [1, 1]} : vector<8x512xf32> to vector<8x128xf32>
    %97 = math.tanh %96 : vector<8x128xf32>
    %98 = vector.extract_strided_slice %83 {offsets = [0, 384], sizes = [8, 128], strides = [1, 1]} : vector<8x512xf32> to vector<8x128xf32>
    %99 = arith.negf %98 : vector<8x128xf32>
    %100 = math.exp %99 : vector<8x128xf32>
    %cst_44 = arith.constant 1.000000e+00 : f32
    %101 = vector.broadcast %cst_44 : f32 to vector<8x128xf32>
    %102 = arith.addf %101, %100 : vector<8x128xf32>
    %103 = arith.divf %101, %102 : vector<8x128xf32>
    %104 = arith.mulf %95, %44 : vector<8x128xf32>
    %105 = arith.mulf %89, %97 : vector<8x128xf32>
    %106 = arith.addf %104, %105 : vector<8x128xf32>
    %107 = math.tanh %106 : vector<8x128xf32>
    %108 = arith.mulf %103, %107 : vector<8x128xf32>
    %c48 = arith.constant 48 : index
    %c0_45 = arith.constant 0 : index
    %109 = vector.load %arg12[%c48, %c0_45] : memref<64x512xf32, #tpu.memory_space<vmem>>, vector<8x512xf32>
    %110 = arith.addf %109, %81 : vector<8x512xf32>
    %111 = vector.extract_strided_slice %110 {offsets = [0, 0], sizes = [8, 128], strides = [1, 1]} : vector<8x512xf32> to vector<8x128xf32>
    %112 = arith.negf %111 : vector<8x128xf32>
    %113 = math.exp %112 : vector<8x128xf32>
    %cst_46 = arith.constant 1.000000e+00 : f32
    %114 = vector.broadcast %cst_46 : f32 to vector<8x128xf32>
    %115 = arith.addf %114, %113 : vector<8x128xf32>
    %116 = arith.divf %114, %115 : vector<8x128xf32>
    %117 = vector.extract_strided_slice %110 {offsets = [0, 128], sizes = [8, 128], strides = [1, 1]} : vector<8x512xf32> to vector<8x128xf32>
    %118 = arith.negf %117 : vector<8x128xf32>
    %119 = math.exp %118 : vector<8x128xf32>
    %cst_47 = arith.constant 1.000000e+00 : f32
    %120 = vector.broadcast %cst_47 : f32 to vector<8x128xf32>
    %121 = arith.addf %120, %119 : vector<8x128xf32>
    %122 = arith.divf %120, %121 : vector<8x128xf32>
    %123 = vector.extract_strided_slice %110 {offsets = [0, 256], sizes = [8, 128], strides = [1, 1]} : vector<8x512xf32> to vector<8x128xf32>
    %124 = math.tanh %123 : vector<8x128xf32>
    %125 = vector.extract_strided_slice %110 {offsets = [0, 384], sizes = [8, 128], strides = [1, 1]} : vector<8x512xf32> to vector<8x128xf32>
    %126 = arith.negf %125 : vector<8x128xf32>
    %127 = math.exp %126 : vector<8x128xf32>
    %cst_48 = arith.constant 1.000000e+00 : f32
    %128 = vector.broadcast %cst_48 : f32 to vector<8x128xf32>
    %129 = arith.addf %128, %127 : vector<8x128xf32>
    %130 = arith.divf %128, %129 : vector<8x128xf32>
    %131 = arith.mulf %122, %71 : vector<8x128xf32>
    %132 = arith.mulf %116, %124 : vector<8x128xf32>
    %133 = arith.addf %131, %132 : vector<8x128xf32>
    %134 = math.tanh %133 : vector<8x128xf32>
    %135 = arith.mulf %130, %134 : vector<8x128xf32>
    %136 = arith.truncf %108 : vector<8x128xf32> to vector<8x128xbf16>
    %137 = arith.truncf %135 : vector<8x128xf32> to vector<8x128xbf16>
    %c8_49 = arith.constant 8 : index
    %c0_50 = arith.constant 0 : index
    %138 = vector.load %arg13[%c8_49, %c0_50] : memref<64x256xbf16, #tpu.memory_space<vmem>>, vector<8x128xbf16>
    tpu.vector_store %arg13[%c8_49, %c0_50], %136 {strides = array<i32>} : memref<64x256xbf16, #tpu.memory_space<vmem>>, vector<8x128xbf16>,
    %c48_51 = arith.constant 48 : index
    %c128_52 = arith.constant 128 : index
    %139 = vector.load %arg13[%c48_51, %c128_52] : memref<64x256xbf16, #tpu.memory_space<vmem>>, vector<8x128xbf16>
    tpu.vector_store %arg13[%c48_51, %c128_52], %137 {strides = array<i32>} : memref<64x256xbf16, #tpu.memory_space<vmem>>, vector<8x128xbf16>,
    %c0_53 = arith.constant 0 : index
    %c0_54 = arith.constant 0 : index
    %140 = vector.load %arg4[%c0_53, %c0_54] : memref<128x512xbf16, #tpu.memory_space<vmem>>, vector<128x512xbf16>
    %cst_55 = arith.constant dense<0.000000e+00> : vector<8x512xf32>
    %141 = tpu.matmul %136, %140, %cst_55 {dimension_numbers = #tpu.dot_dimension_numbers<[1], [0], [0], [1], [0, 0, 1, 1], [], []>} : vector<8x128xbf16>, vector<128x512xbf16>, vector<8x512xf32> -> vector<8x512xf32>
    %c0_56 = arith.constant 0 : index
    %c0_57 = arith.constant 0 : index
    %142 = vector.load %arg5[%c0_56, %c0_57] : memref<128x512xbf16, #tpu.memory_space<vmem>>, vector<128x512xbf16>
    %cst_58 = arith.constant dense<0.000000e+00> : vector<8x512xf32>
    %143 = tpu.matmul %137, %142, %cst_58 {dimension_numbers = #tpu.dot_dimension_numbers<[1], [0], [0], [1], [0, 0, 1, 1], [], []>} : vector<8x128xbf16>, vector<128x512xbf16>, vector<8x512xf32> -> vector<8x512xf32>
    %c16 = arith.constant 16 : index
    %c0_59 = arith.constant 0 : index
    %144 = vector.load %arg11[%c16, %c0_59] : memref<64x512xf32, #tpu.memory_space<vmem>>, vector<8x512xf32>
    %145 = arith.addf %144, %141 : vector<8x512xf32>
    %146 = vector.extract_strided_slice %145 {offsets = [0, 0], sizes = [8, 128], strides = [1, 1]} : vector<8x512xf32> to vector<8x128xf32>
    %147 = arith.negf %146 : vector<8x128xf32>
    %148 = math.exp %147 : vector<8x128xf32>
    %cst_60 = arith.constant 1.000000e+00 : f32
    %149 = vector.broadcast %cst_60 : f32 to vector<8x128xf32>
    %150 = arith.addf %149, %148 : vector<8x128xf32>
    %151 = arith.divf %149, %150 : vector<8x128xf32>
    %152 = vector.extract_strided_slice %145 {offsets = [0, 128], sizes = [8, 128], strides = [1, 1]} : vector<8x512xf32> to vector<8x128xf32>
    %153 = arith.negf %152 : vector<8x128xf32>
    %154 = math.exp %153 : vector<8x128xf32>
    %cst_61 = arith.constant 1.000000e+00 : f32
    %155 = vector.broadcast %cst_61 : f32 to vector<8x128xf32>
    %156 = arith.addf %155, %154 : vector<8x128xf32>
    %157 = arith.divf %155, %156 : vector<8x128xf32>
    %158 = vector.extract_strided_slice %145 {offsets = [0, 256], sizes = [8, 128], strides = [1, 1]} : vector<8x512xf32> to vector<8x128xf32>
    %159 = math.tanh %158 : vector<8x128xf32>
    %160 = vector.extract_strided_slice %145 {offsets = [0, 384], sizes = [8, 128], strides = [1, 1]} : vector<8x512xf32> to vector<8x128xf32>
    %161 = arith.negf %160 : vector<8x128xf32>
    %162 = math.exp %161 : vector<8x128xf32>
    %cst_62 = arith.constant 1.000000e+00 : f32
    %163 = vector.broadcast %cst_62 : f32 to vector<8x128xf32>
    %164 = arith.addf %163, %162 : vector<8x128xf32>
    %165 = arith.divf %163, %164 : vector<8x128xf32>
    %166 = arith.mulf %157, %106 : vector<8x128xf32>
    %167 = arith.mulf %151, %159 : vector<8x128xf32>
    %168 = arith.addf %166, %167 : vector<8x128xf32>
    %169 = math.tanh %168 : vector<8x128xf32>
    %170 = arith.mulf %165, %169 : vector<8x128xf32>
    %c40 = arith.constant 40 : index
    %c0_63 = arith.constant 0 : index
    %171 = vector.load %arg12[%c40, %c0_63] : memref<64x512xf32, #tpu.memory_space<vmem>>, vector<8x512xf32>
    %172 = arith.addf %171, %143 : vector<8x512xf32>
    %173 = vector.extract_strided_slice %172 {offsets = [0, 0], sizes = [8, 128], strides = [1, 1]} : vector<8x512xf32> to vector<8x128xf32>
    %174 = arith.negf %173 : vector<8x128xf32>
    %175 = math.exp %174 : vector<8x128xf32>
    %cst_64 = arith.constant 1.000000e+00 : f32
    %176 = vector.broadcast %cst_64 : f32 to vector<8x128xf32>
    %177 = arith.addf %176, %175 : vector<8x128xf32>
    %178 = arith.divf %176, %177 : vector<8x128xf32>
    %179 = vector.extract_strided_slice %172 {offsets = [0, 128], sizes = [8, 128], strides = [1, 1]} : vector<8x512xf32> to vector<8x128xf32>
    %180 = arith.negf %179 : vector<8x128xf32>
    %181 = math.exp %180 : vector<8x128xf32>
    %cst_65 = arith.constant 1.000000e+00 : f32
    %182 = vector.broadcast %cst_65 : f32 to vector<8x128xf32>
    %183 = arith.addf %182, %181 : vector<8x128xf32>
    %184 = arith.divf %182, %183 : vector<8x128xf32>
    %185 = vector.extract_strided_slice %172 {offsets = [0, 256], sizes = [8, 128], strides = [1, 1]} : vector<8x512xf32> to vector<8x128xf32>
    %186 = math.tanh %185 : vector<8x128xf32>
    %187 = vector.extract_strided_slice %172 {offsets = [0, 384], sizes = [8, 128], strides = [1, 1]} : vector<8x512xf32> to vector<8x128xf32>
    %188 = arith.negf %187 : vector<8x128xf32>
    %189 = math.exp %188 : vector<8x128xf32>
    %cst_66 = arith.constant 1.000000e+00 : f32
    %190 = vector.broadcast %cst_66 : f32 to vector<8x128xf32>
    %191 = arith.addf %190, %189 : vector<8x128xf32>
    %192 = arith.divf %190, %191 : vector<8x128xf32>
    %193 = arith.mulf %184, %133 : vector<8x128xf32>
    %194 = arith.mulf %178, %186 : vector<8x128xf32>
    %195 = arith.addf %193, %194 : vector<8x128xf32>
    %196 = math.tanh %195 : vector<8x128xf32>
    %197 = arith.mulf %192, %196 : vector<8x128xf32>
    %198 = arith.truncf %170 : vector<8x128xf32> to vector<8x128xbf16>
    %199 = arith.truncf %197 : vector<8x128xf32> to vector<8x128xbf16>
    %c16_67 = arith.constant 16 : index
    %c0_68 = arith.constant 0 : index
    %200 = vector.load %arg13[%c16_67, %c0_68] : memref<64x256xbf16, #tpu.memory_space<vmem>>, vector<8x128xbf16>
    tpu.vector_store %arg13[%c16_67, %c0_68], %198 {strides = array<i32>} : memref<64x256xbf16, #tpu.memory_space<vmem>>, vector<8x128xbf16>,
    %c40_69 = arith.constant 40 : index
    %c128_70 = arith.constant 128 : index
    %201 = vector.load %arg13[%c40_69, %c128_70] : memref<64x256xbf16, #tpu.memory_space<vmem>>, vector<8x128xbf16>
    tpu.vector_store %arg13[%c40_69, %c128_70], %199 {strides = array<i32>} : memref<64x256xbf16, #tpu.memory_space<vmem>>, vector<8x128xbf16>,
    %c0_71 = arith.constant 0 : index
    %c0_72 = arith.constant 0 : index
    %202 = vector.load %arg4[%c0_71, %c0_72] : memref<128x512xbf16, #tpu.memory_space<vmem>>, vector<128x512xbf16>
    %cst_73 = arith.constant dense<0.000000e+00> : vector<8x512xf32>
    %203 = tpu.matmul %198, %202, %cst_73 {dimension_numbers = #tpu.dot_dimension_numbers<[1], [0], [0], [1], [0, 0, 1, 1], [], []>} : vector<8x128xbf16>, vector<128x512xbf16>, vector<8x512xf32> -> vector<8x512xf32>
    %c0_74 = arith.constant 0 : index
    %c0_75 = arith.constant 0 : index
    %204 = vector.load %arg5[%c0_74, %c0_75] : memref<128x512xbf16, #tpu.memory_space<vmem>>, vector<128x512xbf16>
    %cst_76 = arith.constant dense<0.000000e+00> : vector<8x512xf32>
    %205 = tpu.matmul %199, %204, %cst_76 {dimension_numbers = #tpu.dot_dimension_numbers<[1], [0], [0], [1], [0, 0, 1, 1], [], []>} : vector<8x128xbf16>, vector<128x512xbf16>, vector<8x512xf32> -> vector<8x512xf32>
    %c24 = arith.constant 24 : index
    %c0_77 = arith.constant 0 : index
    %206 = vector.load %arg11[%c24, %c0_77] : memref<64x512xf32, #tpu.memory_space<vmem>>, vector<8x512xf32>
    %207 = arith.addf %206, %203 : vector<8x512xf32>
    %208 = vector.extract_strided_slice %207 {offsets = [0, 0], sizes = [8, 128], strides = [1, 1]} : vector<8x512xf32> to vector<8x128xf32>
    %209 = arith.negf %208 : vector<8x128xf32>
    %210 = math.exp %209 : vector<8x128xf32>
    %cst_78 = arith.constant 1.000000e+00 : f32
    %211 = vector.broadcast %cst_78 : f32 to vector<8x128xf32>
    %212 = arith.addf %211, %210 : vector<8x128xf32>
    %213 = arith.divf %211, %212 : vector<8x128xf32>
    %214 = vector.extract_strided_slice %207 {offsets = [0, 128], sizes = [8, 128], strides = [1, 1]} : vector<8x512xf32> to vector<8x128xf32>
    %215 = arith.negf %214 : vector<8x128xf32>
    %216 = math.exp %215 : vector<8x128xf32>
    %cst_79 = arith.constant 1.000000e+00 : f32
    %217 = vector.broadcast %cst_79 : f32 to vector<8x128xf32>
    %218 = arith.addf %217, %216 : vector<8x128xf32>
    %219 = arith.divf %217, %218 : vector<8x128xf32>
    %220 = vector.extract_strided_slice %207 {offsets = [0, 256], sizes = [8, 128], strides = [1, 1]} : vector<8x512xf32> to vector<8x128xf32>
    %221 = math.tanh %220 : vector<8x128xf32>
    %222 = vector.extract_strided_slice %207 {offsets = [0, 384], sizes = [8, 128], strides = [1, 1]} : vector<8x512xf32> to vector<8x128xf32>
    %223 = arith.negf %222 : vector<8x128xf32>
    %224 = math.exp %223 : vector<8x128xf32>
    %cst_80 = arith.constant 1.000000e+00 : f32
    %225 = vector.broadcast %cst_80 : f32 to vector<8x128xf32>
    %226 = arith.addf %225, %224 : vector<8x128xf32>
    %227 = arith.divf %225, %226 : vector<8x128xf32>
    %228 = arith.mulf %219, %168 : vector<8x128xf32>
    %229 = arith.mulf %213, %221 : vector<8x128xf32>
    %230 = arith.addf %228, %229 : vector<8x128xf32>
    %231 = math.tanh %230 : vector<8x128xf32>
    %232 = arith.mulf %227, %231 : vector<8x128xf32>
    %c32 = arith.constant 32 : index
    %c0_81 = arith.constant 0 : index
    %233 = vector.load %arg12[%c32, %c0_81] : memref<64x512xf32, #tpu.memory_space<vmem>>, vector<8x512xf32>
    %234 = arith.addf %233, %205 : vector<8x512xf32>
    %235 = vector.extract_strided_slice %234 {offsets = [0, 0], sizes = [8, 128], strides = [1, 1]} : vector<8x512xf32> to vector<8x128xf32>
    %236 = arith.negf %235 : vector<8x128xf32>
    %237 = math.exp %236 : vector<8x128xf32>
    %cst_82 = arith.constant 1.000000e+00 : f32
    %238 = vector.broadcast %cst_82 : f32 to vector<8x128xf32>
    %239 = arith.addf %238, %237 : vector<8x128xf32>
    %240 = arith.divf %238, %239 : vector<8x128xf32>
    %241 = vector.extract_strided_slice %234 {offsets = [0, 128], sizes = [8, 128], strides = [1, 1]} : vector<8x512xf32> to vector<8x128xf32>
    %242 = arith.negf %241 : vector<8x128xf32>
    %243 = math.exp %242 : vector<8x128xf32>
    %cst_83 = arith.constant 1.000000e+00 : f32
    %244 = vector.broadcast %cst_83 : f32 to vector<8x128xf32>
    %245 = arith.addf %244, %243 : vector<8x128xf32>
    %246 = arith.divf %244, %245 : vector<8x128xf32>
    %247 = vector.extract_strided_slice %234 {offsets = [0, 256], sizes = [8, 128], strides = [1, 1]} : vector<8x512xf32> to vector<8x128xf32>
    %248 = math.tanh %247 : vector<8x128xf32>
    %249 = vector.extract_strided_slice %234 {offsets = [0, 384], sizes = [8, 128], strides = [1, 1]} : vector<8x512xf32> to vector<8x128xf32>
    %250 = arith.negf %249 : vector<8x128xf32>
    %251 = math.exp %250 : vector<8x128xf32>
    %cst_84 = arith.constant 1.000000e+00 : f32
    %252 = vector.broadcast %cst_84 : f32 to vector<8x128xf32>
    %253 = arith.addf %252, %251 : vector<8x128xf32>
    %254 = arith.divf %252, %253 : vector<8x128xf32>
    %255 = arith.mulf %246, %195 : vector<8x128xf32>
    %256 = arith.mulf %240, %248 : vector<8x128xf32>
    %257 = arith.addf %255, %256 : vector<8x128xf32>
    %258 = math.tanh %257 : vector<8x128xf32>
    %259 = arith.mulf %254, %258 : vector<8x128xf32>
    %260 = arith.truncf %232 : vector<8x128xf32> to vector<8x128xbf16>
    %261 = arith.truncf %259 : vector<8x128xf32> to vector<8x128xbf16>
    %c24_85 = arith.constant 24 : index
    %c0_86 = arith.constant 0 : index
    %262 = vector.load %arg13[%c24_85, %c0_86] : memref<64x256xbf16, #tpu.memory_space<vmem>>, vector<8x128xbf16>
    tpu.vector_store %arg13[%c24_85, %c0_86], %260 {strides = array<i32>} : memref<64x256xbf16, #tpu.memory_space<vmem>>, vector<8x128xbf16>,
    %c32_87 = arith.constant 32 : index
    %c128_88 = arith.constant 128 : index
    %263 = vector.load %arg13[%c32_87, %c128_88] : memref<64x256xbf16, #tpu.memory_space<vmem>>, vector<8x128xbf16>
    tpu.vector_store %arg13[%c32_87, %c128_88], %261 {strides = array<i32>} : memref<64x256xbf16, #tpu.memory_space<vmem>>, vector<8x128xbf16>,
    %c0_89 = arith.constant 0 : index
    %c0_90 = arith.constant 0 : index
    %264 = vector.load %arg4[%c0_89, %c0_90] : memref<128x512xbf16, #tpu.memory_space<vmem>>, vector<128x512xbf16>
    %cst_91 = arith.constant dense<0.000000e+00> : vector<8x512xf32>
    %265 = tpu.matmul %260, %264, %cst_91 {dimension_numbers = #tpu.dot_dimension_numbers<[1], [0], [0], [1], [0, 0, 1, 1], [], []>} : vector<8x128xbf16>, vector<128x512xbf16>, vector<8x512xf32> -> vector<8x512xf32>
    %c0_92 = arith.constant 0 : index
    %c0_93 = arith.constant 0 : index
    %266 = vector.load %arg5[%c0_92, %c0_93] : memref<128x512xbf16, #tpu.memory_space<vmem>>, vector<128x512xbf16>
    %cst_94 = arith.constant dense<0.000000e+00> : vector<8x512xf32>
    %267 = tpu.matmul %261, %266, %cst_94 {dimension_numbers = #tpu.dot_dimension_numbers<[1], [0], [0], [1], [0, 0, 1, 1], [], []>} : vector<8x128xbf16>, vector<128x512xbf16>, vector<8x512xf32> -> vector<8x512xf32>
    %c32_95 = arith.constant 32 : index
    %c0_96 = arith.constant 0 : index
    %268 = vector.load %arg11[%c32_95, %c0_96] : memref<64x512xf32, #tpu.memory_space<vmem>>, vector<8x512xf32>
    %269 = arith.addf %268, %265 : vector<8x512xf32>
    %270 = vector.extract_strided_slice %269 {offsets = [0, 0], sizes = [8, 128], strides = [1, 1]} : vector<8x512xf32> to vector<8x128xf32>
    %271 = arith.negf %270 : vector<8x128xf32>
    %272 = math.exp %271 : vector<8x128xf32>
    %cst_97 = arith.constant 1.000000e+00 : f32
    %273 = vector.broadcast %cst_97 : f32 to vector<8x128xf32>
    %274 = arith.addf %273, %272 : vector<8x128xf32>
    %275 = arith.divf %273, %274 : vector<8x128xf32>
    %276 = vector.extract_strided_slice %269 {offsets = [0, 128], sizes = [8, 128], strides = [1, 1]} : vector<8x512xf32> to vector<8x128xf32>
    %277 = arith.negf %276 : vector<8x128xf32>
    %278 = math.exp %277 : vector<8x128xf32>
    %cst_98 = arith.constant 1.000000e+00 : f32
    %279 = vector.broadcast %cst_98 : f32 to vector<8x128xf32>
    %280 = arith.addf %279, %278 : vector<8x128xf32>
    %281 = arith.divf %279, %280 : vector<8x128xf32>
    %282 = vector.extract_strided_slice %269 {offsets = [0, 256], sizes = [8, 128], strides = [1, 1]} : vector<8x512xf32> to vector<8x128xf32>
    %283 = math.tanh %282 : vector<8x128xf32>
    %284 = vector.extract_strided_slice %269 {offsets = [0, 384], sizes = [8, 128], strides = [1, 1]} : vector<8x512xf32> to vector<8x128xf32>
    %285 = arith.negf %284 : vector<8x128xf32>
    %286 = math.exp %285 : vector<8x128xf32>
    %cst_99 = arith.constant 1.000000e+00 : f32
    %287 = vector.broadcast %cst_99 : f32 to vector<8x128xf32>
    %288 = arith.addf %287, %286 : vector<8x128xf32>
    %289 = arith.divf %287, %288 : vector<8x128xf32>
    %290 = arith.mulf %281, %230 : vector<8x128xf32>
    %291 = arith.mulf %275, %283 : vector<8x128xf32>
    %292 = arith.addf %290, %291 : vector<8x128xf32>
    %293 = math.tanh %292 : vector<8x128xf32>
    %294 = arith.mulf %289, %293 : vector<8x128xf32>
    %c24_100 = arith.constant 24 : index
    %c0_101 = arith.constant 0 : index
    %295 = vector.load %arg12[%c24_100, %c0_101] : memref<64x512xf32, #tpu.memory_space<vmem>>, vector<8x512xf32>
    %296 = arith.addf %295, %267 : vector<8x512xf32>
    %297 = vector.extract_strided_slice %296 {offsets = [0, 0], sizes = [8, 128], strides = [1, 1]} : vector<8x512xf32> to vector<8x128xf32>
    %298 = arith.negf %297 : vector<8x128xf32>
    %299 = math.exp %298 : vector<8x128xf32>
    %cst_102 = arith.constant 1.000000e+00 : f32
    %300 = vector.broadcast %cst_102 : f32 to vector<8x128xf32>
    %301 = arith.addf %300, %299 : vector<8x128xf32>
    %302 = arith.divf %300, %301 : vector<8x128xf32>
    %303 = vector.extract_strided_slice %296 {offsets = [0, 128], sizes = [8, 128], strides = [1, 1]} : vector<8x512xf32> to vector<8x128xf32>
    %304 = arith.negf %303 : vector<8x128xf32>
    %305 = math.exp %304 : vector<8x128xf32>
    %cst_103 = arith.constant 1.000000e+00 : f32
    %306 = vector.broadcast %cst_103 : f32 to vector<8x128xf32>
    %307 = arith.addf %306, %305 : vector<8x128xf32>
    %308 = arith.divf %306, %307 : vector<8x128xf32>
    %309 = vector.extract_strided_slice %296 {offsets = [0, 256], sizes = [8, 128], strides = [1, 1]} : vector<8x512xf32> to vector<8x128xf32>
    %310 = math.tanh %309 : vector<8x128xf32>
    %311 = vector.extract_strided_slice %296 {offsets = [0, 384], sizes = [8, 128], strides = [1, 1]} : vector<8x512xf32> to vector<8x128xf32>
    %312 = arith.negf %311 : vector<8x128xf32>
    %313 = math.exp %312 : vector<8x128xf32>
    %cst_104 = arith.constant 1.000000e+00 : f32
    %314 = vector.broadcast %cst_104 : f32 to vector<8x128xf32>
    %315 = arith.addf %314, %313 : vector<8x128xf32>
    %316 = arith.divf %314, %315 : vector<8x128xf32>
    %317 = arith.mulf %308, %257 : vector<8x128xf32>
    %318 = arith.mulf %302, %310 : vector<8x128xf32>
    %319 = arith.addf %317, %318 : vector<8x128xf32>
    %320 = math.tanh %319 : vector<8x128xf32>
    %321 = arith.mulf %316, %320 : vector<8x128xf32>
    %322 = arith.truncf %294 : vector<8x128xf32> to vector<8x128xbf16>
    %323 = arith.truncf %321 : vector<8x128xf32> to vector<8x128xbf16>
    %c32_105 = arith.constant 32 : index
    %c0_106 = arith.constant 0 : index
    %324 = vector.load %arg13[%c32_105, %c0_106] : memref<64x256xbf16, #tpu.memory_space<vmem>>, vector<8x128xbf16>
    tpu.vector_store %arg13[%c32_105, %c0_106], %322 {strides = array<i32>} : memref<64x256xbf16, #tpu.memory_space<vmem>>, vector<8x128xbf16>,
    %c24_107 = arith.constant 24 : index
    %c128_108 = arith.constant 128 : index
    %325 = vector.load %arg13[%c24_107, %c128_108] : memref<64x256xbf16, #tpu.memory_space<vmem>>, vector<8x128xbf16>
    tpu.vector_store %arg13[%c24_107, %c128_108], %323 {strides = array<i32>} : memref<64x256xbf16, #tpu.memory_space<vmem>>, vector<8x128xbf16>,
    %c0_109 = arith.constant 0 : index
    %c0_110 = arith.constant 0 : index
    %326 = vector.load %arg4[%c0_109, %c0_110] : memref<128x512xbf16, #tpu.memory_space<vmem>>, vector<128x512xbf16>
    %cst_111 = arith.constant dense<0.000000e+00> : vector<8x512xf32>
    %327 = tpu.matmul %322, %326, %cst_111 {dimension_numbers = #tpu.dot_dimension_numbers<[1], [0], [0], [1], [0, 0, 1, 1], [], []>} : vector<8x128xbf16>, vector<128x512xbf16>, vector<8x512xf32> -> vector<8x512xf32>
    %c0_112 = arith.constant 0 : index
    %c0_113 = arith.constant 0 : index
    %328 = vector.load %arg5[%c0_112, %c0_113] : memref<128x512xbf16, #tpu.memory_space<vmem>>, vector<128x512xbf16>
    %cst_114 = arith.constant dense<0.000000e+00> : vector<8x512xf32>
    %329 = tpu.matmul %323, %328, %cst_114 {dimension_numbers = #tpu.dot_dimension_numbers<[1], [0], [0], [1], [0, 0, 1, 1], [], []>} : vector<8x128xbf16>, vector<128x512xbf16>, vector<8x512xf32> -> vector<8x512xf32>
    %c40_115 = arith.constant 40 : index
    %c0_116 = arith.constant 0 : index
    %330 = vector.load %arg11[%c40_115, %c0_116] : memref<64x512xf32, #tpu.memory_space<vmem>>, vector<8x512xf32>
    %331 = arith.addf %330, %327 : vector<8x512xf32>
    %332 = vector.extract_strided_slice %331 {offsets = [0, 0], sizes = [8, 128], strides = [1, 1]} : vector<8x512xf32> to vector<8x128xf32>
    %333 = arith.negf %332 : vector<8x128xf32>
    %334 = math.exp %333 : vector<8x128xf32>
    %cst_117 = arith.constant 1.000000e+00 : f32
    %335 = vector.broadcast %cst_117 : f32 to vector<8x128xf32>
    %336 = arith.addf %335, %334 : vector<8x128xf32>
    %337 = arith.divf %335, %336 : vector<8x128xf32>
    %338 = vector.extract_strided_slice %331 {offsets = [0, 128], sizes = [8, 128], strides = [1, 1]} : vector<8x512xf32> to vector<8x128xf32>
    %339 = arith.negf %338 : vector<8x128xf32>
    %340 = math.exp %339 : vector<8x128xf32>
    %cst_118 = arith.constant 1.000000e+00 : f32
    %341 = vector.broadcast %cst_118 : f32 to vector<8x128xf32>
    %342 = arith.addf %341, %340 : vector<8x128xf32>
    %343 = arith.divf %341, %342 : vector<8x128xf32>
    %344 = vector.extract_strided_slice %331 {offsets = [0, 256], sizes = [8, 128], strides = [1, 1]} : vector<8x512xf32> to vector<8x128xf32>
    %345 = math.tanh %344 : vector<8x128xf32>
    %346 = vector.extract_strided_slice %331 {offsets = [0, 384], sizes = [8, 128], strides = [1, 1]} : vector<8x512xf32> to vector<8x128xf32>
    %347 = arith.negf %346 : vector<8x128xf32>
    %348 = math.exp %347 : vector<8x128xf32>
    %cst_119 = arith.constant 1.000000e+00 : f32
    %349 = vector.broadcast %cst_119 : f32 to vector<8x128xf32>
    %350 = arith.addf %349, %348 : vector<8x128xf32>
    %351 = arith.divf %349, %350 : vector<8x128xf32>
    %352 = arith.mulf %343, %292 : vector<8x128xf32>
    %353 = arith.mulf %337, %345 : vector<8x128xf32>
    %354 = arith.addf %352, %353 : vector<8x128xf32>
    %355 = math.tanh %354 : vector<8x128xf32>
    %356 = arith.mulf %351, %355 : vector<8x128xf32>
    %c16_120 = arith.constant 16 : index
    %c0_121 = arith.constant 0 : index
    %357 = vector.load %arg12[%c16_120, %c0_121] : memref<64x512xf32, #tpu.memory_space<vmem>>, vector<8x512xf32>
    %358 = arith.addf %357, %329 : vector<8x512xf32>
    %359 = vector.extract_strided_slice %358 {offsets = [0, 0], sizes = [8, 128], strides = [1, 1]} : vector<8x512xf32> to vector<8x128xf32>
    %360 = arith.negf %359 : vector<8x128xf32>
    %361 = math.exp %360 : vector<8x128xf32>
    %cst_122 = arith.constant 1.000000e+00 : f32
    %362 = vector.broadcast %cst_122 : f32 to vector<8x128xf32>
    %363 = arith.addf %362, %361 : vector<8x128xf32>
    %364 = arith.divf %362, %363 : vector<8x128xf32>
    %365 = vector.extract_strided_slice %358 {offsets = [0, 128], sizes = [8, 128], strides = [1, 1]} : vector<8x512xf32> to vector<8x128xf32>
    %366 = arith.negf %365 : vector<8x128xf32>
    %367 = math.exp %366 : vector<8x128xf32>
    %cst_123 = arith.constant 1.000000e+00 : f32
    %368 = vector.broadcast %cst_123 : f32 to vector<8x128xf32>
    %369 = arith.addf %368, %367 : vector<8x128xf32>
    %370 = arith.divf %368, %369 : vector<8x128xf32>
    %371 = vector.extract_strided_slice %358 {offsets = [0, 256], sizes = [8, 128], strides = [1, 1]} : vector<8x512xf32> to vector<8x128xf32>
    %372 = math.tanh %371 : vector<8x128xf32>
    %373 = vector.extract_strided_slice %358 {offsets = [0, 384], sizes = [8, 128], strides = [1, 1]} : vector<8x512xf32> to vector<8x128xf32>
    %374 = arith.negf %373 : vector<8x128xf32>
    %375 = math.exp %374 : vector<8x128xf32>
    %cst_124 = arith.constant 1.000000e+00 : f32
    %376 = vector.broadcast %cst_124 : f32 to vector<8x128xf32>
    %377 = arith.addf %376, %375 : vector<8x128xf32>
    %378 = arith.divf %376, %377 : vector<8x128xf32>
    %379 = arith.mulf %370, %319 : vector<8x128xf32>
    %380 = arith.mulf %364, %372 : vector<8x128xf32>
    %381 = arith.addf %379, %380 : vector<8x128xf32>
    %382 = math.tanh %381 : vector<8x128xf32>
    %383 = arith.mulf %378, %382 : vector<8x128xf32>
    %384 = arith.truncf %356 : vector<8x128xf32> to vector<8x128xbf16>
    %385 = arith.truncf %383 : vector<8x128xf32> to vector<8x128xbf16>
    %c40_125 = arith.constant 40 : index
    %c0_126 = arith.constant 0 : index
    %386 = vector.load %arg13[%c40_125, %c0_126] : memref<64x256xbf16, #tpu.memory_space<vmem>>, vector<8x128xbf16>
    tpu.vector_store %arg13[%c40_125, %c0_126], %384 {strides = array<i32>} : memref<64x256xbf16, #tpu.memory_space<vmem>>, vector<8x128xbf16>,
    %c16_127 = arith.constant 16 : index
    %c128_128 = arith.constant 128 : index
    %387 = vector.load %arg13[%c16_127, %c128_128] : memref<64x256xbf16, #tpu.memory_space<vmem>>, vector<8x128xbf16>
    tpu.vector_store %arg13[%c16_127, %c128_128], %385 {strides = array<i32>} : memref<64x256xbf16, #tpu.memory_space<vmem>>, vector<8x128xbf16>,
    %c0_129 = arith.constant 0 : index
    %c0_130 = arith.constant 0 : index
    %388 = vector.load %arg4[%c0_129, %c0_130] : memref<128x512xbf16, #tpu.memory_space<vmem>>, vector<128x512xbf16>
    %cst_131 = arith.constant dense<0.000000e+00> : vector<8x512xf32>
    %389 = tpu.matmul %384, %388, %cst_131 {dimension_numbers = #tpu.dot_dimension_numbers<[1], [0], [0], [1], [0, 0, 1, 1], [], []>} : vector<8x128xbf16>, vector<128x512xbf16>, vector<8x512xf32> -> vector<8x512xf32>
    %c0_132 = arith.constant 0 : index
    %c0_133 = arith.constant 0 : index
    %390 = vector.load %arg5[%c0_132, %c0_133] : memref<128x512xbf16, #tpu.memory_space<vmem>>, vector<128x512xbf16>
    %cst_134 = arith.constant dense<0.000000e+00> : vector<8x512xf32>
    %391 = tpu.matmul %385, %390, %cst_134 {dimension_numbers = #tpu.dot_dimension_numbers<[1], [0], [0], [1], [0, 0, 1, 1], [], []>} : vector<8x128xbf16>, vector<128x512xbf16>, vector<8x512xf32> -> vector<8x512xf32>
    %c48_135 = arith.constant 48 : index
    %c0_136 = arith.constant 0 : index
    %392 = vector.load %arg11[%c48_135, %c0_136] : memref<64x512xf32, #tpu.memory_space<vmem>>, vector<8x512xf32>
    %393 = arith.addf %392, %389 : vector<8x512xf32>
    %394 = vector.extract_strided_slice %393 {offsets = [0, 0], sizes = [8, 128], strides = [1, 1]} : vector<8x512xf32> to vector<8x128xf32>
    %395 = arith.negf %394 : vector<8x128xf32>
    %396 = math.exp %395 : vector<8x128xf32>
    %cst_137 = arith.constant 1.000000e+00 : f32
    %397 = vector.broadcast %cst_137 : f32 to vector<8x128xf32>
    %398 = arith.addf %397, %396 : vector<8x128xf32>
    %399 = arith.divf %397, %398 : vector<8x128xf32>
    %400 = vector.extract_strided_slice %393 {offsets = [0, 128], sizes = [8, 128], strides = [1, 1]} : vector<8x512xf32> to vector<8x128xf32>
    %401 = arith.negf %400 : vector<8x128xf32>
    %402 = math.exp %401 : vector<8x128xf32>
    %cst_138 = arith.constant 1.000000e+00 : f32
    %403 = vector.broadcast %cst_138 : f32 to vector<8x128xf32>
    %404 = arith.addf %403, %402 : vector<8x128xf32>
    %405 = arith.divf %403, %404 : vector<8x128xf32>
    %406 = vector.extract_strided_slice %393 {offsets = [0, 256], sizes = [8, 128], strides = [1, 1]} : vector<8x512xf32> to vector<8x128xf32>
    %407 = math.tanh %406 : vector<8x128xf32>
    %408 = vector.extract_strided_slice %393 {offsets = [0, 384], sizes = [8, 128], strides = [1, 1]} : vector<8x512xf32> to vector<8x128xf32>
    %409 = arith.negf %408 : vector<8x128xf32>
    %410 = math.exp %409 : vector<8x128xf32>
    %cst_139 = arith.constant 1.000000e+00 : f32
    %411 = vector.broadcast %cst_139 : f32 to vector<8x128xf32>
    %412 = arith.addf %411, %410 : vector<8x128xf32>
    %413 = arith.divf %411, %412 : vector<8x128xf32>
    %414 = arith.mulf %405, %354 : vector<8x128xf32>
    %415 = arith.mulf %399, %407 : vector<8x128xf32>
    %416 = arith.addf %414, %415 : vector<8x128xf32>
    %417 = math.tanh %416 : vector<8x128xf32>
    %418 = arith.mulf %413, %417 : vector<8x128xf32>
    %c8_140 = arith.constant 8 : index
    %c0_141 = arith.constant 0 : index
    %419 = vector.load %arg12[%c8_140, %c0_141] : memref<64x512xf32, #tpu.memory_space<vmem>>, vector<8x512xf32>
    %420 = arith.addf %419, %391 : vector<8x512xf32>
    %421 = vector.extract_strided_slice %420 {offsets = [0, 0], sizes = [8, 128], strides = [1, 1]} : vector<8x512xf32> to vector<8x128xf32>
    %422 = arith.negf %421 : vector<8x128xf32>
    %423 = math.exp %422 : vector<8x128xf32>
    %cst_142 = arith.constant 1.000000e+00 : f32
    %424 = vector.broadcast %cst_142 : f32 to vector<8x128xf32>
    %425 = arith.addf %424, %423 : vector<8x128xf32>
    %426 = arith.divf %424, %425 : vector<8x128xf32>
    %427 = vector.extract_strided_slice %420 {offsets = [0, 128], sizes = [8, 128], strides = [1, 1]} : vector<8x512xf32> to vector<8x128xf32>
    %428 = arith.negf %427 : vector<8x128xf32>
    %429 = math.exp %428 : vector<8x128xf32>
    %cst_143 = arith.constant 1.000000e+00 : f32
    %430 = vector.broadcast %cst_143 : f32 to vector<8x128xf32>
    %431 = arith.addf %430, %429 : vector<8x128xf32>
    %432 = arith.divf %430, %431 : vector<8x128xf32>
    %433 = vector.extract_strided_slice %420 {offsets = [0, 256], sizes = [8, 128], strides = [1, 1]} : vector<8x512xf32> to vector<8x128xf32>
    %434 = math.tanh %433 : vector<8x128xf32>
    %435 = vector.extract_strided_slice %420 {offsets = [0, 384], sizes = [8, 128], strides = [1, 1]} : vector<8x512xf32> to vector<8x128xf32>
    %436 = arith.negf %435 : vector<8x128xf32>
    %437 = math.exp %436 : vector<8x128xf32>
    %cst_144 = arith.constant 1.000000e+00 : f32
    %438 = vector.broadcast %cst_144 : f32 to vector<8x128xf32>
    %439 = arith.addf %438, %437 : vector<8x128xf32>
    %440 = arith.divf %438, %439 : vector<8x128xf32>
    %441 = arith.mulf %432, %381 : vector<8x128xf32>
    %442 = arith.mulf %426, %434 : vector<8x128xf32>
    %443 = arith.addf %441, %442 : vector<8x128xf32>
    %444 = math.tanh %443 : vector<8x128xf32>
    %445 = arith.mulf %440, %444 : vector<8x128xf32>
    %446 = arith.truncf %418 : vector<8x128xf32> to vector<8x128xbf16>
    %447 = arith.truncf %445 : vector<8x128xf32> to vector<8x128xbf16>
    %c48_145 = arith.constant 48 : index
    %c0_146 = arith.constant 0 : index
    %448 = vector.load %arg13[%c48_145, %c0_146] : memref<64x256xbf16, #tpu.memory_space<vmem>>, vector<8x128xbf16>
    tpu.vector_store %arg13[%c48_145, %c0_146], %446 {strides = array<i32>} : memref<64x256xbf16, #tpu.memory_space<vmem>>, vector<8x128xbf16>,
    %c8_147 = arith.constant 8 : index
    %c128_148 = arith.constant 128 : index
    %449 = vector.load %arg13[%c8_147, %c128_148] : memref<64x256xbf16, #tpu.memory_space<vmem>>, vector<8x128xbf16>
    tpu.vector_store %arg13[%c8_147, %c128_148], %447 {strides = array<i32>} : memref<64x256xbf16, #tpu.memory_space<vmem>>, vector<8x128xbf16>,
    %c0_149 = arith.constant 0 : index
    %c0_150 = arith.constant 0 : index
    %450 = vector.load %arg4[%c0_149, %c0_150] : memref<128x512xbf16, #tpu.memory_space<vmem>>, vector<128x512xbf16>
    %cst_151 = arith.constant dense<0.000000e+00> : vector<8x512xf32>
    %451 = tpu.matmul %446, %450, %cst_151 {dimension_numbers = #tpu.dot_dimension_numbers<[1], [0], [0], [1], [0, 0, 1, 1], [], []>} : vector<8x128xbf16>, vector<128x512xbf16>, vector<8x512xf32> -> vector<8x512xf32>
    %c0_152 = arith.constant 0 : index
    %c0_153 = arith.constant 0 : index
    %452 = vector.load %arg5[%c0_152, %c0_153] : memref<128x512xbf16, #tpu.memory_space<vmem>>, vector<128x512xbf16>
    %cst_154 = arith.constant dense<0.000000e+00> : vector<8x512xf32>
    %453 = tpu.matmul %447, %452, %cst_154 {dimension_numbers = #tpu.dot_dimension_numbers<[1], [0], [0], [1], [0, 0, 1, 1], [], []>} : vector<8x128xbf16>, vector<128x512xbf16>, vector<8x512xf32> -> vector<8x512xf32>
    %c56_155 = arith.constant 56 : index
    %c0_156 = arith.constant 0 : index
    %454 = vector.load %arg11[%c56_155, %c0_156] : memref<64x512xf32, #tpu.memory_space<vmem>>, vector<8x512xf32>
    %455 = arith.addf %454, %451 : vector<8x512xf32>
    %456 = vector.extract_strided_slice %455 {offsets = [0, 0], sizes = [8, 128], strides = [1, 1]} : vector<8x512xf32> to vector<8x128xf32>
    %457 = arith.negf %456 : vector<8x128xf32>
    %458 = math.exp %457 : vector<8x128xf32>
    %cst_157 = arith.constant 1.000000e+00 : f32
    %459 = vector.broadcast %cst_157 : f32 to vector<8x128xf32>
    %460 = arith.addf %459, %458 : vector<8x128xf32>
    %461 = arith.divf %459, %460 : vector<8x128xf32>
    %462 = vector.extract_strided_slice %455 {offsets = [0, 128], sizes = [8, 128], strides = [1, 1]} : vector<8x512xf32> to vector<8x128xf32>
    %463 = arith.negf %462 : vector<8x128xf32>
    %464 = math.exp %463 : vector<8x128xf32>
    %cst_158 = arith.constant 1.000000e+00 : f32
    %465 = vector.broadcast %cst_158 : f32 to vector<8x128xf32>
    %466 = arith.addf %465, %464 : vector<8x128xf32>
    %467 = arith.divf %465, %466 : vector<8x128xf32>
    %468 = vector.extract_strided_slice %455 {offsets = [0, 256], sizes = [8, 128], strides = [1, 1]} : vector<8x512xf32> to vector<8x128xf32>
    %469 = math.tanh %468 : vector<8x128xf32>
    %470 = vector.extract_strided_slice %455 {offsets = [0, 384], sizes = [8, 128], strides = [1, 1]} : vector<8x512xf32> to vector<8x128xf32>
    %471 = arith.negf %470 : vector<8x128xf32>
    %472 = math.exp %471 : vector<8x128xf32>
    %cst_159 = arith.constant 1.000000e+00 : f32
    %473 = vector.broadcast %cst_159 : f32 to vector<8x128xf32>
    %474 = arith.addf %473, %472 : vector<8x128xf32>
    %475 = arith.divf %473, %474 : vector<8x128xf32>
    %476 = arith.mulf %467, %416 : vector<8x128xf32>
    %477 = arith.mulf %461, %469 : vector<8x128xf32>
    %478 = arith.addf %476, %477 : vector<8x128xf32>
    %479 = math.tanh %478 : vector<8x128xf32>
    %480 = arith.mulf %475, %479 : vector<8x128xf32>
    %c0_160 = arith.constant 0 : index
    %c0_161 = arith.constant 0 : index
    %481 = vector.load %arg12[%c0_160, %c0_161] : memref<64x512xf32, #tpu.memory_space<vmem>>, vector<8x512xf32>
    %482 = arith.addf %481, %453 : vector<8x512xf32>
    %483 = vector.extract_strided_slice %482 {offsets = [0, 0], sizes = [8, 128], strides = [1, 1]} : vector<8x512xf32> to vector<8x128xf32>
    %484 = arith.negf %483 : vector<8x128xf32>
    %485 = math.exp %484 : vector<8x128xf32>
    %cst_162 = arith.constant 1.000000e+00 : f32
    %486 = vector.broadcast %cst_162 : f32 to vector<8x128xf32>
    %487 = arith.addf %486, %485 : vector<8x128xf32>
    %488 = arith.divf %486, %487 : vector<8x128xf32>
    %489 = vector.extract_strided_slice %482 {offsets = [0, 128], sizes = [8, 128], strides = [1, 1]} : vector<8x512xf32> to vector<8x128xf32>
    %490 = arith.negf %489 : vector<8x128xf32>
    %491 = math.exp %490 : vector<8x128xf32>
    %cst_163 = arith.constant 1.000000e+00 : f32
    %492 = vector.broadcast %cst_163 : f32 to vector<8x128xf32>
    %493 = arith.addf %492, %491 : vector<8x128xf32>
    %494 = arith.divf %492, %493 : vector<8x128xf32>
    %495 = vector.extract_strided_slice %482 {offsets = [0, 256], sizes = [8, 128], strides = [1, 1]} : vector<8x512xf32> to vector<8x128xf32>
    %496 = math.tanh %495 : vector<8x128xf32>
    %497 = vector.extract_strided_slice %482 {offsets = [0, 384], sizes = [8, 128], strides = [1, 1]} : vector<8x512xf32> to vector<8x128xf32>
    %498 = arith.negf %497 : vector<8x128xf32>
    %499 = math.exp %498 : vector<8x128xf32>
    %cst_164 = arith.constant 1.000000e+00 : f32
    %500 = vector.broadcast %cst_164 : f32 to vector<8x128xf32>
    %501 = arith.addf %500, %499 : vector<8x128xf32>
    %502 = arith.divf %500, %501 : vector<8x128xf32>
    %503 = arith.mulf %494, %443 : vector<8x128xf32>
    %504 = arith.mulf %488, %496 : vector<8x128xf32>
    %505 = arith.addf %503, %504 : vector<8x128xf32>
    %506 = math.tanh %505 : vector<8x128xf32>
    %507 = arith.mulf %502, %506 : vector<8x128xf32>
    %508 = arith.truncf %480 : vector<8x128xf32> to vector<8x128xbf16>
    %509 = arith.truncf %507 : vector<8x128xf32> to vector<8x128xbf16>
    %c56_165 = arith.constant 56 : index
    %c0_166 = arith.constant 0 : index
    %510 = vector.load %arg13[%c56_165, %c0_166] : memref<64x256xbf16, #tpu.memory_space<vmem>>, vector<8x128xbf16>
    tpu.vector_store %arg13[%c56_165, %c0_166], %508 {strides = array<i32>} : memref<64x256xbf16, #tpu.memory_space<vmem>>, vector<8x128xbf16>,
    %c0_167 = arith.constant 0 : index
    %c128_168 = arith.constant 128 : index
    %511 = vector.load %arg13[%c0_167, %c128_168] : memref<64x256xbf16, #tpu.memory_space<vmem>>, vector<8x128xbf16>
    tpu.vector_store %arg13[%c0_167, %c128_168], %509 {strides = array<i32>} : memref<64x256xbf16, #tpu.memory_space<vmem>>, vector<8x128xbf16>,
    %c0_169 = arith.constant 0 : index
    %c0_170 = arith.constant 0 : index
    %512 = vector.load %arg13[%c0_169, %c0_170] : memref<64x256xbf16, #tpu.memory_space<vmem>>, vector<64x256xbf16>
    %c0_171 = arith.constant 0 : index
    %c0_172 = arith.constant 0 : index
    %513 = vector.load %arg8[%c0_171, %c0_172] : memref<256x128xbf16, #tpu.memory_space<vmem>>, vector<256x128xbf16>
    %cst_173 = arith.constant dense<0.000000e+00> : vector<64x128xf32>
    %514 = tpu.matmul %512, %513, %cst_173 {dimension_numbers = #tpu.dot_dimension_numbers<[1], [0], [0], [1], [0, 0, 1, 1], [], []>} : vector<64x256xbf16>, vector<256x128xbf16>, vector<64x128xf32> -> vector<64x128xf32>
    %c0_174 = arith.constant 0 : index
    %c0_175 = arith.constant 0 : index
    %515 = vector.load %arg9[%c0_174, %c0_175] : memref<1x128xf32, #tpu.memory_space<vmem>>, vector<1x128xf32>
    %516 = vector.broadcast %515 : vector<1x128xf32> to vector<64x128xf32>
    %517 = arith.addf %514, %516 : vector<64x128xf32>
    %518 = vector.shape_cast %517 : vector<64x128xf32> to vector<8x8x128xf32>
    %c0_176 = arith.constant 0 : index
    %c0_177 = arith.constant 0 : index
    %c0_178 = arith.constant 0 : index
    %519 = vector.load %arg10[%c0_176, %c0_177, %c0_178] : memref<8x8x128xf32, #tpu.memory_space<vmem>>, vector<8x8x128xf32>
    tpu.vector_store %arg10[%c0_176, %c0_177, %c0_178], %518 {strides = array<i32>} : memref<8x8x128xf32, #tpu.memory_space<vmem>>, vector<8x8x128xf32>,
    return
  }
  func.func @transform_0(%arg0: i32) -> (i32, i32, i32) {
    %c0_i32 = arith.constant 0 : i32
    %c0_i32_0 = arith.constant 0 : i32
    %c0_i32_1 = arith.constant 0 : i32
    return %c0_i32, %arg0, %c0_i32_0 : i32, i32, i32
  }
  func.func @transform_1(%arg0: i32) -> (i32, i32) {
    %c0_i32 = arith.constant 0 : i32
    %c0_i32_0 = arith.constant 0 : i32
    %c0_i32_1 = arith.constant 0 : i32
    return %c0_i32, %c0_i32_0 : i32, i32
  }
  func.func @transform_2(%arg0: i32) -> (i32, i32) {
    %c0_i32 = arith.constant 0 : i32
    %c0_i32_0 = arith.constant 0 : i32
    %c0_i32_1 = arith.constant 0 : i32
    return %c0_i32, %c0_i32_0 : i32, i32
  }
  func.func @transform_3(%arg0: i32) -> (i32, i32) {
    %c0_i32 = arith.constant 0 : i32
    %c0_i32_0 = arith.constant 0 : i32
    %c0_i32_1 = arith.constant 0 : i32
    return %c0_i32, %c0_i32_0 : i32, i32
  }
  func.func @transform_4(%arg0: i32) -> (i32, i32) {
    %c0_i32 = arith.constant 0 : i32
    %c0_i32_0 = arith.constant 0 : i32
    %c0_i32_1 = arith.constant 0 : i32
    return %c0_i32, %c0_i32_0 : i32, i32
  }
  func.func @transform_5(%arg0: i32) -> (i32, i32) {
    %c0_i32 = arith.constant 0 : i32
    %c0_i32_0 = arith.constant 0 : i32
    %c0_i32_1 = arith.constant 0 : i32
    return %c0_i32, %c0_i32_0 : i32, i32
  }
  func.func @transform_6(%arg0: i32) -> (i32, i32) {
    %c0_i32 = arith.constant 0 : i32
    %c0_i32_0 = arith.constant 0 : i32
    %c0_i32_1 = arith.constant 0 : i32
    return %c0_i32, %c0_i32_0 : i32, i32
  }
  func.func @transform_7(%arg0: i32) -> (i32, i32) {
    %c0_i32 = arith.constant 0 : i32
    %c0_i32_0 = arith.constant 0 : i32
    %c0_i32_1 = arith.constant 0 : i32
    return %c0_i32, %c0_i32_0 : i32, i32
  }
  func.func @transform_8(%arg0: i32) -> (i32, i32) {
    %c0_i32 = arith.constant 0 : i32
    %c0_i32_0 = arith.constant 0 : i32
    %c0_i32_1 = arith.constant 0 : i32
    return %c0_i32, %c0_i32_0 : i32, i32
  }
  func.func @transform_9(%arg0: i32) -> (i32, i32, i32) {
    %c0_i32 = arith.constant 0 : i32
    %c0_i32_0 = arith.constant 0 : i32
    %c0_i32_1 = arith.constant 0 : i32
    return %c0_i32, %arg0, %c0_i32_0 : i32, i32, i32
  }
}

</mosaic_0001>

<llo_original>
// kernel: forward.1
$region0: #{forward.1}
  #allocation0 [shape = 'u32[]', space=smem, size = 0x4, offset = 0x4, fixed_abs, tag = 'smem constant byte address 0x4 - core index']
  #allocation1 [shape = 'u32[72,128]{1,0:T(1,128)}', space=vmem, size = 0x9000, scoped, tag = 'internal scratch']
  #allocation2 [shape = 'f32[64,512]{1,0:T(8,128)}', space=vmem, size = 0x20000, scoped, tag = 'scratch operand']
  #allocation3 [shape = 'f32[64,512]{1,0:T(8,128)}', space=vmem, size = 0x20000, scoped, tag = 'scratch operand']
  #allocation4 [shape = 'bf16[64,256]{1,0:T(8,128)(2,1)}', space=vmem, size = 0x8000, scoped, tag = 'scratch operand']
  %s0 = inlined_call_operand.vmem [shape: bf16[8,8,48], index: 0, kind: input, shape index: {}]
  %s1 = inlined_call_operand.hbm [shape: bf16[48,512], index: 1, kind: input, shape index: {}]
  %s2 = inlined_call_operand.hbm [shape: bf16[48,512], index: 2, kind: input, shape index: {}]
  %s3 = inlined_call_operand.hbm [shape: bf16[128,512], index: 3, kind: input, shape index: {}]
  %s4 = inlined_call_operand.hbm [shape: bf16[128,512], index: 4, kind: input, shape index: {}]
  %s5 = inlined_call_operand.vmem [shape: f32[1,512], index: 5, kind: input, shape index: {}]
  %s6 = inlined_call_operand.vmem [shape: f32[1,512], index: 6, kind: input, shape index: {}]
  %s7 = inlined_call_operand.vmem [shape: bf16[256,128], index: 7, kind: input, shape index: {}]
  %s8 = inlined_call_operand.vmem [shape: f32[1,128], index: 8, kind: input, shape index: {}]
  %s9 = inlined_call_operand.vmem [shape: f32[8,8,128], index: 9, kind: output, shape index: {}]
  %s10 = sld [smem:[#allocation0]]
  $region62: #{forward.1} parent=0
    _
  %s12 = ssub.s32 1, %s10
  %s13 = scalar_select 0, %s12, %s10
  $region1: #{forward.1} parent=0
    #allocation5 [shape = 'u8[49152]{0}', space=vmem, size = 0xc000, scoped, tag = 'input window, operand 1, single buffered']
    #allocation6 [shape = 's32[1]{0}', space=sflag, size = 0x4, scoped, tag = 'scoped memory for forward.1']
    #allocation7 [shape = 'u8[49152]{0}', space=vmem, size = 0xc000, scoped, tag = 'input window, operand 2, single buffered']
    #allocation8 [shape = 's32[1]{0}', space=sflag, size = 0x4, scoped, tag = 'scoped memory for forward.1']
    #allocation9 [shape = 'u8[131072]{0}', space=vmem, size = 0x20000, scoped, tag = 'input window, operand 3, single buffered']
    #allocation10 [shape = 'u8[131072]{0}', space=vmem, size = 0x20000, scoped, tag = 'input window, operand 4, single buffered']
    #allocation11 [shape = 's32[1]{0}', space=sflag, size = 0x4, scoped, tag = 'scoped memory for forward.1']
    %14 = vsyncpa [#allocation6], 0
    %15 = vsyncpa [#allocation8], 0
    %16 = vsyncpa [#allocation11], 0
    // Predicated region
    $region2: #{forward.1} parent=1 // pred_check
      _
    $region3: #{forward.1} parent=1 // pred_check_branch
      %18 = sbr.rel (0) target = $region5
    $region4: #{forward.1} parent=1 // pred_region
      _
    $region5: #{forward.1} parent=1 // pred_fallthru
      _
    // Predicated region
    $region6: #{forward.1} parent=1 // pred_check
      _
    $region7: #{forward.1} parent=1 // pred_check_branch
      %20 = sbr.rel (0) target = $region9
    $region8: #{forward.1} parent=1 // pred_region
      %22 = vsyncadd [#allocation6], 0
      %s23 = sshll.u32 %s1, 4
      %s24 = int_to_ptr.hbm [resolvable:$true] %s23
      %s25 = sshll.u32 [#allocation5], 4
      %s26 = int_to_ptr.vmem [resolvable:$true] %s25
      %31 = dma.hbm_to_vmem [thread:$0]  %s24, 1536, %s26, [#allocation6], 256, 256, 16
    $region9: #{forward.1} parent=1 // pred_fallthru
      _
    // Predicated region
    $region10: #{forward.1} parent=1 // pred_check
      _
    $region11: #{forward.1} parent=1 // pred_check_branch
      %33 = sbr.rel (0) target = $region13
    $region12: #{forward.1} parent=1 // pred_region
      %35 = vsyncadd [#allocation8], 0
      %s36 = sshll.u32 %s2, 4
      %s37 = int_to_ptr.hbm [resolvable:$true] %s36
      %s38 = sshll.u32 [#allocation7], 4
      %s39 = int_to_ptr.vmem [resolvable:$true] %s38
      %44 = dma.hbm_to_vmem [thread:$0]  %s37, 1536, %s39, [#allocation8], 256, 256, 16
    $region13: #{forward.1} parent=1 // pred_fallthru
      _
    // Predicated region
    $region14: #{forward.1} parent=1 // pred_check
      _
    $region15: #{forward.1} parent=1 // pred_check_branch
      %46 = sbr.rel (0) target = $region17
    $region16: #{forward.1} parent=1 // pred_region
      %48 = vsyncadd [#allocation8], 0
      %s49 = sshll.u32 %s3, 4
      %s50 = int_to_ptr.hbm [resolvable:$true] %s49
      %s51 = sshll.u32 [#allocation9], 4
      %s52 = int_to_ptr.vmem [resolvable:$true] %s51
      %57 = dma.hbm_to_vmem [thread:$0]  %s50, 4096, %s52, [#allocation8], 256, 256, 16
    $region17: #{forward.1} parent=1 // pred_fallthru
      _
    // Predicated region
    $region18: #{forward.1} parent=1 // pred_check
      _
    $region19: #{forward.1} parent=1 // pred_check_branch
      %59 = sbr.rel (0) target = $region21
    $region20: #{forward.1} parent=1 // pred_region
      %61 = vsyncadd [#allocation11], 0
      %s62 = sshll.u32 %s4, 4
      %s63 = int_to_ptr.hbm [resolvable:$true] %s62
      %s64 = sshll.u32 [#allocation10], 4
      %s65 = int_to_ptr.vmem [resolvable:$true] %s64
      %70 = dma.hbm_to_vmem [thread:$0]  %s63, 4096, %s65, [#allocation11], 256, 256, 16
    $region21: #{forward.1} parent=1 // pred_fallthru
      _
    // Predicated region
    $region22: #{forward.1} parent=1 // pred_check
      _
    $region23: #{forward.1} parent=1 // pred_check_branch
      %72 = sbr.rel (0) target = $region25
    $region24: #{forward.1} parent=1 // pred_region
      _
    $region25: #{forward.1} parent=1 // pred_fallthru
      _
    // Predicated region
    $region26: #{forward.1} parent=1 // pred_check
      _
    $region27: #{forward.1} parent=1 // pred_check_branch
      %74 = sbr.rel (0) target = $region29
    $region28: #{forward.1} parent=1 // pred_region
      _
    $region29: #{forward.1} parent=1 // pred_fallthru
      _
    // Predicated region
    $region30: #{forward.1} parent=1 // pred_check
      _
    $region31: #{forward.1} parent=1 // pred_check_branch
      %76 = sbr.rel (0) target = $region33
    $region32: #{forward.1} parent=1 // pred_region
      _
    $region33: #{forward.1} parent=1 // pred_fallthru
      _
    // Predicated region
    $region34: #{forward.1} parent=1 // pred_check
      _
    $region35: #{forward.1} parent=1 // pred_check_branch
      %78 = sbr.rel (0) target = $region37
    $region36: #{forward.1} parent=1 // pred_region
      _
    $region37: #{forward.1} parent=1 // pred_fallthru
      _
    // Predicated region
    $region38: #{forward.1} parent=1 // pred_check
      _
    $region39: #{forward.1} parent=1 // pred_check_branch
      %80 = sbr.rel (0) target = $region41
    $region40: #{forward.1} parent=1 // pred_region
      %82 = dma.done [#allocation6], 1536
    $region41: #{forward.1} parent=1 // pred_fallthru
      _
    // Predicated region
    $region42: #{forward.1} parent=1 // pred_check
      _
    $region43: #{forward.1} parent=1 // pred_check_branch
      %84 = sbr.rel (0) target = $region45
    $region44: #{forward.1} parent=1 // pred_region
      %86 = dma.done [#allocation8], 1536
    $region45: #{forward.1} parent=1 // pred_fallthru
      _
    // Predicated region
    $region46: #{forward.1} parent=1 // pred_check
      _
    $region47: #{forward.1} parent=1 // pred_check_branch
      %88 = sbr.rel (0) target = $region49
    $region48: #{forward.1} parent=1 // pred_region
      %90 = dma.done [#allocation8], 4096
    $region49: #{forward.1} parent=1 // pred_fallthru
      _
    // Predicated region
    $region50: #{forward.1} parent=1 // pred_check
      _
    $region51: #{forward.1} parent=1 // pred_check_branch
      %92 = sbr.rel (0) target = $region53
    $region52: #{forward.1} parent=1 // pred_region
      %94 = dma.done [#allocation11], 4096
    $region53: #{forward.1} parent=1 // pred_fallthru
      _
    %v96 = vld [vmem:[%s0] sm:$0xf]
    %v97 = vld [vmem:[%s0 + $0x4] sm:$0xf]
    %v98 = vld [vmem:[%s0 + $0x8] sm:$0xf]
    %v99 = vld [vmem:[%s0 + $0xc] sm:$0xf]
    %v100 = vld [vmem:[%s0 + $0x10] sm:$0xf]
    %v101 = vld [vmem:[%s0 + $0x14] sm:$0xf]
    %v102 = vld [vmem:[%s0 + $0x18] sm:$0xf]
    %v103 = vld [vmem:[%s0 + $0x1c] sm:$0xf]
    %v104 = vld [vmem:[#allocation5] sm:$0xff]
    %v105 = vld [vmem:[#allocation5 + $0x8] sm:$0xff]
    %v106 = vld [vmem:[#allocation5 + $0x10] sm:$0xff]
    %v107 = vld [vmem:[#allocation5 + $0x18] sm:$0xff]
    %v108 = vld [vmem:[#allocation5 + $0x20] sm:$0xff]
    %v109 = vld [vmem:[#allocation5 + $0x28] sm:$0xff]
    %v110 = vld [vmem:[#allocation5 + $0x30] sm:$0xff]
    %v111 = vld [vmem:[#allocation5 + $0x38] sm:$0xff]
    %v112 = vld [vmem:[#allocation5 + $0x40] sm:$0xff]
    %v113 = vld [vmem:[#allocation5 + $0x48] sm:$0xff]
    %v114 = vld [vmem:[#allocation5 + $0x50] sm:$0xff]
    %v115 = vld [vmem:[#allocation5 + $0x58] sm:$0xff]
    %v116 = vld [vmem:[%s5] sm:$0xf]
    %v118 = vperm.slane %v116, 0
    %v119 = vperm.slane %v116, 1
    %v120 = vperm.slane %v116, 2
    %v121 = vperm.slane %v116, 3
    %v134 = vunpack.c.l.b16 %v96
    %v135 = vunpack.c.l.b16 %v97
    %v136 = vunpack.c.l.b16 %v98
    %v137 = vunpack.c.l.b16 %v99
    %v138 = vunpack.c.l.b16 %v100
    %v139 = vunpack.c.l.b16 %v101
    %v140 = vunpack.c.l.b16 %v102
    %v141 = vunpack.c.l.b16 %v103
    %v142 = vpack.c.b16 %v135, %v134
    %v143 = vpack.c.b16 %v137, %v136
    %v144 = vpack.c.b16 %v139, %v138
    %v145 = vpack.c.b16 %v141, %v140
    %v158 = vunpack.c.l.b16 %v104
    %v159 = vunpack.c.h.b16 %v104
    %v160 = vunpack.c.l.b16 %v105
    %v161 = vunpack.c.h.b16 %v105
    %v162 = vunpack.c.l.b16 %v106
    %v163 = vunpack.c.h.b16 %v106
    %v164 = vunpack.c.l.b16 %v107
    %v165 = vunpack.c.h.b16 %v107
    %v166 = vunpack.c.l.b16 %v108
    %v167 = vunpack.c.h.b16 %v108
    %v168 = vunpack.c.l.b16 %v109
    %v169 = vunpack.c.h.b16 %v109
    %v170 = vunpack.c.l.b16 %v110
    %v171 = vunpack.c.h.b16 %v110
    %v172 = vunpack.c.l.b16 %v111
    %v173 = vunpack.c.h.b16 %v111
    %v174 = vunpack.c.l.b16 %v112
    %v175 = vunpack.c.h.b16 %v112
    %v176 = vunpack.c.l.b16 %v113
    %v177 = vunpack.c.h.b16 %v113
    %v178 = vunpack.c.l.b16 %v114
    %v179 = vunpack.c.h.b16 %v114
    %v180 = vunpack.c.l.b16 %v115
    %v181 = vunpack.c.h.b16 %v115
    %v182 = vpack.c.b16 %v162, %v158
    %v183 = vpack.c.b16 %v163, %v159
    %v184 = vpack.c.b16 %v164, %v160
    %v185 = vpack.c.b16 %v165, %v161
    %v186 = vpack.c.b16 %v170, %v166
    %v187 = vpack.c.b16 %v171, %v167
    %v188 = vpack.c.b16 %v172, %v168
    %v189 = vpack.c.b16 %v173, %v169
    %v190 = vpack.c.b16 %v178, %v174
    %v191 = vpack.c.b16 %v179, %v175
    %v192 = vpack.c.b16 %v180, %v176
    %v193 = vpack.c.b16 %v181, %v177
    %vm206 = vcmask 392192
    %v208 = vsel %vm206, %v142, 0
    %v211 = vsel %vm206, %v143, 0
    %v214 = vsel %vm206, %v144, 0
    %v217 = vsel %vm206, %v145, 0
    %219 = vmatpush.bf16.msra.mxu0 0
    %220 = vmatpush.bf16.msra.mxu0 0
    %221 = vmatpush.bf16.msra.mxu0 0
    %222 = vmatpush.bf16.msra.mxu0 0
    %223 = vmatpush.bf16.msra.mxu0 0
    %224 = vmatpush.bf16.msra.mxu0 %v190
    %225 = vmatpush.bf16.msra.mxu0 %v186
    %226 = vmatpush.bf16.msra.mxu0 %v182
    %227 = vmatmul.bf16.gmra.mxu0 %v208
    %v228 = vpop.f32.mrf.mxu0
    %v229 = vadd.f32 %v118, %v228
    %v230 = vpop.f32.mrf.mxu0
    %v231 = vadd.f32 %v118, %v230
    %232 = vmatmul.bf16.gmra.mxu0 %v211
    %v233 = vpop.f32.mrf.mxu0
    %v234 = vadd.f32 %v118, %v233
    %v235 = vpop.f32.mrf.mxu0
    %v236 = vadd.f32 %v118, %v235
    %237 = vmatmul.bf16.gmra.mxu0 %v214
    %v238 = vpop.f32.mrf.mxu0
    %v239 = vadd.f32 %v118, %v238
    %v240 = vpop.f32.mrf.mxu0
    %v241 = vadd.f32 %v118, %v240
    %242 = vmatmul.bf16.gmra.mxu0 %v217
    %v243 = vpop.f32.mrf.mxu0
    %v244 = vadd.f32 %v118, %v243
    %v245 = vpop.f32.mrf.mxu0
    %v246 = vadd.f32 %v118, %v245
    %247 = vdwg.mxu0
    %248 = vmatpush.bf16.msra.mxu0 0
    %249 = vmatpush.bf16.msra.mxu0 0
    %250 = vmatpush.bf16.msra.mxu0 0
    %251 = vmatpush.bf16.msra.mxu0 0
    %252 = vmatpush.bf16.msra.mxu0 0
    %253 = vmatpush.bf16.msra.mxu0 %v191
    %254 = vmatpush.bf16.msra.mxu0 %v187
    %255 = vmatpush.bf16.msra.mxu0 %v183
    %256 = vmatmul.bf16.gmra.mxu0 %v208
    %v257 = vpop.f32.mrf.mxu0
    %v258 = vadd.f32 %v119, %v257
    %v259 = vpop.f32.mrf.mxu0
    %v260 = vadd.f32 %v119, %v259
    %261 = vmatmul.bf16.gmra.mxu0 %v211
    %v262 = vpop.f32.mrf.mxu0
    %v263 = vadd.f32 %v119, %v262
    %v264 = vpop.f32.mrf.mxu0
    %v265 = vadd.f32 %v119, %v264
    %266 = vmatmul.bf16.gmra.mxu0 %v214
    %v267 = vpop.f32.mrf.mxu0
    %v268 = vadd.f32 %v119, %v267
    %v269 = vpop.f32.mrf.mxu0
    %v270 = vadd.f32 %v119, %v269
    %271 = vmatmul.bf16.gmra.mxu0 %v217
    %v272 = vpop.f32.mrf.mxu0
    %v273 = vadd.f32 %v119, %v272
    %v274 = vpop.f32.mrf.mxu0
    %v275 = vadd.f32 %v119, %v274
    %276 = vdwg.mxu0
    %277 = vmatpush.bf16.msra.mxu0 0
    %278 = vmatpush.bf16.msra.mxu0 0
    %279 = vmatpush.bf16.msra.mxu0 0
    %280 = vmatpush.bf16.msra.mxu0 0
    %281 = vmatpush.bf16.msra.mxu0 0
    %282 = vmatpush.bf16.msra.mxu0 %v192
    %283 = vmatpush.bf16.msra.mxu0 %v188
    %284 = vmatpush.bf16.msra.mxu0 %v184
    %285 = vmatmul.bf16.gmra.mxu0 %v208
    %v286 = vpop.f32.mrf.mxu0
    %v287 = vadd.f32 %v120, %v286
    %v288 = vpop.f32.mrf.mxu0
    %v289 = vadd.f32 %v120, %v288
    %290 = vmatmul.bf16.gmra.mxu0 %v211
    %v291 = vpop.f32.mrf.mxu0
    %v292 = vadd.f32 %v120, %v291
    %v293 = vpop.f32.mrf.mxu0
    %v294 = vadd.f32 %v120, %v293
    %295 = vmatmul.bf16.gmra.mxu0 %v214
    %v296 = vpop.f32.mrf.mxu0
    %v297 = vadd.f32 %v120, %v296
    %v298 = vpop.f32.mrf.mxu0
    %v299 = vadd.f32 %v120, %v298
    %300 = vmatmul.bf16.gmra.mxu0 %v217
    %v301 = vpop.f32.mrf.mxu0
    %v302 = vadd.f32 %v120, %v301
    %v303 = vpop.f32.mrf.mxu0
    %v304 = vadd.f32 %v120, %v303
    %305 = vdwg.mxu0
    %306 = vmatpush.bf16.msra.mxu0 0
    %307 = vmatpush.bf16.msra.mxu0 0
    %308 = vmatpush.bf16.msra.mxu0 0
    %309 = vmatpush.bf16.msra.mxu0 0
    %310 = vmatpush.bf16.msra.mxu0 0
    %311 = vmatpush.bf16.msra.mxu0 %v193
    %312 = vmatpush.bf16.msra.mxu0 %v189
    %313 = vmatpush.bf16.msra.mxu0 %v185
    %314 = vmatmul.bf16.gmra.mxu0 %v208
    %v315 = vpop.f32.mrf.mxu0
    %v316 = vadd.f32 %v121, %v315
    %v317 = vpop.f32.mrf.mxu0
    %v318 = vadd.f32 %v121, %v317
    %319 = vmatmul.bf16.gmra.mxu0 %v211
    %v320 = vpop.f32.mrf.mxu0
    %v321 = vadd.f32 %v121, %v320
    %v322 = vpop.f32.mrf.mxu0
    %v323 = vadd.f32 %v121, %v322
    %324 = vmatmul.bf16.gmra.mxu0 %v214
    %v325 = vpop.f32.mrf.mxu0
    %v326 = vadd.f32 %v121, %v325
    %v327 = vpop.f32.mrf.mxu0
    %v328 = vadd.f32 %v121, %v327
    %329 = vmatmul.bf16.gmra.mxu0 %v217
    %v330 = vpop.f32.mrf.mxu0
    %v331 = vadd.f32 %v121, %v330
    %v332 = vpop.f32.mrf.mxu0
    %v333 = vadd.f32 %v121, %v332
    %334 = vdwg.mxu0
    %335 = vst [vmem:[#allocation2] sm:$0xff] %v229
    %336 = vst [vmem:[#allocation2 + $0x8] sm:$0xff] %v258
    %337 = vst [vmem:[#allocation2 + $0x10] sm:$0xff] %v287
    %338 = vst [vmem:[#allocation2 + $0x18] sm:$0xff] %v316
    %339 = vst [vmem:[#allocation2 + $0x20] sm:$0xff] %v231
    %340 = vst [vmem:[#allocation2 + $0x28] sm:$0xff] %v260
    %341 = vst [vmem:[#allocation2 + $0x30] sm:$0xff] %v289
    %342 = vst [vmem:[#allocation2 + $0x38] sm:$0xff] %v318
    %343 = vst [vmem:[#allocation2 + $0x40] sm:$0xff] %v234
    %344 = vst [vmem:[#allocation2 + $0x48] sm:$0xff] %v263
    %345 = vst [vmem:[#allocation2 + $0x50] sm:$0xff] %v292
    %346 = vst [vmem:[#allocation2 + $0x58] sm:$0xff] %v321
    %347 = vst [vmem:[#allocation2 + $0x60] sm:$0xff] %v236
    %348 = vst [vmem:[#allocation2 + $0x68] sm:$0xff] %v265
    %349 = vst [vmem:[#allocation2 + $0x70] sm:$0xff] %v294
    %350 = vst [vmem:[#allocation2 + $0x78] sm:$0xff] %v323
    %351 = vst [vmem:[#allocation2 + $0x80] sm:$0xff] %v239
    %352 = vst [vmem:[#allocation2 + $0x88] sm:$0xff] %v268
    %353 = vst [vmem:[#allocation2 + $0x90] sm:$0xff] %v297
    %354 = vst [vmem:[#allocation2 + $0x98] sm:$0xff] %v326
    %355 = vst [vmem:[#allocation2 + $0xa0] sm:$0xff] %v241
    %356 = vst [vmem:[#allocation2 + $0xa8] sm:$0xff] %v270
    %357 = vst [vmem:[#allocation2 + $0xb0] sm:$0xff] %v299
    %358 = vst [vmem:[#allocation2 + $0xb8] sm:$0xff] %v328
    %359 = vst [vmem:[#allocation2 + $0xc0] sm:$0xff] %v244
    %360 = vst [vmem:[#allocation2 + $0xc8] sm:$0xff] %v273
    %361 = vst [vmem:[#allocation2 + $0xd0] sm:$0xff] %v302
    %362 = vst [vmem:[#allocation2 + $0xd8] sm:$0xff] %v331
    %363 = vst [vmem:[#allocation2 + $0xe0] sm:$0xff] %v246
    %364 = vst [vmem:[#allocation2 + $0xe8] sm:$0xff] %v275
    %365 = vst [vmem:[#allocation2 + $0xf0] sm:$0xff] %v304
    %366 = vst [vmem:[#allocation2 + $0xf8] sm:$0xff] %v333
    %v367 = vld [vmem:[#allocation7] sm:$0xff]
    %v368 = vld [vmem:[#allocation7 + $0x8] sm:$0xff]
    %v369 = vld [vmem:[#allocation7 + $0x10] sm:$0xff]
    %v370 = vld [vmem:[#allocation7 + $0x18] sm:$0xff]
    %v371 = vld [vmem:[#allocation7 + $0x20] sm:$0xff]
    %v372 = vld [vmem:[#allocation7 + $0x28] sm:$0xff]
    %v373 = vld [vmem:[#allocation7 + $0x30] sm:$0xff]
    %v374 = vld [vmem:[#allocation7 + $0x38] sm:$0xff]
    %v375 = vld [vmem:[#allocation7 + $0x40] sm:$0xff]
    %v376 = vld [vmem:[#allocation7 + $0x48] sm:$0xff]
    %v377 = vld [vmem:[#allocation7 + $0x50] sm:$0xff]
    %v378 = vld [vmem:[#allocation7 + $0x58] sm:$0xff]
    %v379 = vld [vmem:[%s6] sm:$0xf]
    %v381 = vperm.slane %v379, 0
    %v382 = vperm.slane %v379, 1
    %v383 = vperm.slane %v379, 2
    %v384 = vperm.slane %v379, 3
    %v401 = vunpack.c.l.b16 %v367
    %v402 = vunpack.c.h.b16 %v367
    %v403 = vunpack.c.l.b16 %v368
    %v404 = vunpack.c.h.b16 %v368
    %v405 = vunpack.c.l.b16 %v369
    %v406 = vunpack.c.h.b16 %v369
    %v407 = vunpack.c.l.b16 %v370
    %v408 = vunpack.c.h.b16 %v370
    %v409 = vunpack.c.l.b16 %v371
    %v410 = vunpack.c.h.b16 %v371
    %v411 = vunpack.c.l.b16 %v372
    %v412 = vunpack.c.h.b16 %v372
    %v413 = vunpack.c.l.b16 %v373
    %v414 = vunpack.c.h.b16 %v373
    %v415 = vunpack.c.l.b16 %v374
    %v416 = vunpack.c.h.b16 %v374
    %v417 = vunpack.c.l.b16 %v375
    %v418 = vunpack.c.h.b16 %v375
    %v419 = vunpack.c.l.b16 %v376
    %v420 = vunpack.c.h.b16 %v376
    %v421 = vunpack.c.l.b16 %v377
    %v422 = vunpack.c.h.b16 %v377
    %v423 = vunpack.c.l.b16 %v378
    %v424 = vunpack.c.h.b16 %v378
    %v425 = vpack.c.b16 %v405, %v401
    %v426 = vpack.c.b16 %v406, %v402
    %v427 = vpack.c.b16 %v407, %v403
    %v428 = vpack.c.b16 %v408, %v404
    %v429 = vpack.c.b16 %v413, %v409
    %v430 = vpack.c.b16 %v414, %v410
    %v431 = vpack.c.b16 %v415, %v411
    %v432 = vpack.c.b16 %v416, %v412
    %v433 = vpack.c.b16 %v421, %v417
    %v434 = vpack.c.b16 %v422, %v418
    %v435 = vpack.c.b16 %v423, %v419
    %v436 = vpack.c.b16 %v424, %v420
    %449 = vmatpush.bf16.msra.mxu0 0
    %450 = vmatpush.bf16.msra.mxu0 0
    %451 = vmatpush.bf16.msra.mxu0 0
    %452 = vmatpush.bf16.msra.mxu0 0
    %453 = vmatpush.bf16.msra.mxu0 0
    %454 = vmatpush.bf16.msra.mxu0 %v433
    %455 = vmatpush.bf16.msra.mxu0 %v429
    %456 = vmatpush.bf16.msra.mxu0 %v425
    %457 = vmatmul.bf16.gmra.mxu0 %v208
    %v458 = vpop.f32.mrf.mxu0
    %v459 = vadd.f32 %v381, %v458
    %v460 = vpop.f32.mrf.mxu0
    %v461 = vadd.f32 %v381, %v460
    %462 = vmatmul.bf16.gmra.mxu0 %v211
    %v463 = vpop.f32.mrf.mxu0
    %v464 = vadd.f32 %v381, %v463
    %v465 = vpop.f32.mrf.mxu0
    %v466 = vadd.f32 %v381, %v465
    %467 = vmatmul.bf16.gmra.mxu0 %v214
    %v468 = vpop.f32.mrf.mxu0
    %v469 = vadd.f32 %v381, %v468
    %v470 = vpop.f32.mrf.mxu0
    %v471 = vadd.f32 %v381, %v470
    %472 = vmatmul.bf16.gmra.mxu0 %v217
    %v473 = vpop.f32.mrf.mxu0
    %v474 = vadd.f32 %v381, %v473
    %v475 = vpop.f32.mrf.mxu0
    %v476 = vadd.f32 %v381, %v475
    %477 = vdwg.mxu0
    %478 = vmatpush.bf16.msra.mxu0 0
    %479 = vmatpush.bf16.msra.mxu0 0
    %480 = vmatpush.bf16.msra.mxu0 0
    %481 = vmatpush.bf16.msra.mxu0 0
    %482 = vmatpush.bf16.msra.mxu0 0
    %483 = vmatpush.bf16.msra.mxu0 %v434
    %484 = vmatpush.bf16.msra.mxu0 %v430
    %485 = vmatpush.bf16.msra.mxu0 %v426
    %486 = vmatmul.bf16.gmra.mxu0 %v208
    %v487 = vpop.f32.mrf.mxu0
    %v488 = vadd.f32 %v382, %v487
    %v489 = vpop.f32.mrf.mxu0
    %v490 = vadd.f32 %v382, %v489
    %491 = vmatmul.bf16.gmra.mxu0 %v211
    %v492 = vpop.f32.mrf.mxu0
    %v493 = vadd.f32 %v382, %v492
    %v494 = vpop.f32.mrf.mxu0
    %v495 = vadd.f32 %v382, %v494
    %496 = vmatmul.bf16.gmra.mxu0 %v214
    %v497 = vpop.f32.mrf.mxu0
    %v498 = vadd.f32 %v382, %v497
    %v499 = vpop.f32.mrf.mxu0
    %v500 = vadd.f32 %v382, %v499
    %501 = vmatmul.bf16.gmra.mxu0 %v217
    %v502 = vpop.f32.mrf.mxu0
    %v503 = vadd.f32 %v382, %v502
    %v504 = vpop.f32.mrf.mxu0
    %v505 = vadd.f32 %v382, %v504
    %506 = vdwg.mxu0
    %507 = vmatpush.bf16.msra.mxu0 0
    %508 = vmatpush.bf16.msra.mxu0 0
    %509 = vmatpush.bf16.msra.mxu0 0
    %510 = vmatpush.bf16.msra.mxu0 0
    %511 = vmatpush.bf16.msra.mxu0 0
    %512 = vmatpush.bf16.msra.mxu0 %v435
    %513 = vmatpush.bf16.msra.mxu0 %v431
    %514 = vmatpush.bf16.msra.mxu0 %v427
    %515 = vmatmul.bf16.gmra.mxu0 %v208
    %v516 = vpop.f32.mrf.mxu0
    %v517 = vadd.f32 %v383, %v516
    %v518 = vpop.f32.mrf.mxu0
    %v519 = vadd.f32 %v383, %v518
    %520 = vmatmul.bf16.gmra.mxu0 %v211
    %v521 = vpop.f32.mrf.mxu0
    %v522 = vadd.f32 %v383, %v521
    %v523 = vpop.f32.mrf.mxu0
    %v524 = vadd.f32 %v383, %v523
    %525 = vmatmul.bf16.gmra.mxu0 %v214
    %v526 = vpop.f32.mrf.mxu0
    %v527 = vadd.f32 %v383, %v526
    %v528 = vpop.f32.mrf.mxu0
    %v529 = vadd.f32 %v383, %v528
    %530 = vmatmul.bf16.gmra.mxu0 %v217
    %v531 = vpop.f32.mrf.mxu0
    %v532 = vadd.f32 %v383, %v531
    %v533 = vpop.f32.mrf.mxu0
    %v534 = vadd.f32 %v383, %v533
    %535 = vdwg.mxu0
    %536 = vmatpush.bf16.msra.mxu0 0
    %537 = vmatpush.bf16.msra.mxu0 0
    %538 = vmatpush.bf16.msra.mxu0 0
    %539 = vmatpush.bf16.msra.mxu0 0
    %540 = vmatpush.bf16.msra.mxu0 0
    %541 = vmatpush.bf16.msra.mxu0 %v436
    %542 = vmatpush.bf16.msra.mxu0 %v432
    %543 = vmatpush.bf16.msra.mxu0 %v428
    %544 = vmatmul.bf16.gmra.mxu0 %v208
    %v545 = vpop.f32.mrf.mxu0
    %v546 = vadd.f32 %v384, %v545
    %v547 = vpop.f32.mrf.mxu0
    %v548 = vadd.f32 %v384, %v547
    %549 = vmatmul.bf16.gmra.mxu0 %v211
    %v550 = vpop.f32.mrf.mxu0
    %v551 = vadd.f32 %v384, %v550
    %v552 = vpop.f32.mrf.mxu0
    %v553 = vadd.f32 %v384, %v552
    %554 = vmatmul.bf16.gmra.mxu0 %v214
    %v555 = vpop.f32.mrf.mxu0
    %v556 = vadd.f32 %v384, %v555
    %v557 = vpop.f32.mrf.mxu0
    %v558 = vadd.f32 %v384, %v557
    %559 = vmatmul.bf16.gmra.mxu0 %v217
    %v560 = vpop.f32.mrf.mxu0
    %v561 = vadd.f32 %v384, %v560
    %v562 = vpop.f32.mrf.mxu0
    %v563 = vadd.f32 %v384, %v562
    %564 = vdwg.mxu0
    %565 = vst [vmem:[#allocation3] sm:$0xff] %v459
    %566 = vst [vmem:[#allocation3 + $0x8] sm:$0xff] %v488
    %567 = vst [vmem:[#allocation3 + $0x10] sm:$0xff] %v517
    %568 = vst [vmem:[#allocation3 + $0x18] sm:$0xff] %v546
    %569 = vst [vmem:[#allocation3 + $0x20] sm:$0xff] %v461
    %570 = vst [vmem:[#allocation3 + $0x28] sm:$0xff] %v490
    %571 = vst [vmem:[#allocation3 + $0x30] sm:$0xff] %v519
    %572 = vst [vmem:[#allocation3 + $0x38] sm:$0xff] %v548
    %573 = vst [vmem:[#allocation3 + $0x40] sm:$0xff] %v464
    %574 = vst [vmem:[#allocation3 + $0x48] sm:$0xff] %v493
    %575 = vst [vmem:[#allocation3 + $0x50] sm:$0xff] %v522
    %576 = vst [vmem:[#allocation3 + $0x58] sm:$0xff] %v551
    %577 = vst [vmem:[#allocation3 + $0x60] sm:$0xff] %v466
    %578 = vst [vmem:[#allocation3 + $0x68] sm:$0xff] %v495
    %579 = vst [vmem:[#allocation3 + $0x70] sm:$0xff] %v524
    %580 = vst [vmem:[#allocation3 + $0x78] sm:$0xff] %v553
    %581 = vst [vmem:[#allocation3 + $0x80] sm:$0xff] %v469
    %582 = vst [vmem:[#allocation3 + $0x88] sm:$0xff] %v498
    %583 = vst [vmem:[#allocation3 + $0x90] sm:$0xff] %v527
    %584 = vst [vmem:[#allocation3 + $0x98] sm:$0xff] %v556
    %585 = vst [vmem:[#allocation3 + $0xa0] sm:$0xff] %v471
    %586 = vst [vmem:[#allocation3 + $0xa8] sm:$0xff] %v500
    %587 = vst [vmem:[#allocation3 + $0xb0] sm:$0xff] %v529
    %588 = vst [vmem:[#allocation3 + $0xb8] sm:$0xff] %v558
    %589 = vst [vmem:[#allocation3 + $0xc0] sm:$0xff] %v474
    %590 = vst [vmem:[#allocation3 + $0xc8] sm:$0xff] %v503
    %591 = vst [vmem:[#allocation3 + $0xd0] sm:$0xff] %v532
    %592 = vst [vmem:[#allocation3 + $0xd8] sm:$0xff] %v561
    %593 = vst [vmem:[#allocation3 + $0xe0] sm:$0xff] %v476
    %594 = vst [vmem:[#allocation3 + $0xe8] sm:$0xff] %v505
    %595 = vst [vmem:[#allocation3 + $0xf0] sm:$0xff] %v534
    %596 = vst [vmem:[#allocation3 + $0xf8] sm:$0xff] %v563
    %v597 = vld [vmem:[#allocation9] sm:$0xff]
    %v598 = vld [vmem:[#allocation9 + $0x8] sm:$0xff]
    %v599 = vld [vmem:[#allocation9 + $0x10] sm:$0xff]
    %v600 = vld [vmem:[#allocation9 + $0x18] sm:$0xff]
    %v601 = vld [vmem:[#allocation9 + $0x20] sm:$0xff]
    %v602 = vld [vmem:[#allocation9 + $0x28] sm:$0xff]
    %v603 = vld [vmem:[#allocation9 + $0x30] sm:$0xff]
    %v604 = vld [vmem:[#allocation9 + $0x38] sm:$0xff]
    %v605 = vld [vmem:[#allocation9 + $0x40] sm:$0xff]
    %v606 = vld [vmem:[#allocation9 + $0x48] sm:$0xff]
    %v607 = vld [vmem:[#allocation9 + $0x50] sm:$0xff]
    %v608 = vld [vmem:[#allocation9 + $0x58] sm:$0xff]
    %v609 = vld [vmem:[#allocation9 + $0x60] sm:$0xff]
    %v610 = vld [vmem:[#allocation9 + $0x68] sm:$0xff]
    %v611 = vld [vmem:[#allocation9 + $0x70] sm:$0xff]
    %v612 = vld [vmem:[#allocation9 + $0x78] sm:$0xff]
    %v613 = vld [vmem:[#allocation9 + $0x80] sm:$0xff]
    %v614 = vld [vmem:[#allocation9 + $0x88] sm:$0xff]
    %v615 = vld [vmem:[#allocation9 + $0x90] sm:$0xff]
    %v616 = vld [vmem:[#allocation9 + $0x98] sm:$0xff]
    %v617 = vld [vmem:[#allocation9 + $0xa0] sm:$0xff]
    %v618 = vld [vmem:[#allocation9 + $0xa8] sm:$0xff]
    %v619 = vld [vmem:[#allocation9 + $0xb0] sm:$0xff]
    %v620 = vld [vmem:[#allocation9 + $0xb8] sm:$0xff]
    %v621 = vld [vmem:[#allocation9 + $0xc0] sm:$0xff]
    %v622 = vld [vmem:[#allocation9 + $0xc8] sm:$0xff]
    %v623 = vld [vmem:[#allocation9 + $0xd0] sm:$0xff]
    %v624 = vld [vmem:[#allocation9 + $0xd8] sm:$0xff]
    %v625 = vld [vmem:[#allocation9 + $0xe0] sm:$0xff]
    %v626 = vld [vmem:[#allocation9 + $0xe8] sm:$0xff]
    %v627 = vld [vmem:[#allocation9 + $0xf0] sm:$0xff]
    %v628 = vld [vmem:[#allocation9 + $0xf8] sm:$0xff]
    %v661 = vunpack.c.l.b16 %v597
    %v662 = vunpack.c.h.b16 %v597
    %v663 = vunpack.c.l.b16 %v598
    %v664 = vunpack.c.h.b16 %v598
    %v665 = vunpack.c.l.b16 %v599
    %v666 = vunpack.c.h.b16 %v599
    %v667 = vunpack.c.l.b16 %v600
    %v668 = vunpack.c.h.b16 %v600
    %v669 = vunpack.c.l.b16 %v601
    %v670 = vunpack.c.h.b16 %v601
    %v671 = vunpack.c.l.b16 %v602
    %v672 = vunpack.c.h.b16 %v602
    %v673 = vunpack.c.l.b16 %v603
    %v674 = vunpack.c.h.b16 %v603
    %v675 = vunpack.c.l.b16 %v604
    %v676 = vunpack.c.h.b16 %v604
    %v677 = vunpack.c.l.b16 %v605
    %v678 = vunpack.c.h.b16 %v605
    %v679 = vunpack.c.l.b16 %v606
    %v680 = vunpack.c.h.b16 %v606
    %v681 = vunpack.c.l.b16 %v607
    %v682 = vunpack.c.h.b16 %v607
    %v683 = vunpack.c.l.b16 %v608
    %v684 = vunpack.c.h.b16 %v608
    %v685 = vunpack.c.l.b16 %v609
    %v686 = vunpack.c.h.b16 %v609
    %v687 = vunpack.c.l.b16 %v610
    %v688 = vunpack.c.h.b16 %v610
    %v689 = vunpack.c.l.b16 %v611
    %v690 = vunpack.c.h.b16 %v611
    %v691 = vunpack.c.l.b16 %v612
    %v692 = vunpack.c.h.b16 %v612
    %v693 = vunpack.c.l.b16 %v613
    %v694 = vunpack.c.h.b16 %v613
    %v695 = vunpack.c.l.b16 %v614
    %v696 = vunpack.c.h.b16 %v614
    %v697 = vunpack.c.l.b16 %v615
    %v698 = vunpack.c.h.b16 %v615
    %v699 = vunpack.c.l.b16 %v616
    %v700 = vunpack.c.h.b16 %v616
    %v701 = vunpack.c.l.b16 %v617
    %v702 = vunpack.c.h.b16 %v617
    %v703 = vunpack.c.l.b16 %v618
    %v704 = vunpack.c.h.b16 %v618
    %v705 = vunpack.c.l.b16 %v619
    %v706 = vunpack.c.h.b16 %v619
    %v707 = vunpack.c.l.b16 %v620
    %v708 = vunpack.c.h.b16 %v620
    %v709 = vunpack.c.l.b16 %v621
    %v710 = vunpack.c.h.b16 %v621
    %v711 = vunpack.c.l.b16 %v622
    %v712 = vunpack.c.h.b16 %v622
    %v713 = vunpack.c.l.b16 %v623
    %v714 = vunpack.c.h.b16 %v623
    %v715 = vunpack.c.l.b16 %v624
    %v716 = vunpack.c.h.b16 %v624
    %v717 = vunpack.c.l.b16 %v625
    %v718 = vunpack.c.h.b16 %v625
    %v719 = vunpack.c.l.b16 %v626
    %v720 = vunpack.c.h.b16 %v626
    %v721 = vunpack.c.l.b16 %v627
    %v722 = vunpack.c.h.b16 %v627
    %v723 = vunpack.c.l.b16 %v628
    %v724 = vunpack.c.h.b16 %v628
    %v725 = vpack.c.b16 %v665, %v661
    %v726 = vpack.c.b16 %v666, %v662
    %v727 = vpack.c.b16 %v667, %v663
    %v728 = vpack.c.b16 %v668, %v664
    %v729 = vpack.c.b16 %v673, %v669
    %v730 = vpack.c.b16 %v674, %v670
    %v731 = vpack.c.b16 %v675, %v671
    %v732 = vpack.c.b16 %v676, %v672
    %v733 = vpack.c.b16 %v681, %v677
    %v734 = vpack.c.b16 %v682, %v678
    %v735 = vpack.c.b16 %v683, %v679
    %v736 = vpack.c.b16 %v684, %v680
    %v737 = vpack.c.b16 %v689, %v685
    %v738 = vpack.c.b16 %v690, %v686
    %v739 = vpack.c.b16 %v691, %v687
    %v740 = vpack.c.b16 %v692, %v688
    %v741 = vpack.c.b16 %v697, %v693
    %v742 = vpack.c.b16 %v698, %v694
    %v743 = vpack.c.b16 %v699, %v695
    %v744 = vpack.c.b16 %v700, %v696
    %v745 = vpack.c.b16 %v705, %v701
    %v746 = vpack.c.b16 %v706, %v702
    %v747 = vpack.c.b16 %v707, %v703
    %v748 = vpack.c.b16 %v708, %v704
    %v749 = vpack.c.b16 %v713, %v709
    %v750 = vpack.c.b16 %v714, %v710
    %v751 = vpack.c.b16 %v715, %v711
    %v752 = vpack.c.b16 %v716, %v712
    %v753 = vpack.c.b16 %v721, %v717
    %v754 = vpack.c.b16 %v722, %v718
    %v755 = vpack.c.b16 %v723, %v719
    %v756 = vpack.c.b16 %v724, %v720
    %789 = vmatpush.bf16.msra.mxu0 %v753
    %790 = vmatpush.bf16.msra.mxu0 %v749
    %791 = vmatpush.bf16.msra.mxu0 %v745
    %792 = vmatpush.bf16.msra.mxu0 %v741
    %793 = vmatpush.bf16.msra.mxu0 %v737
    %794 = vmatpush.bf16.msra.mxu0 %v733
    %795 = vmatpush.bf16.msra.mxu0 %v729
    %796 = vmatpush.bf16.msra.mxu0 %v725
    %797 = vmatmul.bf16.gmra.mxu0 0
    %v798 = vpop.f32.mrf.mxu0
    %v799 = vadd.f32 0.0, %v798
    %v800 = vpop.f32.mrf.mxu0
    %801 = vdwg.mxu0
    %802 = vmatpush.bf16.msra.mxu0 %v754
    %803 = vmatpush.bf16.msra.mxu0 %v750
    %804 = vmatpush.bf16.msra.mxu0 %v746
    %805 = vmatpush.bf16.msra.mxu0 %v742
    %806 = vmatpush.bf16.msra.mxu0 %v738
    %807 = vmatpush.bf16.msra.mxu0 %v734
    %808 = vmatpush.bf16.msra.mxu0 %v730
    %809 = vmatpush.bf16.msra.mxu0 %v726
    %810 = vmatmul.bf16.gmra.mxu0 0
    %v811 = vpop.f32.mrf.mxu0
    %v812 = vadd.f32 0.0, %v811
    %v813 = vpop.f32.mrf.mxu0
    %814 = vdwg.mxu0
    %815 = vmatpush.bf16.msra.mxu0 %v755
    %816 = vmatpush.bf16.msra.mxu0 %v751
    %817 = vmatpush.bf16.msra.mxu0 %v747
    %818 = vmatpush.bf16.msra.mxu0 %v743
    %819 = vmatpush.bf16.msra.mxu0 %v739
    %820 = vmatpush.bf16.msra.mxu0 %v735
    %821 = vmatpush.bf16.msra.mxu0 %v731
    %822 = vmatpush.bf16.msra.mxu0 %v727
    %823 = vmatmul.bf16.gmra.mxu0 0
    %v824 = vpop.f32.mrf.mxu0
    %v825 = vadd.f32 0.0, %v824
    %v826 = vpop.f32.mrf.mxu0
    %827 = vdwg.mxu0
    %828 = vmatpush.bf16.msra.mxu0 %v756
    %829 = vmatpush.bf16.msra.mxu0 %v752
    %830 = vmatpush.bf16.msra.mxu0 %v748
    %831 = vmatpush.bf16.msra.mxu0 %v744
    %832 = vmatpush.bf16.msra.mxu0 %v740
    %833 = vmatpush.bf16.msra.mxu0 %v736
    %834 = vmatpush.bf16.msra.mxu0 %v732
    %835 = vmatpush.bf16.msra.mxu0 %v728
    %836 = vmatmul.bf16.gmra.mxu0 0
    %v837 = vpop.f32.mrf.mxu0
    %v838 = vadd.f32 0.0, %v837
    %v839 = vpop.f32.mrf.mxu0
    %840 = vdwg.mxu0
    %v841 = vld [vmem:[#allocation10] sm:$0xff]
    %v842 = vld [vmem:[#allocation10 + $0x8] sm:$0xff]
    %v843 = vld [vmem:[#allocation10 + $0x10] sm:$0xff]
    %v844 = vld [vmem:[#allocation10 + $0x18] sm:$0xff]
    %v845 = vld [vmem:[#allocation10 + $0x20] sm:$0xff]
    %v846 = vld [vmem:[#allocation10 + $0x28] sm:$0xff]
    %v847 = vld [vmem:[#allocation10 + $0x30] sm:$0xff]
    %v848 = vld [vmem:[#allocation10 + $0x38] sm:$0xff]
    %v849 = vld [vmem:[#allocation10 + $0x40] sm:$0xff]
    %v850 = vld [vmem:[#allocation10 + $0x48] sm:$0xff]
    %v851 = vld [vmem:[#allocation10 + $0x50] sm:$0xff]
    %v852 = vld [vmem:[#allocation10 + $0x58] sm:$0xff]
    %v853 = vld [vmem:[#allocation10 + $0x60] sm:$0xff]
    %v854 = vld [vmem:[#allocation10 + $0x68] sm:$0xff]
    %v855 = vld [vmem:[#allocation10 + $0x70] sm:$0xff]
    %v856 = vld [vmem:[#allocation10 + $0x78] sm:$0xff]
    %v857 = vld [vmem:[#allocation10 + $0x80] sm:$0xff]
    %v858 = vld [vmem:[#allocation10 + $0x88] sm:$0xff]
    %v859 = vld [vmem:[#allocation10 + $0x90] sm:$0xff]
    %v860 = vld [vmem:[#allocation10 + $0x98] sm:$0xff]
    %v861 = vld [vmem:[#allocation10 + $0xa0] sm:$0xff]
    %v862 = vld [vmem:[#allocation10 + $0xa8] sm:$0xff]
    %v863 = vld [vmem:[#allocation10 + $0xb0] sm:$0xff]
    %v864 = vld [vmem:[#allocation10 + $0xb8] sm:$0xff]
    %v865 = vld [vmem:[#allocation10 + $0xc0] sm:$0xff]
    %v866 = vld [vmem:[#allocation10 + $0xc8] sm:$0xff]
    %v867 = vld [vmem:[#allocation10 + $0xd0] sm:$0xff]
    %v868 = vld [vmem:[#allocation10 + $0xd8] sm:$0xff]
    %v869 = vld [vmem:[#allocation10 + $0xe0] sm:$0xff]
    %v870 = vld [vmem:[#allocation10 + $0xe8] sm:$0xff]
    %v871 = vld [vmem:[#allocation10 + $0xf0] sm:$0xff]
    %v872 = vld [vmem:[#allocation10 + $0xf8] sm:$0xff]
    %v905 = vunpack.c.l.b16 %v841
    %v906 = vunpack.c.h.b16 %v841
    %v907 = vunpack.c.l.b16 %v842
    %v908 = vunpack.c.h.b16 %v842
    %v909 = vunpack.c.l.b16 %v843
    %v910 = vunpack.c.h.b16 %v843
    %v911 = vunpack.c.l.b16 %v844
    %v912 = vunpack.c.h.b16 %v844
    %v913 = vunpack.c.l.b16 %v845
    %v914 = vunpack.c.h.b16 %v845
    %v915 = vunpack.c.l.b16 %v846
    %v916 = vunpack.c.h.b16 %v846
    %v917 = vunpack.c.l.b16 %v847
    %v918 = vunpack.c.h.b16 %v847
    %v919 = vunpack.c.l.b16 %v848
    %v920 = vunpack.c.h.b16 %v848
    %v921 = vunpack.c.l.b16 %v849
    %v922 = vunpack.c.h.b16 %v849
    %v923 = vunpack.c.l.b16 %v850
    %v924 = vunpack.c.h.b16 %v850
    %v925 = vunpack.c.l.b16 %v851
    %v926 = vunpack.c.h.b16 %v851
    %v927 = vunpack.c.l.b16 %v852
    %v928 = vunpack.c.h.b16 %v852
    %v929 = vunpack.c.l.b16 %v853
    %v930 = vunpack.c.h.b16 %v853
    %v931 = vunpack.c.l.b16 %v854
    %v932 = vunpack.c.h.b16 %v854
    %v933 = vunpack.c.l.b16 %v855
    %v934 = vunpack.c.h.b16 %v855
    %v935 = vunpack.c.l.b16 %v856
    %v936 = vunpack.c.h.b16 %v856
    %v937 = vunpack.c.l.b16 %v857
    %v938 = vunpack.c.h.b16 %v857
    %v939 = vunpack.c.l.b16 %v858
    %v940 = vunpack.c.h.b16 %v858
    %v941 = vunpack.c.l.b16 %v859
    %v942 = vunpack.c.h.b16 %v859
    %v943 = vunpack.c.l.b16 %v860
    %v944 = vunpack.c.h.b16 %v860
    %v945 = vunpack.c.l.b16 %v861
    %v946 = vunpack.c.h.b16 %v861
    %v947 = vunpack.c.l.b16 %v862
    %v948 = vunpack.c.h.b16 %v862
    %v949 = vunpack.c.l.b16 %v863
    %v950 = vunpack.c.h.b16 %v863
    %v951 = vunpack.c.l.b16 %v864
    %v952 = vunpack.c.h.b16 %v864
    %v953 = vunpack.c.l.b16 %v865
    %v954 = vunpack.c.h.b16 %v865
    %v955 = vunpack.c.l.b16 %v866
    %v956 = vunpack.c.h.b16 %v866
    %v957 = vunpack.c.l.b16 %v867
    %v958 = vunpack.c.h.b16 %v867
    %v959 = vunpack.c.l.b16 %v868
    %v960 = vunpack.c.h.b16 %v868
    %v961 = vunpack.c.l.b16 %v869
    %v962 = vunpack.c.h.b16 %v869
    %v963 = vunpack.c.l.b16 %v870
    %v964 = vunpack.c.h.b16 %v870
    %v965 = vunpack.c.l.b16 %v871
    %v966 = vunpack.c.h.b16 %v871
    %v967 = vunpack.c.l.b16 %v872
    %v968 = vunpack.c.h.b16 %v872
    %v969 = vpack.c.b16 %v909, %v905
    %v970 = vpack.c.b16 %v910, %v906
    %v971 = vpack.c.b16 %v911, %v907
    %v972 = vpack.c.b16 %v912, %v908
    %v973 = vpack.c.b16 %v917, %v913
    %v974 = vpack.c.b16 %v918, %v914
    %v975 = vpack.c.b16 %v919, %v915
    %v976 = vpack.c.b16 %v920, %v916
    %v977 = vpack.c.b16 %v925, %v921
    %v978 = vpack.c.b16 %v926, %v922
    %v979 = vpack.c.b16 %v927, %v923
    %v980 = vpack.c.b16 %v928, %v924
    %v981 = vpack.c.b16 %v933, %v929
    %v982 = vpack.c.b16 %v934, %v930
    %v983 = vpack.c.b16 %v935, %v931
    %v984 = vpack.c.b16 %v936, %v932
    %v985 = vpack.c.b16 %v941, %v937
    %v986 = vpack.c.b16 %v942, %v938
    %v987 = vpack.c.b16 %v943, %v939
    %v988 = vpack.c.b16 %v944, %v940
    %v989 = vpack.c.b16 %v949, %v945
    %v990 = vpack.c.b16 %v950, %v946
    %v991 = vpack.c.b16 %v951, %v947
    %v992 = vpack.c.b16 %v952, %v948
    %v993 = vpack.c.b16 %v957, %v953
    %v994 = vpack.c.b16 %v958, %v954
    %v995 = vpack.c.b16 %v959, %v955
    %v996 = vpack.c.b16 %v960, %v956
    %v997 = vpack.c.b16 %v965, %v961
    %v998 = vpack.c.b16 %v966, %v962
    %v999 = vpack.c.b16 %v967, %v963
    %v1000 = vpack.c.b16 %v968, %v964
    %1033 = vmatpush.bf16.msra.mxu0 %v997
    %1034 = vmatpush.bf16.msra.mxu0 %v993
    %1035 = vmatpush.bf16.msra.mxu0 %v989
    %1036 = vmatpush.bf16.msra.mxu0 %v985
    %1037 = vmatpush.bf16.msra.mxu0 %v981
    %1038 = vmatpush.bf16.msra.mxu0 %v977
    %1039 = vmatpush.bf16.msra.mxu0 %v973
    %1040 = vmatpush.bf16.msra.mxu0 %v969
    %1041 = vmatmul.bf16.gmra.mxu0 0
    %v1042 = vpop.f32.mrf.mxu0
    %v1043 = vadd.f32 0.0, %v1042
    %v1044 = vpop.f32.mrf.mxu0
    %1045 = vdwg.mxu0
    %1046 = vmatpush.bf16.msra.mxu0 %v998
    %1047 = vmatpush.bf16.msra.mxu0 %v994
    %1048 = vmatpush.bf16.msra.mxu0 %v990
    %1049 = vmatpush.bf16.msra.mxu0 %v986
    %1050 = vmatpush.bf16.msra.mxu0 %v982
    %1051 = vmatpush.bf16.msra.mxu0 %v978
    %1052 = vmatpush.bf16.msra.mxu0 %v974
    %1053 = vmatpush.bf16.msra.mxu0 %v970
    %1054 = vmatmul.bf16.gmra.mxu0 0
    %v1055 = vpop.f32.mrf.mxu0
    %v1056 = vadd.f32 0.0, %v1055
    %v1057 = vpop.f32.mrf.mxu0
    %1058 = vdwg.mxu0
    %1059 = vmatpush.bf16.msra.mxu0 %v999
    %1060 = vmatpush.bf16.msra.mxu0 %v995
    %1061 = vmatpush.bf16.msra.mxu0 %v991
    %1062 = vmatpush.bf16.msra.mxu0 %v987
    %1063 = vmatpush.bf16.msra.mxu0 %v983
    %1064 = vmatpush.bf16.msra.mxu0 %v979
    %1065 = vmatpush.bf16.msra.mxu0 %v975
    %1066 = vmatpush.bf16.msra.mxu0 %v971
    %1067 = vmatmul.bf16.gmra.mxu0 0
    %v1068 = vpop.f32.mrf.mxu0
    %v1069 = vadd.f32 0.0, %v1068
    %v1070 = vpop.f32.mrf.mxu0
    %1071 = vdwg.mxu0
    %1072 = vmatpush.bf16.msra.mxu0 %v1000
    %1073 = vmatpush.bf16.msra.mxu0 %v996
    %1074 = vmatpush.bf16.msra.mxu0 %v992
    %1075 = vmatpush.bf16.msra.mxu0 %v988
    %1076 = vmatpush.bf16.msra.mxu0 %v984
    %1077 = vmatpush.bf16.msra.mxu0 %v980
    %1078 = vmatpush.bf16.msra.mxu0 %v976
    %1079 = vmatpush.bf16.msra.mxu0 %v972
    %1080 = vmatmul.bf16.gmra.mxu0 0
    %v1081 = vpop.f32.mrf.mxu0
    %v1082 = vadd.f32 0.0, %v1081
    %v1083 = vpop.f32.mrf.mxu0
    %1084 = vdwg.mxu0
    %v1085 = vld [vmem:[#allocation2] sm:$0xff]
    %v1086 = vld [vmem:[#allocation2 + $0x8] sm:$0xff]
    %v1087 = vld [vmem:[#allocation2 + $0x10] sm:$0xff]
    %v1088 = vld [vmem:[#allocation2 + $0x18] sm:$0xff]
    %v1089 = vadd.f32 %v1085, %v799
    %v1090 = vadd.f32 %v1086, %v812
    %v1091 = vadd.f32 %v1087, %v825
    %v1092 = vadd.f32 %v1088, %v838
    %v1093 = vxor.u32 %v1089, 2147483648
    %v1094 = vmul.f32 %v1093, 1.442695
    %v1095 = vpow.pop %v1094
    %v1096 = vadd.f32 %v1095, 1.0
    %v1097 = vrcp.pop %v1096
    %v1098 = vmul.f32 %v1096, %v1097
    %v1099 = vsub.f32 1.0, %v1098
    %v1100 = vmul.f32 %v1097, %v1099
    %v1101 = vadd.f32 %v1097, %v1100
    %vm1102 = vweird.f32 %v1096
    %vm1103 = vweird.f32 %v1097
    %vm1104 = vmor %vm1102, %vm1103
    %v1105 = vsel %vm1104, %v1097, %v1101
    %v1106 = vand.u32 2147483647, %v1096
    %vm1107 = vcmp.eq.f32.partialorder %v1106, 8.507059e+37
    %v1108 = vand.u32 %v1096, 2147483648
    %v1109 = vor.u32 1.1754944e-38, %v1108
    %v1110 = vsel %vm1107, %v1109, %v1105
    %v1111 = vmul.f32 1.0, %v1110
    %v1112 = vxor.u32 %v1090, 2147483648
    %v1113 = vmul.f32 %v1112, 1.442695
    %v1114 = vpow.pop %v1113
    %v1115 = vadd.f32 %v1114, 1.0
    %v1116 = vrcp.pop %v1115
    %v1117 = vmul.f32 %v1115, %v1116
    %v1118 = vsub.f32 1.0, %v1117
    %v1119 = vmul.f32 %v1116, %v1118
    %v1120 = vadd.f32 %v1116, %v1119
    %vm1121 = vweird.f32 %v1115
    %vm1122 = vweird.f32 %v1116
    %vm1123 = vmor %vm1121, %vm1122
    %v1124 = vsel %vm1123, %v1116, %v1120
    %v1125 = vand.u32 2147483647, %v1115
    %vm1126 = vcmp.eq.f32.partialorder %v1125, 8.507059e+37
    %v1127 = vand.u32 %v1115, 2147483648
    %v1128 = vor.u32 1.1754944e-38, %v1127
    %v1129 = vsel %vm1126, %v1128, %v1124
    %v1130 = vmul.f32 1.0, %v1129
    %v1131 = vtanh.pop %v1091
    %v1132 = vxor.u32 %v1092, 2147483648
    %v1133 = vmul.f32 %v1132, 1.442695
    %v1134 = vpow.pop %v1133
    %v1135 = vadd.f32 %v1134, 1.0
    %v1136 = vrcp.pop %v1135
    %v1137 = vmul.f32 %v1135, %v1136
    %v1138 = vsub.f32 1.0, %v1137
    %v1139 = vmul.f32 %v1136, %v1138
    %v1140 = vadd.f32 %v1136, %v1139
    %vm1141 = vweird.f32 %v1135
    %vm1142 = vweird.f32 %v1136
    %vm1143 = vmor %vm1141, %vm1142
    %v1144 = vsel %vm1143, %v1136, %v1140
    %v1145 = vand.u32 2147483647, %v1135
    %vm1146 = vcmp.eq.f32.partialorder %v1145, 8.507059e+37
    %v1147 = vand.u32 %v1135, 2147483648
    %v1148 = vor.u32 1.1754944e-38, %v1147
    %v1149 = vsel %vm1146, %v1148, %v1144
    %v1150 = vmul.f32 1.0, %v1149
    %v1151 = vmul.f32 %v1130, 0.0
    %v1152 = vmul.f32 %v1111, %v1131
    %v1153 = vadd.f32 %v1151, %v1152
    %v1154 = vtanh.pop %v1153
    %v1155 = vmul.f32 %v1150, %v1154
    %v1156 = vld [vmem:[#allocation3 + $0xe0] sm:$0xff]
    %v1157 = vld [vmem:[#allocation3 + $0xe8] sm:$0xff]
    %v1158 = vld [vmem:[#allocation3 + $0xf0] sm:$0xff]
    %v1159 = vld [vmem:[#allocation3 + $0xf8] sm:$0xff]
    %v1160 = vadd.f32 %v1156, %v1043
    %v1161 = vadd.f32 %v1157, %v1056
    %v1162 = vadd.f32 %v1158, %v1069
    %v1163 = vadd.f32 %v1159, %v1082
    %v1164 = vxor.u32 %v1160, 2147483648
    %v1165 = vmul.f32 %v1164, 1.442695
    %v1166 = vpow.pop %v1165
    %v1167 = vadd.f32 %v1166, 1.0
    %v1168 = vrcp.pop %v1167
    %v1169 = vmul.f32 %v1167, %v1168
    %v1170 = vsub.f32 1.0, %v1169
    %v1171 = vmul.f32 %v1168, %v1170
    %v1172 = vadd.f32 %v1168, %v1171
    %vm1173 = vweird.f32 %v1167
    %vm1174 = vweird.f32 %v1168
    %vm1175 = vmor %vm1173, %vm1174
    %v1176 = vsel %vm1175, %v1168, %v1172
    %v1177 = vand.u32 2147483647, %v1167
    %vm1178 = vcmp.eq.f32.partialorder %v1177, 8.507059e+37
    %v1179 = vand.u32 %v1167, 2147483648
    %v1180 = vor.u32 1.1754944e-38, %v1179
    %v1181 = vsel %vm1178, %v1180, %v1176
    %v1182 = vmul.f32 1.0, %v1181
    %v1183 = vxor.u32 %v1161, 2147483648
    %v1184 = vmul.f32 %v1183, 1.442695
    %v1185 = vpow.pop %v1184
    %v1186 = vadd.f32 %v1185, 1.0
    %v1187 = vrcp.pop %v1186
    %v1188 = vmul.f32 %v1186, %v1187
    %v1189 = vsub.f32 1.0, %v1188
    %v1190 = vmul.f32 %v1187, %v1189
    %v1191 = vadd.f32 %v1187, %v1190
    %vm1192 = vweird.f32 %v1186
    %vm1193 = vweird.f32 %v1187
    %vm1194 = vmor %vm1192, %vm1193
    %v1195 = vsel %vm1194, %v1187, %v1191
    %v1196 = vand.u32 2147483647, %v1186
    %vm1197 = vcmp.eq.f32.partialorder %v1196, 8.507059e+37
    %v1198 = vand.u32 %v1186, 2147483648
    %v1199 = vor.u32 1.1754944e-38, %v1198
    %v1200 = vsel %vm1197, %v1199, %v1195
    %v1201 = vmul.f32 1.0, %v1200
    %v1202 = vtanh.pop %v1162
    %v1203 = vxor.u32 %v1163, 2147483648
    %v1204 = vmul.f32 %v1203, 1.442695
    %v1205 = vpow.pop %v1204
    %v1206 = vadd.f32 %v1205, 1.0
    %v1207 = vrcp.pop %v1206
    %v1208 = vmul.f32 %v1206, %v1207
    %v1209 = vsub.f32 1.0, %v1208
    %v1210 = vmul.f32 %v1207, %v1209
    %v1211 = vadd.f32 %v1207, %v1210
    %vm1212 = vweird.f32 %v1206
    %vm1213 = vweird.f32 %v1207
    %vm1214 = vmor %vm1212, %vm1213
    %v1215 = vsel %vm1214, %v1207, %v1211
    %v1216 = vand.u32 2147483647, %v1206
    %vm1217 = vcmp.eq.f32.partialorder %v1216, 8.507059e+37
    %v1218 = vand.u32 %v1206, 2147483648
    %v1219 = vor.u32 1.1754944e-38, %v1218
    %v1220 = vsel %vm1217, %v1219, %v1215
    %v1221 = vmul.f32 1.0, %v1220
    %v1222 = vmul.f32 %v1201, 0.0
    %v1223 = vmul.f32 %v1182, %v1202
    %v1224 = vadd.f32 %v1222, %v1223
    %v1225 = vtanh.pop %v1224
    %v1226 = vmul.f32 %v1221, %v1225
    %v1227 = vpack.c.bf16 %v1155, %v1155
    %v1228 = vpack.c.bf16 %v1226, %v1226
    %1229 = vst [vmem:[#allocation4] sm:$0xf] %v1227
    %1230 = vst [vmem:[#allocation4 + $0x3c] sm:$0xf] %v1228
    %v1231 = vld [vmem:[#allocation9] sm:$0xff]
    %v1232 = vld [vmem:[#allocation9 + $0x8] sm:$0xff]
    %v1233 = vld [vmem:[#allocation9 + $0x10] sm:$0xff]
    %v1234 = vld [vmem:[#allocation9 + $0x18] sm:$0xff]
    %v1235 = vld [vmem:[#allocation9 + $0x20] sm:$0xff]
    %v1236 = vld [vmem:[#allocation9 + $0x28] sm:$0xff]
    %v1237 = vld [vmem:[#allocation9 + $0x30] sm:$0xff]
    %v1238 = vld [vmem:[#allocation9 + $0x38] sm:$0xff]
    %v1239 = vld [vmem:[#allocation9 + $0x40] sm:$0xff]
    %v1240 = vld [vmem:[#allocation9 + $0x48] sm:$0xff]
    %v1241 = vld [vmem:[#allocation9 + $0x50] sm:$0xff]
    %v1242 = vld [vmem:[#allocation9 + $0x58] sm:$0xff]
    %v1243 = vld [vmem:[#allocation9 + $0x60] sm:$0xff]
    %v1244 = vld [vmem:[#allocation9 + $0x68] sm:$0xff]
    %v1245 = vld [vmem:[#allocation9 + $0x70] sm:$0xff]
    %v1246 = vld [vmem:[#allocation9 + $0x78] sm:$0xff]
    %v1247 = vld [vmem:[#allocation9 + $0x80] sm:$0xff]
    %v1248 = vld [vmem:[#allocation9 + $0x88] sm:$0xff]
    %v1249 = vld [vmem:[#allocation9 + $0x90] sm:$0xff]
    %v1250 = vld [vmem:[#allocation9 + $0x98] sm:$0xff]
    %v1251 = vld [vmem:[#allocation9 + $0xa0] sm:$0xff]
    %v1252 = vld [vmem:[#allocation9 + $0xa8] sm:$0xff]
    %v1253 = vld [vmem:[#allocation9 + $0xb0] sm:$0xff]
    %v1254 = vld [vmem:[#allocation9 + $0xb8] sm:$0xff]
    %v1255 = vld [vmem:[#allocation9 + $0xc0] sm:$0xff]
    %v1256 = vld [vmem:[#allocation9 + $0xc8] sm:$0xff]
    %v1257 = vld [vmem:[#allocation9 + $0xd0] sm:$0xff]
    %v1258 = vld [vmem:[#allocation9 + $0xd8] sm:$0xff]
    %v1259 = vld [vmem:[#allocation9 + $0xe0] sm:$0xff]
    %v1260 = vld [vmem:[#allocation9 + $0xe8] sm:$0xff]
    %v1261 = vld [vmem:[#allocation9 + $0xf0] sm:$0xff]
    %v1262 = vld [vmem:[#allocation9 + $0xf8] sm:$0xff]
    %v1295 = vunpack.c.l.b16 %v1231
    %v1296 = vunpack.c.h.b16 %v1231
    %v1297 = vunpack.c.l.b16 %v1232
    %v1298 = vunpack.c.h.b16 %v1232
    %v1299 = vunpack.c.l.b16 %v1233
    %v1300 = vunpack.c.h.b16 %v1233
    %v1301 = vunpack.c.l.b16 %v1234
    %v1302 = vunpack.c.h.b16 %v1234
    %v1303 = vunpack.c.l.b16 %v1235
    %v1304 = vunpack.c.h.b16 %v1235
    %v1305 = vunpack.c.l.b16 %v1236
    %v1306 = vunpack.c.h.b16 %v1236
    %v1307 = vunpack.c.l.b16 %v1237
    %v1308 = vunpack.c.h.b16 %v1237
    %v1309 = vunpack.c.l.b16 %v1238
    %v1310 = vunpack.c.h.b16 %v1238
    %v1311 = vunpack.c.l.b16 %v1239
    %v1312 = vunpack.c.h.b16 %v1239
    %v1313 = vunpack.c.l.b16 %v1240
    %v1314 = vunpack.c.h.b16 %v1240
    %v1315 = vunpack.c.l.b16 %v1241
    %v1316 = vunpack.c.h.b16 %v1241
    %v1317 = vunpack.c.l.b16 %v1242
    %v1318 = vunpack.c.h.b16 %v1242
    %v1319 = vunpack.c.l.b16 %v1243
    %v1320 = vunpack.c.h.b16 %v1243
    %v1321 = vunpack.c.l.b16 %v1244
    %v1322 = vunpack.c.h.b16 %v1244
    %v1323 = vunpack.c.l.b16 %v1245
    %v1324 = vunpack.c.h.b16 %v1245
    %v1325 = vunpack.c.l.b16 %v1246
    %v1326 = vunpack.c.h.b16 %v1246
    %v1327 = vunpack.c.l.b16 %v1247
    %v1328 = vunpack.c.h.b16 %v1247
    %v1329 = vunpack.c.l.b16 %v1248
    %v1330 = vunpack.c.h.b16 %v1248
    %v1331 = vunpack.c.l.b16 %v1249
    %v1332 = vunpack.c.h.b16 %v1249
    %v1333 = vunpack.c.l.b16 %v1250
    %v1334 = vunpack.c.h.b16 %v1250
    %v1335 = vunpack.c.l.b16 %v1251
    %v1336 = vunpack.c.h.b16 %v1251
    %v1337 = vunpack.c.l.b16 %v1252
    %v1338 = vunpack.c.h.b16 %v1252
    %v1339 = vunpack.c.l.b16 %v1253
    %v1340 = vunpack.c.h.b16 %v1253
    %v1341 = vunpack.c.l.b16 %v1254
    %v1342 = vunpack.c.h.b16 %v1254
    %v1343 = vunpack.c.l.b16 %v1255
    %v1344 = vunpack.c.h.b16 %v1255
    %v1345 = vunpack.c.l.b16 %v1256
    %v1346 = vunpack.c.h.b16 %v1256
    %v1347 = vunpack.c.l.b16 %v1257
    %v1348 = vunpack.c.h.b16 %v1257
    %v1349 = vunpack.c.l.b16 %v1258
    %v1350 = vunpack.c.h.b16 %v1258
    %v1351 = vunpack.c.l.b16 %v1259
    %v1352 = vunpack.c.h.b16 %v1259
    %v1353 = vunpack.c.l.b16 %v1260
    %v1354 = vunpack.c.h.b16 %v1260
    %v1355 = vunpack.c.l.b16 %v1261
    %v1356 = vunpack.c.h.b16 %v1261
    %v1357 = vunpack.c.l.b16 %v1262
    %v1358 = vunpack.c.h.b16 %v1262
    %v1359 = vpack.c.b16 %v1299, %v1295
    %v1360 = vpack.c.b16 %v1300, %v1296
    %v1361 = vpack.c.b16 %v1301, %v1297
    %v1362 = vpack.c.b16 %v1302, %v1298
    %v1363 = vpack.c.b16 %v1307, %v1303
    %v1364 = vpack.c.b16 %v1308, %v1304
    %v1365 = vpack.c.b16 %v1309, %v1305
    %v1366 = vpack.c.b16 %v1310, %v1306
    %v1367 = vpack.c.b16 %v1315, %v1311
    %v1368 = vpack.c.b16 %v1316, %v1312
    %v1369 = vpack.c.b16 %v1317, %v1313
    %v1370 = vpack.c.b16 %v1318, %v1314
    %v1371 = vpack.c.b16 %v1323, %v1319
    %v1372 = vpack.c.b16 %v1324, %v1320
    %v1373 = vpack.c.b16 %v1325, %v1321
    %v1374 = vpack.c.b16 %v1326, %v1322
    %v1375 = vpack.c.b16 %v1331, %v1327
    %v1376 = vpack.c.b16 %v1332, %v1328
    %v1377 = vpack.c.b16 %v1333, %v1329
    %v1378 = vpack.c.b16 %v1334, %v1330
    %v1379 = vpack.c.b16 %v1339, %v1335
    %v1380 = vpack.c.b16 %v1340, %v1336
    %v1381 = vpack.c.b16 %v1341, %v1337
    %v1382 = vpack.c.b16 %v1342, %v1338
    %v1383 = vpack.c.b16 %v1347, %v1343
    %v1384 = vpack.c.b16 %v1348, %v1344
    %v1385 = vpack.c.b16 %v1349, %v1345
    %v1386 = vpack.c.b16 %v1350, %v1346
    %v1387 = vpack.c.b16 %v1355, %v1351
    %v1388 = vpack.c.b16 %v1356, %v1352
    %v1389 = vpack.c.b16 %v1357, %v1353
    %v1390 = vpack.c.b16 %v1358, %v1354
    %1423 = vmatpush.bf16.msra.mxu0 %v1387
    %1424 = vmatpush.bf16.msra.mxu0 %v1383
    %1425 = vmatpush.bf16.msra.mxu0 %v1379
    %1426 = vmatpush.bf16.msra.mxu0 %v1375
    %1427 = vmatpush.bf16.msra.mxu0 %v1371
    %1428 = vmatpush.bf16.msra.mxu0 %v1367
    %1429 = vmatpush.bf16.msra.mxu0 %v1363
    %1430 = vmatpush.bf16.msra.mxu0 %v1359
    %1431 = vmatmul.bf16.gmra.mxu0 %v1227
    %v1432 = vpop.f32.mrf.mxu0
    %v1433 = vadd.f32 0.0, %v1432
    %v1434 = vpop.f32.mrf.mxu0
    %1435 = vdwg.mxu0
    %1436 = vmatpush.bf16.msra.mxu0 %v1388
    %1437 = vmatpush.bf16.msra.mxu0 %v1384
    %1438 = vmatpush.bf16.msra.mxu0 %v1380
    %1439 = vmatpush.bf16.msra.mxu0 %v1376
    %1440 = vmatpush.bf16.msra.mxu0 %v1372
    %1441 = vmatpush.bf16.msra.mxu0 %v1368
    %1442 = vmatpush.bf16.msra.mxu0 %v1364
    %1443 = vmatpush.bf16.msra.mxu0 %v1360
    %1444 = vmatmul.bf16.gmra.mxu0 %v1227
    %v1445 = vpop.f32.mrf.mxu0
    %v1446 = vadd.f32 0.0, %v1445
    %v1447 = vpop.f32.mrf.mxu0
    %1448 = vdwg.mxu0
    %1449 = vmatpush.bf16.msra.mxu0 %v1389
    %1450 = vmatpush.bf16.msra.mxu0 %v1385
    %1451 = vmatpush.bf16.msra.mxu0 %v1381
    %1452 = vmatpush.bf16.msra.mxu0 %v1377
    %1453 = vmatpush.bf16.msra.mxu0 %v1373
    %1454 = vmatpush.bf16.msra.mxu0 %v1369
    %1455 = vmatpush.bf16.msra.mxu0 %v1365
    %1456 = vmatpush.bf16.msra.mxu0 %v1361
    %1457 = vmatmul.bf16.gmra.mxu0 %v1227
    %v1458 = vpop.f32.mrf.mxu0
    %v1459 = vadd.f32 0.0, %v1458
    %v1460 = vpop.f32.mrf.mxu0
    %1461 = vdwg.mxu0
    %1462 = vmatpush.bf16.msra.mxu0 %v1390
    %1463 = vmatpush.bf16.msra.mxu0 %v1386
    %1464 = vmatpush.bf16.msra.mxu0 %v1382
    %1465 = vmatpush.bf16.msra.mxu0 %v1378
    %1466 = vmatpush.bf16.msra.mxu0 %v1374
    %1467 = vmatpush.bf16.msra.mxu0 %v1370
    %1468 = vmatpush.bf16.msra.mxu0 %v1366
    %1469 = vmatpush.bf16.msra.mxu0 %v1362
    %1470 = vmatmul.bf16.gmra.mxu0 %v1227
    %v1471 = vpop.f32.mrf.mxu0
    %v1472 = vadd.f32 0.0, %v1471
    %v1473 = vpop.f32.mrf.mxu0
    %1474 = vdwg.mxu0
    %v1475 = vld [vmem:[#allocation10] sm:$0xff]
    %v1476 = vld [vmem:[#allocation10 + $0x8] sm:$0xff]
    %v1477 = vld [vmem:[#allocation10 + $0x10] sm:$0xff]
    %v1478 = vld [vmem:[#allocation10 + $0x18] sm:$0xff]
    %v1479 = vld [vmem:[#allocation10 + $0x20] sm:$0xff]
    %v1480 = vld [vmem:[#allocation10 + $0x28] sm:$0xff]
    %v1481 = vld [vmem:[#allocation10 + $0x30] sm:$0xff]
    %v1482 = vld [vmem:[#allocation10 + $0x38] sm:$0xff]
    %v1483 = vld [vmem:[#allocation10 + $0x40] sm:$0xff]
    %v1484 = vld [vmem:[#allocation10 + $0x48] sm:$0xff]
    %v1485 = vld [vmem:[#allocation10 + $0x50] sm:$0xff]
    %v1486 = vld [vmem:[#allocation10 + $0x58] sm:$0xff]
    %v1487 = vld [vmem:[#allocation10 + $0x60] sm:$0xff]
    %v1488 = vld [vmem:[#allocation10 + $0x68] sm:$0xff]
    %v1489 = vld [vmem:[#allocation10 + $0x70] sm:$0xff]
    %v1490 = vld [vmem:[#allocation10 + $0x78] sm:$0xff]
    %v1491 = vld [vmem:[#allocation10 + $0x80] sm:$0xff]
    %v1492 = vld [vmem:[#allocation10 + $0x88] sm:$0xff]
    %v1493 = vld [vmem:[#allocation10 + $0x90] sm:$0xff]
    %v1494 = vld [vmem:[#allocation10 + $0x98] sm:$0xff]
    %v1495 = vld [vmem:[#allocation10 + $0xa0] sm:$0xff]
    %v1496 = vld [vmem:[#allocation10 + $0xa8] sm:$0xff]
    %v1497 = vld [vmem:[#allocation10 + $0xb0] sm:$0xff]
    %v1498 = vld [vmem:[#allocation10 + $0xb8] sm:$0xff]
    %v1499 = vld [vmem:[#allocation10 + $0xc0] sm:$0xff]
    %v1500 = vld [vmem:[#allocation10 + $0xc8] sm:$0xff]
    %v1501 = vld [vmem:[#allocation10 + $0xd0] sm:$0xff]
    %v1502 = vld [vmem:[#allocation10 + $0xd8] sm:$0xff]
    %v1503 = vld [vmem:[#allocation10 + $0xe0] sm:$0xff]
    %v1504 = vld [vmem:[#allocation10 + $0xe8] sm:$0xff]
    %v1505 = vld [vmem:[#allocation10 + $0xf0] sm:$0xff]
    %v1506 = vld [vmem:[#allocation10 + $0xf8] sm:$0xff]
    %v1539 = vunpack.c.l.b16 %v1475
    %v1540 = vunpack.c.h.b16 %v1475
    %v1541 = vunpack.c.l.b16 %v1476
    %v1542 = vunpack.c.h.b16 %v1476
    %v1543 = vunpack.c.l.b16 %v1477
    %v1544 = vunpack.c.h.b16 %v1477
    %v1545 = vunpack.c.l.b16 %v1478
    %v1546 = vunpack.c.h.b16 %v1478
    %v1547 = vunpack.c.l.b16 %v1479
    %v1548 = vunpack.c.h.b16 %v1479
    %v1549 = vunpack.c.l.b16 %v1480
    %v1550 = vunpack.c.h.b16 %v1480
    %v1551 = vunpack.c.l.b16 %v1481
    %v1552 = vunpack.c.h.b16 %v1481
    %v1553 = vunpack.c.l.b16 %v1482
    %v1554 = vunpack.c.h.b16 %v1482
    %v1555 = vunpack.c.l.b16 %v1483
    %v1556 = vunpack.c.h.b16 %v1483
    %v1557 = vunpack.c.l.b16 %v1484
    %v1558 = vunpack.c.h.b16 %v1484
    %v1559 = vunpack.c.l.b16 %v1485
    %v1560 = vunpack.c.h.b16 %v1485
    %v1561 = vunpack.c.l.b16 %v1486
    %v1562 = vunpack.c.h.b16 %v1486
    %v1563 = vunpack.c.l.b16 %v1487
    %v1564 = vunpack.c.h.b16 %v1487
    %v1565 = vunpack.c.l.b16 %v1488
    %v1566 = vunpack.c.h.b16 %v1488
    %v1567 = vunpack.c.l.b16 %v1489
    %v1568 = vunpack.c.h.b16 %v1489
    %v1569 = vunpack.c.l.b16 %v1490
    %v1570 = vunpack.c.h.b16 %v1490
    %v1571 = vunpack.c.l.b16 %v1491
    %v1572 = vunpack.c.h.b16 %v1491
    %v1573 = vunpack.c.l.b16 %v1492
    %v1574 = vunpack.c.h.b16 %v1492
    %v1575 = vunpack.c.l.b16 %v1493
    %v1576 = vunpack.c.h.b16 %v1493
    %v1577 = vunpack.c.l.b16 %v1494
    %v1578 = vunpack.c.h.b16 %v1494
    %v1579 = vunpack.c.l.b16 %v1495
    %v1580 = vunpack.c.h.b16 %v1495
    %v1581 = vunpack.c.l.b16 %v1496
    %v1582 = vunpack.c.h.b16 %v1496
    %v1583 = vunpack.c.l.b16 %v1497
    %v1584 = vunpack.c.h.b16 %v1497
    %v1585 = vunpack.c.l.b16 %v1498
    %v1586 = vunpack.c.h.b16 %v1498
    %v1587 = vunpack.c.l.b16 %v1499
    %v1588 = vunpack.c.h.b16 %v1499
    %v1589 = vunpack.c.l.b16 %v1500
    %v1590 = vunpack.c.h.b16 %v1500
    %v1591 = vunpack.c.l.b16 %v1501
    %v1592 = vunpack.c.h.b16 %v1501
    %v1593 = vunpack.c.l.b16 %v1502
    %v1594 = vunpack.c.h.b16 %v1502
    %v1595 = vunpack.c.l.b16 %v1503
    %v1596 = vunpack.c.h.b16 %v1503
    %v1597 = vunpack.c.l.b16 %v1504
    %v1598 = vunpack.c.h.b16 %v1504
    %v1599 = vunpack.c.l.b16 %v1505
    %v1600 = vunpack.c.h.b16 %v1505
    %v1601 = vunpack.c.l.b16 %v1506
    %v1602 = vunpack.c.h.b16 %v1506
    %v1603 = vpack.c.b16 %v1543, %v1539
    %v1604 = vpack.c.b16 %v1544, %v1540
    %v1605 = vpack.c.b16 %v1545, %v1541
    %v1606 = vpack.c.b16 %v1546, %v1542
    %v1607 = vpack.c.b16 %v1551, %v1547
    %v1608 = vpack.c.b16 %v1552, %v1548
    %v1609 = vpack.c.b16 %v1553, %v1549
    %v1610 = vpack.c.b16 %v1554, %v1550
    %v1611 = vpack.c.b16 %v1559, %v1555
    %v1612 = vpack.c.b16 %v1560, %v1556
    %v1613 = vpack.c.b16 %v1561, %v1557
    %v1614 = vpack.c.b16 %v1562, %v1558
    %v1615 = vpack.c.b16 %v1567, %v1563
    %v1616 = vpack.c.b16 %v1568, %v1564
    %v1617 = vpack.c.b16 %v1569, %v1565
    %v1618 = vpack.c.b16 %v1570, %v1566
    %v1619 = vpack.c.b16 %v1575, %v1571
    %v1620 = vpack.c.b16 %v1576, %v1572
    %v1621 = vpack.c.b16 %v1577, %v1573
    %v1622 = vpack.c.b16 %v1578, %v1574
    %v1623 = vpack.c.b16 %v1583, %v1579
    %v1624 = vpack.c.b16 %v1584, %v1580
    %v1625 = vpack.c.b16 %v1585, %v1581
    %v1626 = vpack.c.b16 %v1586, %v1582
    %v1627 = vpack.c.b16 %v1591, %v1587
    %v1628 = vpack.c.b16 %v1592, %v1588
    %v1629 = vpack.c.b16 %v1593, %v1589
    %v1630 = vpack.c.b16 %v1594, %v1590
    %v1631 = vpack.c.b16 %v1599, %v1595
    %v1632 = vpack.c.b16 %v1600, %v1596
    %v1633 = vpack.c.b16 %v1601, %v1597
    %v1634 = vpack.c.b16 %v1602, %v1598
    %1667 = vmatpush.bf16.msra.mxu0 %v1631
    %1668 = vmatpush.bf16.msra.mxu0 %v1627
    %1669 = vmatpush.bf16.msra.mxu0 %v1623
    %1670 = vmatpush.bf16.msra.mxu0 %v1619
    %1671 = vmatpush.bf16.msra.mxu0 %v1615
    %1672 = vmatpush.bf16.msra.mxu0 %v1611
    %1673 = vmatpush.bf16.msra.mxu0 %v1607
    %1674 = vmatpush.bf16.msra.mxu0 %v1603
    %1675 = vmatmul.bf16.gmra.mxu0 %v1228
    %v1676 = vpop.f32.mrf.mxu0
    %v1677 = vadd.f32 0.0, %v1676
    %v1678 = vpop.f32.mrf.mxu0
    %1679 = vdwg.mxu0
    %1680 = vmatpush.bf16.msra.mxu0 %v1632
    %1681 = vmatpush.bf16.msra.mxu0 %v1628
    %1682 = vmatpush.bf16.msra.mxu0 %v1624
    %1683 = vmatpush.bf16.msra.mxu0 %v1620
    %1684 = vmatpush.bf16.msra.mxu0 %v1616
    %1685 = vmatpush.bf16.msra.mxu0 %v1612
    %1686 = vmatpush.bf16.msra.mxu0 %v1608
    %1687 = vmatpush.bf16.msra.mxu0 %v1604
    %1688 = vmatmul.bf16.gmra.mxu0 %v1228
    %v1689 = vpop.f32.mrf.mxu0
    %v1690 = vadd.f32 0.0, %v1689
    %v1691 = vpop.f32.mrf.mxu0
    %1692 = vdwg.mxu0
    %1693 = vmatpush.bf16.msra.mxu0 %v1633
    %1694 = vmatpush.bf16.msra.mxu0 %v1629
    %1695 = vmatpush.bf16.msra.mxu0 %v1625
    %1696 = vmatpush.bf16.msra.mxu0 %v1621
    %1697 = vmatpush.bf16.msra.mxu0 %v1617
    %1698 = vmatpush.bf16.msra.mxu0 %v1613
    %1699 = vmatpush.bf16.msra.mxu0 %v1609
    %1700 = vmatpush.bf16.msra.mxu0 %v1605
    %1701 = vmatmul.bf16.gmra.mxu0 %v1228
    %v1702 = vpop.f32.mrf.mxu0
    %v1703 = vadd.f32 0.0, %v1702
    %v1704 = vpop.f32.mrf.mxu0
    %1705 = vdwg.mxu0
    %1706 = vmatpush.bf16.msra.mxu0 %v1634
    %1707 = vmatpush.bf16.msra.mxu0 %v1630
    %1708 = vmatpush.bf16.msra.mxu0 %v1626
    %1709 = vmatpush.bf16.msra.mxu0 %v1622
    %1710 = vmatpush.bf16.msra.mxu0 %v1618
    %1711 = vmatpush.bf16.msra.mxu0 %v1614
    %1712 = vmatpush.bf16.msra.mxu0 %v1610
    %1713 = vmatpush.bf16.msra.mxu0 %v1606
    %1714 = vmatmul.bf16.gmra.mxu0 %v1228
    %v1715 = vpop.f32.mrf.mxu0
    %v1716 = vadd.f32 0.0, %v1715
    %v1717 = vpop.f32.mrf.mxu0
    %1718 = vdwg.mxu0
    %v1719 = vld [vmem:[#allocation2 + $0x20] sm:$0xff]
    %v1720 = vld [vmem:[#allocation2 + $0x28] sm:$0xff]
    %v1721 = vld [vmem:[#allocation2 + $0x30] sm:$0xff]
    %v1722 = vld [vmem:[#allocation2 + $0x38] sm:$0xff]
    %v1723 = vadd.f32 %v1719, %v1433
    %v1724 = vadd.f32 %v1720, %v1446
    %v1725 = vadd.f32 %v1721, %v1459
    %v1726 = vadd.f32 %v1722, %v1472
    %v1727 = vxor.u32 %v1723, 2147483648
    %v1728 = vmul.f32 %v1727, 1.442695
    %v1729 = vpow.pop %v1728
    %v1730 = vadd.f32 %v1729, 1.0
    %v1731 = vrcp.pop %v1730
    %v1732 = vmul.f32 %v1730, %v1731
    %v1733 = vsub.f32 1.0, %v1732
    %v1734 = vmul.f32 %v1731, %v1733
    %v1735 = vadd.f32 %v1731, %v1734
    %vm1736 = vweird.f32 %v1730
    %vm1737 = vweird.f32 %v1731
    %vm1738 = vmor %vm1736, %vm1737
    %v1739 = vsel %vm1738, %v1731, %v1735
    %v1740 = vand.u32 2147483647, %v1730
    %vm1741 = vcmp.eq.f32.partialorder %v1740, 8.507059e+37
    %v1742 = vand.u32 %v1730, 2147483648
    %v1743 = vor.u32 1.1754944e-38, %v1742
    %v1744 = vsel %vm1741, %v1743, %v1739
    %v1745 = vmul.f32 1.0, %v1744
    %v1746 = vxor.u32 %v1724, 2147483648
    %v1747 = vmul.f32 %v1746, 1.442695
    %v1748 = vpow.pop %v1747
    %v1749 = vadd.f32 %v1748, 1.0
    %v1750 = vrcp.pop %v1749
    %v1751 = vmul.f32 %v1749, %v1750
    %v1752 = vsub.f32 1.0, %v1751
    %v1753 = vmul.f32 %v1750, %v1752
    %v1754 = vadd.f32 %v1750, %v1753
    %vm1755 = vweird.f32 %v1749
    %vm1756 = vweird.f32 %v1750
    %vm1757 = vmor %vm1755, %vm1756
    %v1758 = vsel %vm1757, %v1750, %v1754
    %v1759 = vand.u32 2147483647, %v1749
    %vm1760 = vcmp.eq.f32.partialorder %v1759, 8.507059e+37
    %v1761 = vand.u32 %v1749, 2147483648
    %v1762 = vor.u32 1.1754944e-38, %v1761
    %v1763 = vsel %vm1760, %v1762, %v1758
    %v1764 = vmul.f32 1.0, %v1763
    %v1765 = vtanh.pop %v1725
    %v1766 = vxor.u32 %v1726, 2147483648
    %v1767 = vmul.f32 %v1766, 1.442695
    %v1768 = vpow.pop %v1767
    %v1769 = vadd.f32 %v1768, 1.0
    %v1770 = vrcp.pop %v1769
    %v1771 = vmul.f32 %v1769, %v1770
    %v1772 = vsub.f32 1.0, %v1771
    %v1773 = vmul.f32 %v1770, %v1772
    %v1774 = vadd.f32 %v1770, %v1773
    %vm1775 = vweird.f32 %v1769
    %vm1776 = vweird.f32 %v1770
    %vm1777 = vmor %vm1775, %vm1776
    %v1778 = vsel %vm1777, %v1770, %v1774
    %v1779 = vand.u32 2147483647, %v1769
    %vm1780 = vcmp.eq.f32.partialorder %v1779, 8.507059e+37
    %v1781 = vand.u32 %v1769, 2147483648
    %v1782 = vor.u32 1.1754944e-38, %v1781
    %v1783 = vsel %vm1780, %v1782, %v1778
    %v1784 = vmul.f32 1.0, %v1783
    %v1785 = vmul.f32 %v1764, %v1153
    %v1786 = vmul.f32 %v1745, %v1765
    %v1787 = vadd.f32 %v1785, %v1786
    %v1788 = vtanh.pop %v1787
    %v1789 = vmul.f32 %v1784, %v1788
    %v1790 = vld [vmem:[#allocation3 + $0xc0] sm:$0xff]
    %v1791 = vld [vmem:[#allocation3 + $0xc8] sm:$0xff]
    %v1792 = vld [vmem:[#allocation3 + $0xd0] sm:$0xff]
    %v1793 = vld [vmem:[#allocation3 + $0xd8] sm:$0xff]
    %v1794 = vadd.f32 %v1790, %v1677
    %v1795 = vadd.f32 %v1791, %v1690
    %v1796 = vadd.f32 %v1792, %v1703
    %v1797 = vadd.f32 %v1793, %v1716
    %v1798 = vxor.u32 %v1794, 2147483648
    %v1799 = vmul.f32 %v1798, 1.442695
    %v1800 = vpow.pop %v1799
    %v1801 = vadd.f32 %v1800, 1.0
    %v1802 = vrcp.pop %v1801
    %v1803 = vmul.f32 %v1801, %v1802
    %v1804 = vsub.f32 1.0, %v1803
    %v1805 = vmul.f32 %v1802, %v1804
    %v1806 = vadd.f32 %v1802, %v1805
    %vm1807 = vweird.f32 %v1801
    %vm1808 = vweird.f32 %v1802
    %vm1809 = vmor %vm1807, %vm1808
    %v1810 = vsel %vm1809, %v1802, %v1806
    %v1811 = vand.u32 2147483647, %v1801
    %vm1812 = vcmp.eq.f32.partialorder %v1811, 8.507059e+37
    %v1813 = vand.u32 %v1801, 2147483648
    %v1814 = vor.u32 1.1754944e-38, %v1813
    %v1815 = vsel %vm1812, %v1814, %v1810
    %v1816 = vmul.f32 1.0, %v1815
    %v1817 = vxor.u32 %v1795, 2147483648
    %v1818 = vmul.f32 %v1817, 1.442695
    %v1819 = vpow.pop %v1818
    %v1820 = vadd.f32 %v1819, 1.0
    %v1821 = vrcp.pop %v1820
    %v1822 = vmul.f32 %v1820, %v1821
    %v1823 = vsub.f32 1.0, %v1822
    %v1824 = vmul.f32 %v1821, %v1823
    %v1825 = vadd.f32 %v1821, %v1824
    %vm1826 = vweird.f32 %v1820
    %vm1827 = vweird.f32 %v1821
    %vm1828 = vmor %vm1826, %vm1827
    %v1829 = vsel %vm1828, %v1821, %v1825
    %v1830 = vand.u32 2147483647, %v1820
    %vm1831 = vcmp.eq.f32.partialorder %v1830, 8.507059e+37
    %v1832 = vand.u32 %v1820, 2147483648
    %v1833 = vor.u32 1.1754944e-38, %v1832
    %v1834 = vsel %vm1831, %v1833, %v1829
    %v1835 = vmul.f32 1.0, %v1834
    %v1836 = vtanh.pop %v1796
    %v1837 = vxor.u32 %v1797, 2147483648
    %v1838 = vmul.f32 %v1837, 1.442695
    %v1839 = vpow.pop %v1838
    %v1840 = vadd.f32 %v1839, 1.0
    %v1841 = vrcp.pop %v1840
    %v1842 = vmul.f32 %v1840, %v1841
    %v1843 = vsub.f32 1.0, %v1842
    %v1844 = vmul.f32 %v1841, %v1843
    %v1845 = vadd.f32 %v1841, %v1844
    %vm1846 = vweird.f32 %v1840
    %vm1847 = vweird.f32 %v1841
    %vm1848 = vmor %vm1846, %vm1847
    %v1849 = vsel %vm1848, %v1841, %v1845
    %v1850 = vand.u32 2147483647, %v1840
    %vm1851 = vcmp.eq.f32.partialorder %v1850, 8.507059e+37
    %v1852 = vand.u32 %v1840, 2147483648
    %v1853 = vor.u32 1.1754944e-38, %v1852
    %v1854 = vsel %vm1851, %v1853, %v1849
    %v1855 = vmul.f32 1.0, %v1854
    %v1856 = vmul.f32 %v1835, %v1224
    %v1857 = vmul.f32 %v1816, %v1836
    %v1858 = vadd.f32 %v1856, %v1857
    %v1859 = vtanh.pop %v1858
    %v1860 = vmul.f32 %v1855, %v1859
    %v1861 = vpack.c.bf16 %v1789, %v1789
    %v1862 = vpack.c.bf16 %v1860, %v1860
    %1863 = vst [vmem:[#allocation4 + $0x8] sm:$0xf] %v1861
    %1864 = vst [vmem:[#allocation4 + $0x34] sm:$0xf] %v1862
    %v1865 = vld [vmem:[#allocation9] sm:$0xff]
    %v1866 = vld [vmem:[#allocation9 + $0x8] sm:$0xff]
    %v1867 = vld [vmem:[#allocation9 + $0x10] sm:$0xff]
    %v1868 = vld [vmem:[#allocation9 + $0x18] sm:$0xff]
    %v1869 = vld [vmem:[#allocation9 + $0x20] sm:$0xff]
    %v1870 = vld [vmem:[#allocation9 + $0x28] sm:$0xff]
    %v1871 = vld [vmem:[#allocation9 + $0x30] sm:$0xff]
    %v1872 = vld [vmem:[#allocation9 + $0x38] sm:$0xff]
    %v1873 = vld [vmem:[#allocation9 + $0x40] sm:$0xff]
    %v1874 = vld [vmem:[#allocation9 + $0x48] sm:$0xff]
    %v1875 = vld [vmem:[#allocation9 + $0x50] sm:$0xff]
    %v1876 = vld [vmem:[#allocation9 + $0x58] sm:$0xff]
    %v1877 = vld [vmem:[#allocation9 + $0x60] sm:$0xff]
    %v1878 = vld [vmem:[#allocation9 + $0x68] sm:$0xff]
    %v1879 = vld [vmem:[#allocation9 + $0x70] sm:$0xff]
    %v1880 = vld [vmem:[#allocation9 + $0x78] sm:$0xff]
    %v1881 = vld [vmem:[#allocation9 + $0x80] sm:$0xff]
    %v1882 = vld [vmem:[#allocation9 + $0x88] sm:$0xff]
    %v1883 = vld [vmem:[#allocation9 + $0x90] sm:$0xff]
    %v1884 = vld [vmem:[#allocation9 + $0x98] sm:$0xff]
    %v1885 = vld [vmem:[#allocation9 + $0xa0] sm:$0xff]
    %v1886 = vld [vmem:[#allocation9 + $0xa8] sm:$0xff]
    %v1887 = vld [vmem:[#allocation9 + $0xb0] sm:$0xff]
    %v1888 = vld [vmem:[#allocation9 + $0xb8] sm:$0xff]
    %v1889 = vld [vmem:[#allocation9 + $0xc0] sm:$0xff]
    %v1890 = vld [vmem:[#allocation9 + $0xc8] sm:$0xff]
    %v1891 = vld [vmem:[#allocation9 + $0xd0] sm:$0xff]
    %v1892 = vld [vmem:[#allocation9 + $0xd8] sm:$0xff]
    %v1893 = vld [vmem:[#allocation9 + $0xe0] sm:$0xff]
    %v1894 = vld [vmem:[#allocation9 + $0xe8] sm:$0xff]
    %v1895 = vld [vmem:[#allocation9 + $0xf0] sm:$0xff]
    %v1896 = vld [vmem:[#allocation9 + $0xf8] sm:$0xff]
    %v1929 = vunpack.c.l.b16 %v1865
    %v1930 = vunpack.c.h.b16 %v1865
    %v1931 = vunpack.c.l.b16 %v1866
    %v1932 = vunpack.c.h.b16 %v1866
    %v1933 = vunpack.c.l.b16 %v1867
    %v1934 = vunpack.c.h.b16 %v1867
    %v1935 = vunpack.c.l.b16 %v1868
    %v1936 = vunpack.c.h.b16 %v1868
    %v1937 = vunpack.c.l.b16 %v1869
    %v1938 = vunpack.c.h.b16 %v1869
    %v1939 = vunpack.c.l.b16 %v1870
    %v1940 = vunpack.c.h.b16 %v1870
    %v1941 = vunpack.c.l.b16 %v1871
    %v1942 = vunpack.c.h.b16 %v1871
    %v1943 = vunpack.c.l.b16 %v1872
    %v1944 = vunpack.c.h.b16 %v1872
    %v1945 = vunpack.c.l.b16 %v1873
    %v1946 = vunpack.c.h.b16 %v1873
    %v1947 = vunpack.c.l.b16 %v1874
    %v1948 = vunpack.c.h.b16 %v1874
    %v1949 = vunpack.c.l.b16 %v1875
    %v1950 = vunpack.c.h.b16 %v1875
    %v1951 = vunpack.c.l.b16 %v1876
    %v1952 = vunpack.c.h.b16 %v1876
    %v1953 = vunpack.c.l.b16 %v1877
    %v1954 = vunpack.c.h.b16 %v1877
    %v1955 = vunpack.c.l.b16 %v1878
    %v1956 = vunpack.c.h.b16 %v1878
    %v1957 = vunpack.c.l.b16 %v1879
    %v1958 = vunpack.c.h.b16 %v1879
    %v1959 = vunpack.c.l.b16 %v1880
    %v1960 = vunpack.c.h.b16 %v1880
    %v1961 = vunpack.c.l.b16 %v1881
    %v1962 = vunpack.c.h.b16 %v1881
    %v1963 = vunpack.c.l.b16 %v1882
    %v1964 = vunpack.c.h.b16 %v1882
    %v1965 = vunpack.c.l.b16 %v1883
    %v1966 = vunpack.c.h.b16 %v1883
    %v1967 = vunpack.c.l.b16 %v1884
    %v1968 = vunpack.c.h.b16 %v1884
    %v1969 = vunpack.c.l.b16 %v1885
    %v1970 = vunpack.c.h.b16 %v1885
    %v1971 = vunpack.c.l.b16 %v1886
    %v1972 = vunpack.c.h.b16 %v1886
    %v1973 = vunpack.c.l.b16 %v1887
    %v1974 = vunpack.c.h.b16 %v1887
    %v1975 = vunpack.c.l.b16 %v1888
    %v1976 = vunpack.c.h.b16 %v1888
    %v1977 = vunpack.c.l.b16 %v1889
    %v1978 = vunpack.c.h.b16 %v1889
    %v1979 = vunpack.c.l.b16 %v1890
    %v1980 = vunpack.c.h.b16 %v1890
    %v1981 = vunpack.c.l.b16 %v1891
    %v1982 = vunpack.c.h.b16 %v1891
    %v1983 = vunpack.c.l.b16 %v1892
    %v1984 = vunpack.c.h.b16 %v1892
    %v1985 = vunpack.c.l.b16 %v1893
    %v1986 = vunpack.c.h.b16 %v1893
    %v1987 = vunpack.c.l.b16 %v1894
    %v1988 = vunpack.c.h.b16 %v1894
    %v1989 = vunpack.c.l.b16 %v1895
    %v1990 = vunpack.c.h.b16 %v1895
    %v1991 = vunpack.c.l.b16 %v1896
    %v1992 = vunpack.c.h.b16 %v1896
    %v1993 = vpack.c.b16 %v1933, %v1929
    %v1994 = vpack.c.b16 %v1934, %v1930
    %v1995 = vpack.c.b16 %v1935, %v1931
    %v1996 = vpack.c.b16 %v1936, %v1932
    %v1997 = vpack.c.b16 %v1941, %v1937
    %v1998 = vpack.c.b16 %v1942, %v1938
    %v1999 = vpack.c.b16 %v1943, %v1939
    %v2000 = vpack.c.b16 %v1944, %v1940
    %v2001 = vpack.c.b16 %v1949, %v1945
    %v2002 = vpack.c.b16 %v1950, %v1946
    %v2003 = vpack.c.b16 %v1951, %v1947
    %v2004 = vpack.c.b16 %v1952, %v1948
    %v2005 = vpack.c.b16 %v1957, %v1953
    %v2006 = vpack.c.b16 %v1958, %v1954
    %v2007 = vpack.c.b16 %v1959, %v1955
    %v2008 = vpack.c.b16 %v1960, %v1956
    %v2009 = vpack.c.b16 %v1965, %v1961
    %v2010 = vpack.c.b16 %v1966, %v1962
    %v2011 = vpack.c.b16 %v1967, %v1963
    %v2012 = vpack.c.b16 %v1968, %v1964
    %v2013 = vpack.c.b16 %v1973, %v1969
    %v2014 = vpack.c.b16 %v1974, %v1970
    %v2015 = vpack.c.b16 %v1975, %v1971
    %v2016 = vpack.c.b16 %v1976, %v1972
    %v2017 = vpack.c.b16 %v1981, %v1977
    %v2018 = vpack.c.b16 %v1982, %v1978
    %v2019 = vpack.c.b16 %v1983, %v1979
    %v2020 = vpack.c.b16 %v1984, %v1980
    %v2021 = vpack.c.b16 %v1989, %v1985
    %v2022 = vpack.c.b16 %v1990, %v1986
    %v2023 = vpack.c.b16 %v1991, %v1987
    %v2024 = vpack.c.b16 %v1992, %v1988
    %2057 = vmatpush.bf16.msra.mxu0 %v2021
    %2058 = vmatpush.bf16.msra.mxu0 %v2017
    %2059 = vmatpush.bf16.msra.mxu0 %v2013
    %2060 = vmatpush.bf16.msra.mxu0 %v2009
    %2061 = vmatpush.bf16.msra.mxu0 %v2005
    %2062 = vmatpush.bf16.msra.mxu0 %v2001
    %2063 = vmatpush.bf16.msra.mxu0 %v1997
    %2064 = vmatpush.bf16.msra.mxu0 %v1993
    %2065 = vmatmul.bf16.gmra.mxu0 %v1861
    %v2066 = vpop.f32.mrf.mxu0
    %v2067 = vadd.f32 0.0, %v2066
    %v2068 = vpop.f32.mrf.mxu0
    %2069 = vdwg.mxu0
    %2070 = vmatpush.bf16.msra.mxu0 %v2022
    %2071 = vmatpush.bf16.msra.mxu0 %v2018
    %2072 = vmatpush.bf16.msra.mxu0 %v2014
    %2073 = vmatpush.bf16.msra.mxu0 %v2010
    %2074 = vmatpush.bf16.msra.mxu0 %v2006
    %2075 = vmatpush.bf16.msra.mxu0 %v2002
    %2076 = vmatpush.bf16.msra.mxu0 %v1998
    %2077 = vmatpush.bf16.msra.mxu0 %v1994
    %2078 = vmatmul.bf16.gmra.mxu0 %v1861
    %v2079 = vpop.f32.mrf.mxu0
    %v2080 = vadd.f32 0.0, %v2079
    %v2081 = vpop.f32.mrf.mxu0
    %2082 = vdwg.mxu0
    %2083 = vmatpush.bf16.msra.mxu0 %v2023
    %2084 = vmatpush.bf16.msra.mxu0 %v2019
    %2085 = vmatpush.bf16.msra.mxu0 %v2015
    %2086 = vmatpush.bf16.msra.mxu0 %v2011
    %2087 = vmatpush.bf16.msra.mxu0 %v2007
    %2088 = vmatpush.bf16.msra.mxu0 %v2003
    %2089 = vmatpush.bf16.msra.mxu0 %v1999
    %2090 = vmatpush.bf16.msra.mxu0 %v1995
    %2091 = vmatmul.bf16.gmra.mxu0 %v1861
    %v2092 = vpop.f32.mrf.mxu0
    %v2093 = vadd.f32 0.0, %v2092
    %v2094 = vpop.f32.mrf.mxu0
    %2095 = vdwg.mxu0
    %2096 = vmatpush.bf16.msra.mxu0 %v2024
    %2097 = vmatpush.bf16.msra.mxu0 %v2020
    %2098 = vmatpush.bf16.msra.mxu0 %v2016
    %2099 = vmatpush.bf16.msra.mxu0 %v2012
    %2100 = vmatpush.bf16.msra.mxu0 %v2008
    %2101 = vmatpush.bf16.msra.mxu0 %v2004
    %2102 = vmatpush.bf16.msra.mxu0 %v2000
    %2103 = vmatpush.bf16.msra.mxu0 %v1996
    %2104 = vmatmul.bf16.gmra.mxu0 %v1861
    %v2105 = vpop.f32.mrf.mxu0
    %v2106 = vadd.f32 0.0, %v2105
    %v2107 = vpop.f32.mrf.mxu0
    %2108 = vdwg.mxu0
    %v2109 = vld [vmem:[#allocation10] sm:$0xff]
    %v2110 = vld [vmem:[#allocation10 + $0x8] sm:$0xff]
    %v2111 = vld [vmem:[#allocation10 + $0x10] sm:$0xff]
    %v2112 = vld [vmem:[#allocation10 + $0x18] sm:$0xff]
    %v2113 = vld [vmem:[#allocation10 + $0x20] sm:$0xff]
    %v2114 = vld [vmem:[#allocation10 + $0x28] sm:$0xff]
    %v2115 = vld [vmem:[#allocation10 + $0x30] sm:$0xff]
    %v2116 = vld [vmem:[#allocation10 + $0x38] sm:$0xff]
    %v2117 = vld [vmem:[#allocation10 + $0x40] sm:$0xff]
    %v2118 = vld [vmem:[#allocation10 + $0x48] sm:$0xff]
    %v2119 = vld [vmem:[#allocation10 + $0x50] sm:$0xff]
    %v2120 = vld [vmem:[#allocation10 + $0x58] sm:$0xff]
    %v2121 = vld [vmem:[#allocation10 + $0x60] sm:$0xff]
    %v2122 = vld [vmem:[#allocation10 + $0x68] sm:$0xff]
    %v2123 = vld [vmem:[#allocation10 + $0x70] sm:$0xff]
    %v2124 = vld [vmem:[#allocation10 + $0x78] sm:$0xff]
    %v2125 = vld [vmem:[#allocation10 + $0x80] sm:$0xff]
    %v2126 = vld [vmem:[#allocation10 + $0x88] sm:$0xff]
    %v2127 = vld [vmem:[#allocation10 + $0x90] sm:$0xff]
    %v2128 = vld [vmem:[#allocation10 + $0x98] sm:$0xff]
    %v2129 = vld [vmem:[#allocation10 + $0xa0] sm:$0xff]
    %v2130 = vld [vmem:[#allocation10 + $0xa8] sm:$0xff]
    %v2131 = vld [vmem:[#allocation10 + $0xb0] sm:$0xff]
    %v2132 = vld [vmem:[#allocation10 + $0xb8] sm:$0xff]
    %v2133 = vld [vmem:[#allocation10 + $0xc0] sm:$0xff]
    %v2134 = vld [vmem:[#allocation10 + $0xc8] sm:$0xff]
    %v2135 = vld [vmem:[#allocation10 + $0xd0] sm:$0xff]
    %v2136 = vld [vmem:[#allocation10 + $0xd8] sm:$0xff]
    %v2137 = vld [vmem:[#allocation10 + $0xe0] sm:$0xff]
    %v2138 = vld [vmem:[#allocation10 + $0xe8] sm:$0xff]
    %v2139 = vld [vmem:[#allocation10 + $0xf0] sm:$0xff]
    %v2140 = vld [vmem:[#allocation10 + $0xf8] sm:$0xff]
    %v2173 = vunpack.c.l.b16 %v2109
    %v2174 = vunpack.c.h.b16 %v2109
    %v2175 = vunpack.c.l.b16 %v2110
    %v2176 = vunpack.c.h.b16 %v2110
    %v2177 = vunpack.c.l.b16 %v2111
    %v2178 = vunpack.c.h.b16 %v2111
    %v2179 = vunpack.c.l.b16 %v2112
    %v2180 = vunpack.c.h.b16 %v2112
    %v2181 = vunpack.c.l.b16 %v2113
    %v2182 = vunpack.c.h.b16 %v2113
    %v2183 = vunpack.c.l.b16 %v2114
    %v2184 = vunpack.c.h.b16 %v2114
    %v2185 = vunpack.c.l.b16 %v2115
    %v2186 = vunpack.c.h.b16 %v2115
    %v2187 = vunpack.c.l.b16 %v2116
    %v2188 = vunpack.c.h.b16 %v2116
    %v2189 = vunpack.c.l.b16 %v2117
    %v2190 = vunpack.c.h.b16 %v2117
    %v2191 = vunpack.c.l.b16 %v2118
    %v2192 = vunpack.c.h.b16 %v2118
    %v2193 = vunpack.c.l.b16 %v2119
    %v2194 = vunpack.c.h.b16 %v2119
    %v2195 = vunpack.c.l.b16 %v2120
    %v2196 = vunpack.c.h.b16 %v2120
    %v2197 = vunpack.c.l.b16 %v2121
    %v2198 = vunpack.c.h.b16 %v2121
    %v2199 = vunpack.c.l.b16 %v2122
    %v2200 = vunpack.c.h.b16 %v2122
    %v2201 = vunpack.c.l.b16 %v2123
    %v2202 = vunpack.c.h.b16 %v2123
    %v2203 = vunpack.c.l.b16 %v2124
    %v2204 = vunpack.c.h.b16 %v2124
    %v2205 = vunpack.c.l.b16 %v2125
    %v2206 = vunpack.c.h.b16 %v2125
    %v2207 = vunpack.c.l.b16 %v2126
    %v2208 = vunpack.c.h.b16 %v2126
    %v2209 = vunpack.c.l.b16 %v2127
    %v2210 = vunpack.c.h.b16 %v2127
    %v2211 = vunpack.c.l.b16 %v2128
    %v2212 = vunpack.c.h.b16 %v2128
    %v2213 = vunpack.c.l.b16 %v2129
    %v2214 = vunpack.c.h.b16 %v2129
    %v2215 = vunpack.c.l.b16 %v2130
    %v2216 = vunpack.c.h.b16 %v2130
    %v2217 = vunpack.c.l.b16 %v2131
    %v2218 = vunpack.c.h.b16 %v2131
    %v2219 = vunpack.c.l.b16 %v2132
    %v2220 = vunpack.c.h.b16 %v2132
    %v2221 = vunpack.c.l.b16 %v2133
    %v2222 = vunpack.c.h.b16 %v2133
    %v2223 = vunpack.c.l.b16 %v2134
    %v2224 = vunpack.c.h.b16 %v2134
    %v2225 = vunpack.c.l.b16 %v2135
    %v2226 = vunpack.c.h.b16 %v2135
    %v2227 = vunpack.c.l.b16 %v2136
    %v2228 = vunpack.c.h.b16 %v2136
    %v2229 = vunpack.c.l.b16 %v2137
    %v2230 = vunpack.c.h.b16 %v2137
    %v2231 = vunpack.c.l.b16 %v2138
    %v2232 = vunpack.c.h.b16 %v2138
    %v2233 = vunpack.c.l.b16 %v2139
    %v2234 = vunpack.c.h.b16 %v2139
    %v2235 = vunpack.c.l.b16 %v2140
    %v2236 = vunpack.c.h.b16 %v2140
    %v2237 = vpack.c.b16 %v2177, %v2173
    %v2238 = vpack.c.b16 %v2178, %v2174
    %v2239 = vpack.c.b16 %v2179, %v2175
    %v2240 = vpack.c.b16 %v2180, %v2176
    %v2241 = vpack.c.b16 %v2185, %v2181
    %v2242 = vpack.c.b16 %v2186, %v2182
    %v2243 = vpack.c.b16 %v2187, %v2183
    %v2244 = vpack.c.b16 %v2188, %v2184
    %v2245 = vpack.c.b16 %v2193, %v2189
    %v2246 = vpack.c.b16 %v2194, %v2190
    %v2247 = vpack.c.b16 %v2195, %v2191
    %v2248 = vpack.c.b16 %v2196, %v2192
    %v2249 = vpack.c.b16 %v2201, %v2197
    %v2250 = vpack.c.b16 %v2202, %v2198
    %v2251 = vpack.c.b16 %v2203, %v2199
    %v2252 = vpack.c.b16 %v2204, %v2200
    %v2253 = vpack.c.b16 %v2209, %v2205
    %v2254 = vpack.c.b16 %v2210, %v2206
    %v2255 = vpack.c.b16 %v2211, %v2207
    %v2256 = vpack.c.b16 %v2212, %v2208
    %v2257 = vpack.c.b16 %v2217, %v2213
    %v2258 = vpack.c.b16 %v2218, %v2214
    %v2259 = vpack.c.b16 %v2219, %v2215
    %v2260 = vpack.c.b16 %v2220, %v2216
    %v2261 = vpack.c.b16 %v2225, %v2221
    %v2262 = vpack.c.b16 %v2226, %v2222
    %v2263 = vpack.c.b16 %v2227, %v2223
    %v2264 = vpack.c.b16 %v2228, %v2224
    %v2265 = vpack.c.b16 %v2233, %v2229
    %v2266 = vpack.c.b16 %v2234, %v2230
    %v2267 = vpack.c.b16 %v2235, %v2231
    %v2268 = vpack.c.b16 %v2236, %v2232
    %2301 = vmatpush.bf16.msra.mxu0 %v2265
    %2302 = vmatpush.bf16.msra.mxu0 %v2261
    %2303 = vmatpush.bf16.msra.mxu0 %v2257
    %2304 = vmatpush.bf16.msra.mxu0 %v2253
    %2305 = vmatpush.bf16.msra.mxu0 %v2249
    %2306 = vmatpush.bf16.msra.mxu0 %v2245
    %2307 = vmatpush.bf16.msra.mxu0 %v2241
    %2308 = vmatpush.bf16.msra.mxu0 %v2237
    %2309 = vmatmul.bf16.gmra.mxu0 %v1862
    %v2310 = vpop.f32.mrf.mxu0
    %v2311 = vadd.f32 0.0, %v2310
    %v2312 = vpop.f32.mrf.mxu0
    %2313 = vdwg.mxu0
    %2314 = vmatpush.bf16.msra.mxu0 %v2266
    %2315 = vmatpush.bf16.msra.mxu0 %v2262
    %2316 = vmatpush.bf16.msra.mxu0 %v2258
    %2317 = vmatpush.bf16.msra.mxu0 %v2254
    %2318 = vmatpush.bf16.msra.mxu0 %v2250
    %2319 = vmatpush.bf16.msra.mxu0 %v2246
    %2320 = vmatpush.bf16.msra.mxu0 %v2242
    %2321 = vmatpush.bf16.msra.mxu0 %v2238
    %2322 = vmatmul.bf16.gmra.mxu0 %v1862
    %v2323 = vpop.f32.mrf.mxu0
    %v2324 = vadd.f32 0.0, %v2323
    %v2325 = vpop.f32.mrf.mxu0
    %2326 = vdwg.mxu0
    %2327 = vmatpush.bf16.msra.mxu0 %v2267
    %2328 = vmatpush.bf16.msra.mxu0 %v2263
    %2329 = vmatpush.bf16.msra.mxu0 %v2259
    %2330 = vmatpush.bf16.msra.mxu0 %v2255
    %2331 = vmatpush.bf16.msra.mxu0 %v2251
    %2332 = vmatpush.bf16.msra.mxu0 %v2247
    %2333 = vmatpush.bf16.msra.mxu0 %v2243
    %2334 = vmatpush.bf16.msra.mxu0 %v2239
    %2335 = vmatmul.bf16.gmra.mxu0 %v1862
    %v2336 = vpop.f32.mrf.mxu0
    %v2337 = vadd.f32 0.0, %v2336
    %v2338 = vpop.f32.mrf.mxu0
    %2339 = vdwg.mxu0
    %2340 = vmatpush.bf16.msra.mxu0 %v2268
    %2341 = vmatpush.bf16.msra.mxu0 %v2264
    %2342 = vmatpush.bf16.msra.mxu0 %v2260
    %2343 = vmatpush.bf16.msra.mxu0 %v2256
    %2344 = vmatpush.bf16.msra.mxu0 %v2252
    %2345 = vmatpush.bf16.msra.mxu0 %v2248
    %2346 = vmatpush.bf16.msra.mxu0 %v2244
    %2347 = vmatpush.bf16.msra.mxu0 %v2240
    %2348 = vmatmul.bf16.gmra.mxu0 %v1862
    %v2349 = vpop.f32.mrf.mxu0
    %v2350 = vadd.f32 0.0, %v2349
    %v2351 = vpop.f32.mrf.mxu0
    %2352 = vdwg.mxu0
    %v2353 = vld [vmem:[#allocation2 + $0x40] sm:$0xff]
    %v2354 = vld [vmem:[#allocation2 + $0x48] sm:$0xff]
    %v2355 = vld [vmem:[#allocation2 + $0x50] sm:$0xff]
    %v2356 = vld [vmem:[#allocation2 + $0x58] sm:$0xff]
    %v2357 = vadd.f32 %v2353, %v2067
    %v2358 = vadd.f32 %v2354, %v2080
    %v2359 = vadd.f32 %v2355, %v2093
    %v2360 = vadd.f32 %v2356, %v2106
    %v2361 = vxor.u32 %v2357, 2147483648
    %v2362 = vmul.f32 %v2361, 1.442695
    %v2363 = vpow.pop %v2362
    %v2364 = vadd.f32 %v2363, 1.0
    %v2365 = vrcp.pop %v2364
    %v2366 = vmul.f32 %v2364, %v2365
    %v2367 = vsub.f32 1.0, %v2366
    %v2368 = vmul.f32 %v2365, %v2367
    %v2369 = vadd.f32 %v2365, %v2368
    %vm2370 = vweird.f32 %v2364
    %vm2371 = vweird.f32 %v2365
    %vm2372 = vmor %vm2370, %vm2371
    %v2373 = vsel %vm2372, %v2365, %v2369
    %v2374 = vand.u32 2147483647, %v2364
    %vm2375 = vcmp.eq.f32.partialorder %v2374, 8.507059e+37
    %v2376 = vand.u32 %v2364, 2147483648
    %v2377 = vor.u32 1.1754944e-38, %v2376
    %v2378 = vsel %vm2375, %v2377, %v2373
    %v2379 = vmul.f32 1.0, %v2378
    %v2380 = vxor.u32 %v2358, 2147483648
    %v2381 = vmul.f32 %v2380, 1.442695
    %v2382 = vpow.pop %v2381
    %v2383 = vadd.f32 %v2382, 1.0
    %v2384 = vrcp.pop %v2383
    %v2385 = vmul.f32 %v2383, %v2384
    %v2386 = vsub.f32 1.0, %v2385
    %v2387 = vmul.f32 %v2384, %v2386
    %v2388 = vadd.f32 %v2384, %v2387
    %vm2389 = vweird.f32 %v2383
    %vm2390 = vweird.f32 %v2384
    %vm2391 = vmor %vm2389, %vm2390
    %v2392 = vsel %vm2391, %v2384, %v2388
    %v2393 = vand.u32 2147483647, %v2383
    %vm2394 = vcmp.eq.f32.partialorder %v2393, 8.507059e+37
    %v2395 = vand.u32 %v2383, 2147483648
    %v2396 = vor.u32 1.1754944e-38, %v2395
    %v2397 = vsel %vm2394, %v2396, %v2392
    %v2398 = vmul.f32 1.0, %v2397
    %v2399 = vtanh.pop %v2359
    %v2400 = vxor.u32 %v2360, 2147483648
    %v2401 = vmul.f32 %v2400, 1.442695
    %v2402 = vpow.pop %v2401
    %v2403 = vadd.f32 %v2402, 1.0
    %v2404 = vrcp.pop %v2403
    %v2405 = vmul.f32 %v2403, %v2404
    %v2406 = vsub.f32 1.0, %v2405
    %v2407 = vmul.f32 %v2404, %v2406
    %v2408 = vadd.f32 %v2404, %v2407
    %vm2409 = vweird.f32 %v2403
    %vm2410 = vweird.f32 %v2404
    %vm2411 = vmor %vm2409, %vm2410
    %v2412 = vsel %vm2411, %v2404, %v2408
    %v2413 = vand.u32 2147483647, %v2403
    %vm2414 = vcmp.eq.f32.partialorder %v2413, 8.507059e+37
    %v2415 = vand.u32 %v2403, 2147483648
    %v2416 = vor.u32 1.1754944e-38, %v2415
    %v2417 = vsel %vm2414, %v2416, %v2412
    %v2418 = vmul.f32 1.0, %v2417
    %v2419 = vmul.f32 %v2398, %v1787
    %v2420 = vmul.f32 %v2379, %v2399
    %v2421 = vadd.f32 %v2419, %v2420
    %v2422 = vtanh.pop %v2421
    %v2423 = vmul.f32 %v2418, %v2422
    %v2424 = vld [vmem:[#allocation3 + $0xa0] sm:$0xff]
    %v2425 = vld [vmem:[#allocation3 + $0xa8] sm:$0xff]
    %v2426 = vld [vmem:[#allocation3 + $0xb0] sm:$0xff]
    %v2427 = vld [vmem:[#allocation3 + $0xb8] sm:$0xff]
    %v2428 = vadd.f32 %v2424, %v2311
    %v2429 = vadd.f32 %v2425, %v2324
    %v2430 = vadd.f32 %v2426, %v2337
    %v2431 = vadd.f32 %v2427, %v2350
    %v2432 = vxor.u32 %v2428, 2147483648
    %v2433 = vmul.f32 %v2432, 1.442695
    %v2434 = vpow.pop %v2433
    %v2435 = vadd.f32 %v2434, 1.0
    %v2436 = vrcp.pop %v2435
    %v2437 = vmul.f32 %v2435, %v2436
    %v2438 = vsub.f32 1.0, %v2437
    %v2439 = vmul.f32 %v2436, %v2438
    %v2440 = vadd.f32 %v2436, %v2439
    %vm2441 = vweird.f32 %v2435
    %vm2442 = vweird.f32 %v2436
    %vm2443 = vmor %vm2441, %vm2442
    %v2444 = vsel %vm2443, %v2436, %v2440
    %v2445 = vand.u32 2147483647, %v2435
    %vm2446 = vcmp.eq.f32.partialorder %v2445, 8.507059e+37
    %v2447 = vand.u32 %v2435, 2147483648
    %v2448 = vor.u32 1.1754944e-38, %v2447
    %v2449 = vsel %vm2446, %v2448, %v2444
    %v2450 = vmul.f32 1.0, %v2449
    %v2451 = vxor.u32 %v2429, 2147483648
    %v2452 = vmul.f32 %v2451, 1.442695
    %v2453 = vpow.pop %v2452
    %v2454 = vadd.f32 %v2453, 1.0
    %v2455 = vrcp.pop %v2454
    %v2456 = vmul.f32 %v2454, %v2455
    %v2457 = vsub.f32 1.0, %v2456
    %v2458 = vmul.f32 %v2455, %v2457
    %v2459 = vadd.f32 %v2455, %v2458
    %vm2460 = vweird.f32 %v2454
    %vm2461 = vweird.f32 %v2455
    %vm2462 = vmor %vm2460, %vm2461
    %v2463 = vsel %vm2462, %v2455, %v2459
    %v2464 = vand.u32 2147483647, %v2454
    %vm2465 = vcmp.eq.f32.partialorder %v2464, 8.507059e+37
    %v2466 = vand.u32 %v2454, 2147483648
    %v2467 = vor.u32 1.1754944e-38, %v2466
    %v2468 = vsel %vm2465, %v2467, %v2463
    %v2469 = vmul.f32 1.0, %v2468
    %v2470 = vtanh.pop %v2430
    %v2471 = vxor.u32 %v2431, 2147483648
    %v2472 = vmul.f32 %v2471, 1.442695
    %v2473 = vpow.pop %v2472
    %v2474 = vadd.f32 %v2473, 1.0
    %v2475 = vrcp.pop %v2474
    %v2476 = vmul.f32 %v2474, %v2475
    %v2477 = vsub.f32 1.0, %v2476
    %v2478 = vmul.f32 %v2475, %v2477
    %v2479 = vadd.f32 %v2475, %v2478
    %vm2480 = vweird.f32 %v2474
    %vm2481 = vweird.f32 %v2475
    %vm2482 = vmor %vm2480, %vm2481
    %v2483 = vsel %vm2482, %v2475, %v2479
    %v2484 = vand.u32 2147483647, %v2474
    %vm2485 = vcmp.eq.f32.partialorder %v2484, 8.507059e+37
    %v2486 = vand.u32 %v2474, 2147483648
    %v2487 = vor.u32 1.1754944e-38, %v2486
    %v2488 = vsel %vm2485, %v2487, %v2483
    %v2489 = vmul.f32 1.0, %v2488
    %v2490 = vmul.f32 %v2469, %v1858
    %v2491 = vmul.f32 %v2450, %v2470
    %v2492 = vadd.f32 %v2490, %v2491
    %v2493 = vtanh.pop %v2492
    %v2494 = vmul.f32 %v2489, %v2493
    %v2495 = vpack.c.bf16 %v2423, %v2423
    %v2496 = vpack.c.bf16 %v2494, %v2494
    %2497 = vst [vmem:[#allocation4 + $0x10] sm:$0xf] %v2495
    %2498 = vst [vmem:[#allocation4 + $0x2c] sm:$0xf] %v2496
    %v2499 = vld [vmem:[#allocation9] sm:$0xff]
    %v2500 = vld [vmem:[#allocation9 + $0x8] sm:$0xff]
    %v2501 = vld [vmem:[#allocation9 + $0x10] sm:$0xff]
    %v2502 = vld [vmem:[#allocation9 + $0x18] sm:$0xff]
    %v2503 = vld [vmem:[#allocation9 + $0x20] sm:$0xff]
    %v2504 = vld [vmem:[#allocation9 + $0x28] sm:$0xff]
    %v2505 = vld [vmem:[#allocation9 + $0x30] sm:$0xff]
    %v2506 = vld [vmem:[#allocation9 + $0x38] sm:$0xff]
    %v2507 = vld [vmem:[#allocation9 + $0x40] sm:$0xff]
    %v2508 = vld [vmem:[#allocation9 + $0x48] sm:$0xff]
    %v2509 = vld [vmem:[#allocation9 + $0x50] sm:$0xff]
    %v2510 = vld [vmem:[#allocation9 + $0x58] sm:$0xff]
    %v2511 = vld [vmem:[#allocation9 + $0x60] sm:$0xff]
    %v2512 = vld [vmem:[#allocation9 + $0x68] sm:$0xff]
    %v2513 = vld [vmem:[#allocation9 + $0x70] sm:$0xff]
    %v2514 = vld [vmem:[#allocation9 + $0x78] sm:$0xff]
    %v2515 = vld [vmem:[#allocation9 + $0x80] sm:$0xff]
    %v2516 = vld [vmem:[#allocation9 + $0x88] sm:$0xff]
    %v2517 = vld [vmem:[#allocation9 + $0x90] sm:$0xff]
    %v2518 = vld [vmem:[#allocation9 + $0x98] sm:$0xff]
    %v2519 = vld [vmem:[#allocation9 + $0xa0] sm:$0xff]
    %v2520 = vld [vmem:[#allocation9 + $0xa8] sm:$0xff]
    %v2521 = vld [vmem:[#allocation9 + $0xb0] sm:$0xff]
    %v2522 = vld [vmem:[#allocation9 + $0xb8] sm:$0xff]
    %v2523 = vld [vmem:[#allocation9 + $0xc0] sm:$0xff]
    %v2524 = vld [vmem:[#allocation9 + $0xc8] sm:$0xff]
    %v2525 = vld [vmem:[#allocation9 + $0xd0] sm:$0xff]
    %v2526 = vld [vmem:[#allocation9 + $0xd8] sm:$0xff]
    %v2527 = vld [vmem:[#allocation9 + $0xe0] sm:$0xff]
    %v2528 = vld [vmem:[#allocation9 + $0xe8] sm:$0xff]
    %v2529 = vld [vmem:[#allocation9 + $0xf0] sm:$0xff]
    %v2530 = vld [vmem:[#allocation9 + $0xf8] sm:$0xff]
    %v2563 = vunpack.c.l.b16 %v2499
    %v2564 = vunpack.c.h.b16 %v2499
    %v2565 = vunpack.c.l.b16 %v2500
    %v2566 = vunpack.c.h.b16 %v2500
    %v2567 = vunpack.c.l.b16 %v2501
    %v2568 = vunpack.c.h.b16 %v2501
    %v2569 = vunpack.c.l.b16 %v2502
    %v2570 = vunpack.c.h.b16 %v2502
    %v2571 = vunpack.c.l.b16 %v2503
    %v2572 = vunpack.c.h.b16 %v2503
    %v2573 = vunpack.c.l.b16 %v2504
    %v2574 = vunpack.c.h.b16 %v2504
    %v2575 = vunpack.c.l.b16 %v2505
    %v2576 = vunpack.c.h.b16 %v2505
    %v2577 = vunpack.c.l.b16 %v2506
    %v2578 = vunpack.c.h.b16 %v2506
    %v2579 = vunpack.c.l.b16 %v2507
    %v2580 = vunpack.c.h.b16 %v2507
    %v2581 = vunpack.c.l.b16 %v2508
    %v2582 = vunpack.c.h.b16 %v2508
    %v2583 = vunpack.c.l.b16 %v2509
    %v2584 = vunpack.c.h.b16 %v2509
    %v2585 = vunpack.c.l.b16 %v2510
    %v2586 = vunpack.c.h.b16 %v2510
    %v2587 = vunpack.c.l.b16 %v2511
    %v2588 = vunpack.c.h.b16 %v2511
    %v2589 = vunpack.c.l.b16 %v2512
    %v2590 = vunpack.c.h.b16 %v2512
    %v2591 = vunpack.c.l.b16 %v2513
    %v2592 = vunpack.c.h.b16 %v2513
    %v2593 = vunpack.c.l.b16 %v2514
    %v2594 = vunpack.c.h.b16 %v2514
    %v2595 = vunpack.c.l.b16 %v2515
    %v2596 = vunpack.c.h.b16 %v2515
    %v2597 = vunpack.c.l.b16 %v2516
    %v2598 = vunpack.c.h.b16 %v2516
    %v2599 = vunpack.c.l.b16 %v2517
    %v2600 = vunpack.c.h.b16 %v2517
    %v2601 = vunpack.c.l.b16 %v2518
    %v2602 = vunpack.c.h.b16 %v2518
    %v2603 = vunpack.c.l.b16 %v2519
    %v2604 = vunpack.c.h.b16 %v2519
    %v2605 = vunpack.c.l.b16 %v2520
    %v2606 = vunpack.c.h.b16 %v2520
    %v2607 = vunpack.c.l.b16 %v2521
    %v2608 = vunpack.c.h.b16 %v2521
    %v2609 = vunpack.c.l.b16 %v2522
    %v2610 = vunpack.c.h.b16 %v2522
    %v2611 = vunpack.c.l.b16 %v2523
    %v2612 = vunpack.c.h.b16 %v2523
    %v2613 = vunpack.c.l.b16 %v2524
    %v2614 = vunpack.c.h.b16 %v2524
    %v2615 = vunpack.c.l.b16 %v2525
    %v2616 = vunpack.c.h.b16 %v2525
    %v2617 = vunpack.c.l.b16 %v2526
    %v2618 = vunpack.c.h.b16 %v2526
    %v2619 = vunpack.c.l.b16 %v2527
    %v2620 = vunpack.c.h.b16 %v2527
    %v2621 = vunpack.c.l.b16 %v2528
    %v2622 = vunpack.c.h.b16 %v2528
    %v2623 = vunpack.c.l.b16 %v2529
    %v2624 = vunpack.c.h.b16 %v2529
    %v2625 = vunpack.c.l.b16 %v2530
    %v2626 = vunpack.c.h.b16 %v2530
    %v2627 = vpack.c.b16 %v2567, %v2563
    %v2628 = vpack.c.b16 %v2568, %v2564
    %v2629 = vpack.c.b16 %v2569, %v2565
    %v2630 = vpack.c.b16 %v2570, %v2566
    %v2631 = vpack.c.b16 %v2575, %v2571
    %v2632 = vpack.c.b16 %v2576, %v2572
    %v2633 = vpack.c.b16 %v2577, %v2573
    %v2634 = vpack.c.b16 %v2578, %v2574
    %v2635 = vpack.c.b16 %v2583, %v2579
    %v2636 = vpack.c.b16 %v2584, %v2580
    %v2637 = vpack.c.b16 %v2585, %v2581
    %v2638 = vpack.c.b16 %v2586, %v2582
    %v2639 = vpack.c.b16 %v2591, %v2587
    %v2640 = vpack.c.b16 %v2592, %v2588
    %v2641 = vpack.c.b16 %v2593, %v2589
    %v2642 = vpack.c.b16 %v2594, %v2590
    %v2643 = vpack.c.b16 %v2599, %v2595
    %v2644 = vpack.c.b16 %v2600, %v2596
    %v2645 = vpack.c.b16 %v2601, %v2597
    %v2646 = vpack.c.b16 %v2602, %v2598
    %v2647 = vpack.c.b16 %v2607, %v2603
    %v2648 = vpack.c.b16 %v2608, %v2604
    %v2649 = vpack.c.b16 %v2609, %v2605
    %v2650 = vpack.c.b16 %v2610, %v2606
    %v2651 = vpack.c.b16 %v2615, %v2611
    %v2652 = vpack.c.b16 %v2616, %v2612
    %v2653 = vpack.c.b16 %v2617, %v2613
    %v2654 = vpack.c.b16 %v2618, %v2614
    %v2655 = vpack.c.b16 %v2623, %v2619
    %v2656 = vpack.c.b16 %v2624, %v2620
    %v2657 = vpack.c.b16 %v2625, %v2621
    %v2658 = vpack.c.b16 %v2626, %v2622
    %2691 = vmatpush.bf16.msra.mxu0 %v2655
    %2692 = vmatpush.bf16.msra.mxu0 %v2651
    %2693 = vmatpush.bf16.msra.mxu0 %v2647
    %2694 = vmatpush.bf16.msra.mxu0 %v2643
    %2695 = vmatpush.bf16.msra.mxu0 %v2639
    %2696 = vmatpush.bf16.msra.mxu0 %v2635
    %2697 = vmatpush.bf16.msra.mxu0 %v2631
    %2698 = vmatpush.bf16.msra.mxu0 %v2627
    %2699 = vmatmul.bf16.gmra.mxu0 %v2495
    %v2700 = vpop.f32.mrf.mxu0
    %v2701 = vadd.f32 0.0, %v2700
    %v2702 = vpop.f32.mrf.mxu0
    %2703 = vdwg.mxu0
    %2704 = vmatpush.bf16.msra.mxu0 %v2656
    %2705 = vmatpush.bf16.msra.mxu0 %v2652
    %2706 = vmatpush.bf16.msra.mxu0 %v2648
    %2707 = vmatpush.bf16.msra.mxu0 %v2644
    %2708 = vmatpush.bf16.msra.mxu0 %v2640
    %2709 = vmatpush.bf16.msra.mxu0 %v2636
    %2710 = vmatpush.bf16.msra.mxu0 %v2632
    %2711 = vmatpush.bf16.msra.mxu0 %v2628
    %2712 = vmatmul.bf16.gmra.mxu0 %v2495
    %v2713 = vpop.f32.mrf.mxu0
    %v2714 = vadd.f32 0.0, %v2713
    %v2715 = vpop.f32.mrf.mxu0
    %2716 = vdwg.mxu0
    %2717 = vmatpush.bf16.msra.mxu0 %v2657
    %2718 = vmatpush.bf16.msra.mxu0 %v2653
    %2719 = vmatpush.bf16.msra.mxu0 %v2649
    %2720 = vmatpush.bf16.msra.mxu0 %v2645
    %2721 = vmatpush.bf16.msra.mxu0 %v2641
    %2722 = vmatpush.bf16.msra.mxu0 %v2637
    %2723 = vmatpush.bf16.msra.mxu0 %v2633
    %2724 = vmatpush.bf16.msra.mxu0 %v2629
    %2725 = vmatmul.bf16.gmra.mxu0 %v2495
    %v2726 = vpop.f32.mrf.mxu0
    %v2727 = vadd.f32 0.0, %v2726
    %v2728 = vpop.f32.mrf.mxu0
    %2729 = vdwg.mxu0
    %2730 = vmatpush.bf16.msra.mxu0 %v2658
    %2731 = vmatpush.bf16.msra.mxu0 %v2654
    %2732 = vmatpush.bf16.msra.mxu0 %v2650
    %2733 = vmatpush.bf16.msra.mxu0 %v2646
    %2734 = vmatpush.bf16.msra.mxu0 %v2642
    %2735 = vmatpush.bf16.msra.mxu0 %v2638
    %2736 = vmatpush.bf16.msra.mxu0 %v2634
    %2737 = vmatpush.bf16.msra.mxu0 %v2630
    %2738 = vmatmul.bf16.gmra.mxu0 %v2495
    %v2739 = vpop.f32.mrf.mxu0
    %v2740 = vadd.f32 0.0, %v2739
    %v2741 = vpop.f32.mrf.mxu0
    %2742 = vdwg.mxu0
    %v2743 = vld [vmem:[#allocation10] sm:$0xff]
    %v2744 = vld [vmem:[#allocation10 + $0x8] sm:$0xff]
    %v2745 = vld [vmem:[#allocation10 + $0x10] sm:$0xff]
    %v2746 = vld [vmem:[#allocation10 + $0x18] sm:$0xff]
    %v2747 = vld [vmem:[#allocation10 + $0x20] sm:$0xff]
    %v2748 = vld [vmem:[#allocation10 + $0x28] sm:$0xff]
    %v2749 = vld [vmem:[#allocation10 + $0x30] sm:$0xff]
    %v2750 = vld [vmem:[#allocation10 + $0x38] sm:$0xff]
    %v2751 = vld [vmem:[#allocation10 + $0x40] sm:$0xff]
    %v2752 = vld [vmem:[#allocation10 + $0x48] sm:$0xff]
    %v2753 = vld [vmem:[#allocation10 + $0x50] sm:$0xff]
    %v2754 = vld [vmem:[#allocation10 + $0x58] sm:$0xff]
    %v2755 = vld [vmem:[#allocation10 + $0x60] sm:$0xff]
    %v2756 = vld [vmem:[#allocation10 + $0x68] sm:$0xff]
    %v2757 = vld [vmem:[#allocation10 + $0x70] sm:$0xff]
    %v2758 = vld [vmem:[#allocation10 + $0x78] sm:$0xff]
    %v2759 = vld [vmem:[#allocation10 + $0x80] sm:$0xff]
    %v2760 = vld [vmem:[#allocation10 + $0x88] sm:$0xff]
    %v2761 = vld [vmem:[#allocation10 + $0x90] sm:$0xff]
    %v2762 = vld [vmem:[#allocation10 + $0x98] sm:$0xff]
    %v2763 = vld [vmem:[#allocation10 + $0xa0] sm:$0xff]
    %v2764 = vld [vmem:[#allocation10 + $0xa8] sm:$0xff]
    %v2765 = vld [vmem:[#allocation10 + $0xb0] sm:$0xff]
    %v2766 = vld [vmem:[#allocation10 + $0xb8] sm:$0xff]
    %v2767 = vld [vmem:[#allocation10 + $0xc0] sm:$0xff]
    %v2768 = vld [vmem:[#allocation10 + $0xc8] sm:$0xff]
    %v2769 = vld [vmem:[#allocation10 + $0xd0] sm:$0xff]
    %v2770 = vld [vmem:[#allocation10 + $0xd8] sm:$0xff]
    %v2771 = vld [vmem:[#allocation10 + $0xe0] sm:$0xff]
    %v2772 = vld [vmem:[#allocation10 + $0xe8] sm:$0xff]
    %v2773 = vld [vmem:[#allocation10 + $0xf0] sm:$0xff]
    %v2774 = vld [vmem:[#allocation10 + $0xf8] sm:$0xff]
    %v2807 = vunpack.c.l.b16 %v2743
    %v2808 = vunpack.c.h.b16 %v2743
    %v2809 = vunpack.c.l.b16 %v2744
    %v2810 = vunpack.c.h.b16 %v2744
    %v2811 = vunpack.c.l.b16 %v2745
    %v2812 = vunpack.c.h.b16 %v2745
    %v2813 = vunpack.c.l.b16 %v2746
    %v2814 = vunpack.c.h.b16 %v2746
    %v2815 = vunpack.c.l.b16 %v2747
    %v2816 = vunpack.c.h.b16 %v2747
    %v2817 = vunpack.c.l.b16 %v2748
    %v2818 = vunpack.c.h.b16 %v2748
    %v2819 = vunpack.c.l.b16 %v2749
    %v2820 = vunpack.c.h.b16 %v2749
    %v2821 = vunpack.c.l.b16 %v2750
    %v2822 = vunpack.c.h.b16 %v2750
    %v2823 = vunpack.c.l.b16 %v2751
    %v2824 = vunpack.c.h.b16 %v2751
    %v2825 = vunpack.c.l.b16 %v2752
    %v2826 = vunpack.c.h.b16 %v2752
    %v2827 = vunpack.c.l.b16 %v2753
    %v2828 = vunpack.c.h.b16 %v2753
    %v2829 = vunpack.c.l.b16 %v2754
    %v2830 = vunpack.c.h.b16 %v2754
    %v2831 = vunpack.c.l.b16 %v2755
    %v2832 = vunpack.c.h.b16 %v2755
    %v2833 = vunpack.c.l.b16 %v2756
    %v2834 = vunpack.c.h.b16 %v2756
    %v2835 = vunpack.c.l.b16 %v2757
    %v2836 = vunpack.c.h.b16 %v2757
    %v2837 = vunpack.c.l.b16 %v2758
    %v2838 = vunpack.c.h.b16 %v2758
    %v2839 = vunpack.c.l.b16 %v2759
    %v2840 = vunpack.c.h.b16 %v2759
    %v2841 = vunpack.c.l.b16 %v2760
    %v2842 = vunpack.c.h.b16 %v2760
    %v2843 = vunpack.c.l.b16 %v2761
    %v2844 = vunpack.c.h.b16 %v2761
    %v2845 = vunpack.c.l.b16 %v2762
    %v2846 = vunpack.c.h.b16 %v2762
    %v2847 = vunpack.c.l.b16 %v2763
    %v2848 = vunpack.c.h.b16 %v2763
    %v2849 = vunpack.c.l.b16 %v2764
    %v2850 = vunpack.c.h.b16 %v2764
    %v2851 = vunpack.c.l.b16 %v2765
    %v2852 = vunpack.c.h.b16 %v2765
    %v2853 = vunpack.c.l.b16 %v2766
    %v2854 = vunpack.c.h.b16 %v2766
    %v2855 = vunpack.c.l.b16 %v2767
    %v2856 = vunpack.c.h.b16 %v2767
    %v2857 = vunpack.c.l.b16 %v2768
    %v2858 = vunpack.c.h.b16 %v2768
    %v2859 = vunpack.c.l.b16 %v2769
    %v2860 = vunpack.c.h.b16 %v2769
    %v2861 = vunpack.c.l.b16 %v2770
    %v2862 = vunpack.c.h.b16 %v2770
    %v2863 = vunpack.c.l.b16 %v2771
    %v2864 = vunpack.c.h.b16 %v2771
    %v2865 = vunpack.c.l.b16 %v2772
    %v2866 = vunpack.c.h.b16 %v2772
    %v2867 = vunpack.c.l.b16 %v2773
    %v2868 = vunpack.c.h.b16 %v2773
    %v2869 = vunpack.c.l.b16 %v2774
    %v2870 = vunpack.c.h.b16 %v2774
    %v2871 = vpack.c.b16 %v2811, %v2807
    %v2872 = vpack.c.b16 %v2812, %v2808
    %v2873 = vpack.c.b16 %v2813, %v2809
    %v2874 = vpack.c.b16 %v2814, %v2810
    %v2875 = vpack.c.b16 %v2819, %v2815
    %v2876 = vpack.c.b16 %v2820, %v2816
    %v2877 = vpack.c.b16 %v2821, %v2817
    %v2878 = vpack.c.b16 %v2822, %v2818
    %v2879 = vpack.c.b16 %v2827, %v2823
    %v2880 = vpack.c.b16 %v2828, %v2824
    %v2881 = vpack.c.b16 %v2829, %v2825
    %v2882 = vpack.c.b16 %v2830, %v2826
    %v2883 = vpack.c.b16 %v2835, %v2831
    %v2884 = vpack.c.b16 %v2836, %v2832
    %v2885 = vpack.c.b16 %v2837, %v2833
    %v2886 = vpack.c.b16 %v2838, %v2834
    %v2887 = vpack.c.b16 %v2843, %v2839
    %v2888 = vpack.c.b16 %v2844, %v2840
    %v2889 = vpack.c.b16 %v2845, %v2841
    %v2890 = vpack.c.b16 %v2846, %v2842
    %v2891 = vpack.c.b16 %v2851, %v2847
    %v2892 = vpack.c.b16 %v2852, %v2848
    %v2893 = vpack.c.b16 %v2853, %v2849
    %v2894 = vpack.c.b16 %v2854, %v2850
    %v2895 = vpack.c.b16 %v2859, %v2855
    %v2896 = vpack.c.b16 %v2860, %v2856
    %v2897 = vpack.c.b16 %v2861, %v2857
    %v2898 = vpack.c.b16 %v2862, %v2858
    %v2899 = vpack.c.b16 %v2867, %v2863
    %v2900 = vpack.c.b16 %v2868, %v2864
    %v2901 = vpack.c.b16 %v2869, %v2865
    %v2902 = vpack.c.b16 %v2870, %v2866
    %2935 = vmatpush.bf16.msra.mxu0 %v2899
    %2936 = vmatpush.bf16.msra.mxu0 %v2895
    %2937 = vmatpush.bf16.msra.mxu0 %v2891
    %2938 = vmatpush.bf16.msra.mxu0 %v2887
    %2939 = vmatpush.bf16.msra.mxu0 %v2883
    %2940 = vmatpush.bf16.msra.mxu0 %v2879
    %2941 = vmatpush.bf16.msra.mxu0 %v2875
    %2942 = vmatpush.bf16.msra.mxu0 %v2871
    %2943 = vmatmul.bf16.gmra.mxu0 %v2496
    %v2944 = vpop.f32.mrf.mxu0
    %v2945 = vadd.f32 0.0, %v2944
    %v2946 = vpop.f32.mrf.mxu0
    %2947 = vdwg.mxu0
    %2948 = vmatpush.bf16.msra.mxu0 %v2900
    %2949 = vmatpush.bf16.msra.mxu0 %v2896
    %2950 = vmatpush.bf16.msra.mxu0 %v2892
    %2951 = vmatpush.bf16.msra.mxu0 %v2888
    %2952 = vmatpush.bf16.msra.mxu0 %v2884
    %2953 = vmatpush.bf16.msra.mxu0 %v2880
    %2954 = vmatpush.bf16.msra.mxu0 %v2876
    %2955 = vmatpush.bf16.msra.mxu0 %v2872
    %2956 = vmatmul.bf16.gmra.mxu0 %v2496
    %v2957 = vpop.f32.mrf.mxu0
    %v2958 = vadd.f32 0.0, %v2957
    %v2959 = vpop.f32.mrf.mxu0
    %2960 = vdwg.mxu0
    %2961 = vmatpush.bf16.msra.mxu0 %v2901
    %2962 = vmatpush.bf16.msra.mxu0 %v2897
    %2963 = vmatpush.bf16.msra.mxu0 %v2893
    %2964 = vmatpush.bf16.msra.mxu0 %v2889
    %2965 = vmatpush.bf16.msra.mxu0 %v2885
    %2966 = vmatpush.bf16.msra.mxu0 %v2881
    %2967 = vmatpush.bf16.msra.mxu0 %v2877
    %2968 = vmatpush.bf16.msra.mxu0 %v2873
    %2969 = vmatmul.bf16.gmra.mxu0 %v2496
    %v2970 = vpop.f32.mrf.mxu0
    %v2971 = vadd.f32 0.0, %v2970
    %v2972 = vpop.f32.mrf.mxu0
    %2973 = vdwg.mxu0
    %2974 = vmatpush.bf16.msra.mxu0 %v2902
    %2975 = vmatpush.bf16.msra.mxu0 %v2898
    %2976 = vmatpush.bf16.msra.mxu0 %v2894
    %2977 = vmatpush.bf16.msra.mxu0 %v2890
    %2978 = vmatpush.bf16.msra.mxu0 %v2886
    %2979 = vmatpush.bf16.msra.mxu0 %v2882
    %2980 = vmatpush.bf16.msra.mxu0 %v2878
    %2981 = vmatpush.bf16.msra.mxu0 %v2874
    %2982 = vmatmul.bf16.gmra.mxu0 %v2496
    %v2983 = vpop.f32.mrf.mxu0
    %v2984 = vadd.f32 0.0, %v2983
    %v2985 = vpop.f32.mrf.mxu0
    %2986 = vdwg.mxu0
    %v2987 = vld [vmem:[#allocation2 + $0x60] sm:$0xff]
    %v2988 = vld [vmem:[#allocation2 + $0x68] sm:$0xff]
    %v2989 = vld [vmem:[#allocation2 + $0x70] sm:$0xff]
    %v2990 = vld [vmem:[#allocation2 + $0x78] sm:$0xff]
    %v2991 = vadd.f32 %v2987, %v2701
    %v2992 = vadd.f32 %v2988, %v2714
    %v2993 = vadd.f32 %v2989, %v2727
    %v2994 = vadd.f32 %v2990, %v2740
    %v2995 = vxor.u32 %v2991, 2147483648
    %v2996 = vmul.f32 %v2995, 1.442695
    %v2997 = vpow.pop %v2996
    %v2998 = vadd.f32 %v2997, 1.0
    %v2999 = vrcp.pop %v2998
    %v3000 = vmul.f32 %v2998, %v2999
    %v3001 = vsub.f32 1.0, %v3000
    %v3002 = vmul.f32 %v2999, %v3001
    %v3003 = vadd.f32 %v2999, %v3002
    %vm3004 = vweird.f32 %v2998
    %vm3005 = vweird.f32 %v2999
    %vm3006 = vmor %vm3004, %vm3005
    %v3007 = vsel %vm3006, %v2999, %v3003
    %v3008 = vand.u32 2147483647, %v2998
    %vm3009 = vcmp.eq.f32.partialorder %v3008, 8.507059e+37
    %v3010 = vand.u32 %v2998, 2147483648
    %v3011 = vor.u32 1.1754944e-38, %v3010
    %v3012 = vsel %vm3009, %v3011, %v3007
    %v3013 = vmul.f32 1.0, %v3012
    %v3014 = vxor.u32 %v2992, 2147483648
    %v3015 = vmul.f32 %v3014, 1.442695
    %v3016 = vpow.pop %v3015
    %v3017 = vadd.f32 %v3016, 1.0
    %v3018 = vrcp.pop %v3017
    %v3019 = vmul.f32 %v3017, %v3018
    %v3020 = vsub.f32 1.0, %v3019
    %v3021 = vmul.f32 %v3018, %v3020
    %v3022 = vadd.f32 %v3018, %v3021
    %vm3023 = vweird.f32 %v3017
    %vm3024 = vweird.f32 %v3018
    %vm3025 = vmor %vm3023, %vm3024
    %v3026 = vsel %vm3025, %v3018, %v3022
    %v3027 = vand.u32 2147483647, %v3017
    %vm3028 = vcmp.eq.f32.partialorder %v3027, 8.507059e+37
    %v3029 = vand.u32 %v3017, 2147483648
    %v3030 = vor.u32 1.1754944e-38, %v3029
    %v3031 = vsel %vm3028, %v3030, %v3026
    %v3032 = vmul.f32 1.0, %v3031
    %v3033 = vtanh.pop %v2993
    %v3034 = vxor.u32 %v2994, 2147483648
    %v3035 = vmul.f32 %v3034, 1.442695
    %v3036 = vpow.pop %v3035
    %v3037 = vadd.f32 %v3036, 1.0
    %v3038 = vrcp.pop %v3037
    %v3039 = vmul.f32 %v3037, %v3038
    %v3040 = vsub.f32 1.0, %v3039
    %v3041 = vmul.f32 %v3038, %v3040
    %v3042 = vadd.f32 %v3038, %v3041
    %vm3043 = vweird.f32 %v3037
    %vm3044 = vweird.f32 %v3038
    %vm3045 = vmor %vm3043, %vm3044
    %v3046 = vsel %vm3045, %v3038, %v3042
    %v3047 = vand.u32 2147483647, %v3037
    %vm3048 = vcmp.eq.f32.partialorder %v3047, 8.507059e+37
    %v3049 = vand.u32 %v3037, 2147483648
    %v3050 = vor.u32 1.1754944e-38, %v3049
    %v3051 = vsel %vm3048, %v3050, %v3046
    %v3052 = vmul.f32 1.0, %v3051
    %v3053 = vmul.f32 %v3032, %v2421
    %v3054 = vmul.f32 %v3013, %v3033
    %v3055 = vadd.f32 %v3053, %v3054
    %v3056 = vtanh.pop %v3055
    %v3057 = vmul.f32 %v3052, %v3056
    %v3058 = vld [vmem:[#allocation3 + $0x80] sm:$0xff]
    %v3059 = vld [vmem:[#allocation3 + $0x88] sm:$0xff]
    %v3060 = vld [vmem:[#allocation3 + $0x90] sm:$0xff]
    %v3061 = vld [vmem:[#allocation3 + $0x98] sm:$0xff]
    %v3062 = vadd.f32 %v3058, %v2945
    %v3063 = vadd.f32 %v3059, %v2958
    %v3064 = vadd.f32 %v3060, %v2971
    %v3065 = vadd.f32 %v3061, %v2984
    %v3066 = vxor.u32 %v3062, 2147483648
    %v3067 = vmul.f32 %v3066, 1.442695
    %v3068 = vpow.pop %v3067
    %v3069 = vadd.f32 %v3068, 1.0
    %v3070 = vrcp.pop %v3069
    %v3071 = vmul.f32 %v3069, %v3070
    %v3072 = vsub.f32 1.0, %v3071
    %v3073 = vmul.f32 %v3070, %v3072
    %v3074 = vadd.f32 %v3070, %v3073
    %vm3075 = vweird.f32 %v3069
    %vm3076 = vweird.f32 %v3070
    %vm3077 = vmor %vm3075, %vm3076
    %v3078 = vsel %vm3077, %v3070, %v3074
    %v3079 = vand.u32 2147483647, %v3069
    %vm3080 = vcmp.eq.f32.partialorder %v3079, 8.507059e+37
    %v3081 = vand.u32 %v3069, 2147483648
    %v3082 = vor.u32 1.1754944e-38, %v3081
    %v3083 = vsel %vm3080, %v3082, %v3078
    %v3084 = vmul.f32 1.0, %v3083
    %v3085 = vxor.u32 %v3063, 2147483648
    %v3086 = vmul.f32 %v3085, 1.442695
    %v3087 = vpow.pop %v3086
    %v3088 = vadd.f32 %v3087, 1.0
    %v3089 = vrcp.pop %v3088
    %v3090 = vmul.f32 %v3088, %v3089
    %v3091 = vsub.f32 1.0, %v3090
    %v3092 = vmul.f32 %v3089, %v3091
    %v3093 = vadd.f32 %v3089, %v3092
    %vm3094 = vweird.f32 %v3088
    %vm3095 = vweird.f32 %v3089
    %vm3096 = vmor %vm3094, %vm3095
    %v3097 = vsel %vm3096, %v3089, %v3093
    %v3098 = vand.u32 2147483647, %v3088
    %vm3099 = vcmp.eq.f32.partialorder %v3098, 8.507059e+37
    %v3100 = vand.u32 %v3088, 2147483648
    %v3101 = vor.u32 1.1754944e-38, %v3100
    %v3102 = vsel %vm3099, %v3101, %v3097
    %v3103 = vmul.f32 1.0, %v3102
    %v3104 = vtanh.pop %v3064
    %v3105 = vxor.u32 %v3065, 2147483648
    %v3106 = vmul.f32 %v3105, 1.442695
    %v3107 = vpow.pop %v3106
    %v3108 = vadd.f32 %v3107, 1.0
    %v3109 = vrcp.pop %v3108
    %v3110 = vmul.f32 %v3108, %v3109
    %v3111 = vsub.f32 1.0, %v3110
    %v3112 = vmul.f32 %v3109, %v3111
    %v3113 = vadd.f32 %v3109, %v3112
    %vm3114 = vweird.f32 %v3108
    %vm3115 = vweird.f32 %v3109
    %vm3116 = vmor %vm3114, %vm3115
    %v3117 = vsel %vm3116, %v3109, %v3113
    %v3118 = vand.u32 2147483647, %v3108
    %vm3119 = vcmp.eq.f32.partialorder %v3118, 8.507059e+37
    %v3120 = vand.u32 %v3108, 2147483648
    %v3121 = vor.u32 1.1754944e-38, %v3120
    %v3122 = vsel %vm3119, %v3121, %v3117
    %v3123 = vmul.f32 1.0, %v3122
    %v3124 = vmul.f32 %v3103, %v2492
    %v3125 = vmul.f32 %v3084, %v3104
    %v3126 = vadd.f32 %v3124, %v3125
    %v3127 = vtanh.pop %v3126
    %v3128 = vmul.f32 %v3123, %v3127
    %v3129 = vpack.c.bf16 %v3057, %v3057
    %v3130 = vpack.c.bf16 %v3128, %v3128
    %3131 = vst [vmem:[#allocation4 + $0x18] sm:$0xf] %v3129
    %3132 = vst [vmem:[#allocation4 + $0x24] sm:$0xf] %v3130
    %v3133 = vld [vmem:[#allocation9] sm:$0xff]
    %v3134 = vld [vmem:[#allocation9 + $0x8] sm:$0xff]
    %v3135 = vld [vmem:[#allocation9 + $0x10] sm:$0xff]
    %v3136 = vld [vmem:[#allocation9 + $0x18] sm:$0xff]
    %v3137 = vld [vmem:[#allocation9 + $0x20] sm:$0xff]
    %v3138 = vld [vmem:[#allocation9 + $0x28] sm:$0xff]
    %v3139 = vld [vmem:[#allocation9 + $0x30] sm:$0xff]
    %v3140 = vld [vmem:[#allocation9 + $0x38] sm:$0xff]
    %v3141 = vld [vmem:[#allocation9 + $0x40] sm:$0xff]
    %v3142 = vld [vmem:[#allocation9 + $0x48] sm:$0xff]
    %v3143 = vld [vmem:[#allocation9 + $0x50] sm:$0xff]
    %v3144 = vld [vmem:[#allocation9 + $0x58] sm:$0xff]
    %v3145 = vld [vmem:[#allocation9 + $0x60] sm:$0xff]
    %v3146 = vld [vmem:[#allocation9 + $0x68] sm:$0xff]
    %v3147 = vld [vmem:[#allocation9 + $0x70] sm:$0xff]
    %v3148 = vld [vmem:[#allocation9 + $0x78] sm:$0xff]
    %v3149 = vld [vmem:[#allocation9 + $0x80] sm:$0xff]
    %v3150 = vld [vmem:[#allocation9 + $0x88] sm:$0xff]
    %v3151 = vld [vmem:[#allocation9 + $0x90] sm:$0xff]
    %v3152 = vld [vmem:[#allocation9 + $0x98] sm:$0xff]
    %v3153 = vld [vmem:[#allocation9 + $0xa0] sm:$0xff]
    %v3154 = vld [vmem:[#allocation9 + $0xa8] sm:$0xff]
    %v3155 = vld [vmem:[#allocation9 + $0xb0] sm:$0xff]
    %v3156 = vld [vmem:[#allocation9 + $0xb8] sm:$0xff]
    %v3157 = vld [vmem:[#allocation9 + $0xc0] sm:$0xff]
    %v3158 = vld [vmem:[#allocation9 + $0xc8] sm:$0xff]
    %v3159 = vld [vmem:[#allocation9 + $0xd0] sm:$0xff]
    %v3160 = vld [vmem:[#allocation9 + $0xd8] sm:$0xff]
    %v3161 = vld [vmem:[#allocation9 + $0xe0] sm:$0xff]
    %v3162 = vld [vmem:[#allocation9 + $0xe8] sm:$0xff]
    %v3163 = vld [vmem:[#allocation9 + $0xf0] sm:$0xff]
    %v3164 = vld [vmem:[#allocation9 + $0xf8] sm:$0xff]
    %v3197 = vunpack.c.l.b16 %v3133
    %v3198 = vunpack.c.h.b16 %v3133
    %v3199 = vunpack.c.l.b16 %v3134
    %v3200 = vunpack.c.h.b16 %v3134
    %v3201 = vunpack.c.l.b16 %v3135
    %v3202 = vunpack.c.h.b16 %v3135
    %v3203 = vunpack.c.l.b16 %v3136
    %v3204 = vunpack.c.h.b16 %v3136
    %v3205 = vunpack.c.l.b16 %v3137
    %v3206 = vunpack.c.h.b16 %v3137
    %v3207 = vunpack.c.l.b16 %v3138
    %v3208 = vunpack.c.h.b16 %v3138
    %v3209 = vunpack.c.l.b16 %v3139
    %v3210 = vunpack.c.h.b16 %v3139
    %v3211 = vunpack.c.l.b16 %v3140
    %v3212 = vunpack.c.h.b16 %v3140
    %v3213 = vunpack.c.l.b16 %v3141
    %v3214 = vunpack.c.h.b16 %v3141
    %v3215 = vunpack.c.l.b16 %v3142
    %v3216 = vunpack.c.h.b16 %v3142
    %v3217 = vunpack.c.l.b16 %v3143
    %v3218 = vunpack.c.h.b16 %v3143
    %v3219 = vunpack.c.l.b16 %v3144
    %v3220 = vunpack.c.h.b16 %v3144
    %v3221 = vunpack.c.l.b16 %v3145
    %v3222 = vunpack.c.h.b16 %v3145
    %v3223 = vunpack.c.l.b16 %v3146
    %v3224 = vunpack.c.h.b16 %v3146
    %v3225 = vunpack.c.l.b16 %v3147
    %v3226 = vunpack.c.h.b16 %v3147
    %v3227 = vunpack.c.l.b16 %v3148
    %v3228 = vunpack.c.h.b16 %v3148
    %v3229 = vunpack.c.l.b16 %v3149
    %v3230 = vunpack.c.h.b16 %v3149
    %v3231 = vunpack.c.l.b16 %v3150
    %v3232 = vunpack.c.h.b16 %v3150
    %v3233 = vunpack.c.l.b16 %v3151
    %v3234 = vunpack.c.h.b16 %v3151
    %v3235 = vunpack.c.l.b16 %v3152
    %v3236 = vunpack.c.h.b16 %v3152
    %v3237 = vunpack.c.l.b16 %v3153
    %v3238 = vunpack.c.h.b16 %v3153
    %v3239 = vunpack.c.l.b16 %v3154
    %v3240 = vunpack.c.h.b16 %v3154
    %v3241 = vunpack.c.l.b16 %v3155
    %v3242 = vunpack.c.h.b16 %v3155
    %v3243 = vunpack.c.l.b16 %v3156
    %v3244 = vunpack.c.h.b16 %v3156
    %v3245 = vunpack.c.l.b16 %v3157
    %v3246 = vunpack.c.h.b16 %v3157
    %v3247 = vunpack.c.l.b16 %v3158
    %v3248 = vunpack.c.h.b16 %v3158
    %v3249 = vunpack.c.l.b16 %v3159
    %v3250 = vunpack.c.h.b16 %v3159
    %v3251 = vunpack.c.l.b16 %v3160
    %v3252 = vunpack.c.h.b16 %v3160
    %v3253 = vunpack.c.l.b16 %v3161
    %v3254 = vunpack.c.h.b16 %v3161
    %v3255 = vunpack.c.l.b16 %v3162
    %v3256 = vunpack.c.h.b16 %v3162
    %v3257 = vunpack.c.l.b16 %v3163
    %v3258 = vunpack.c.h.b16 %v3163
    %v3259 = vunpack.c.l.b16 %v3164
    %v3260 = vunpack.c.h.b16 %v3164
    %v3261 = vpack.c.b16 %v3201, %v3197
    %v3262 = vpack.c.b16 %v3202, %v3198
    %v3263 = vpack.c.b16 %v3203, %v3199
    %v3264 = vpack.c.b16 %v3204, %v3200
    %v3265 = vpack.c.b16 %v3209, %v3205
    %v3266 = vpack.c.b16 %v3210, %v3206
    %v3267 = vpack.c.b16 %v3211, %v3207
    %v3268 = vpack.c.b16 %v3212, %v3208
    %v3269 = vpack.c.b16 %v3217, %v3213
    %v3270 = vpack.c.b16 %v3218, %v3214
    %v3271 = vpack.c.b16 %v3219, %v3215
    %v3272 = vpack.c.b16 %v3220, %v3216
    %v3273 = vpack.c.b16 %v3225, %v3221
    %v3274 = vpack.c.b16 %v3226, %v3222
    %v3275 = vpack.c.b16 %v3227, %v3223
    %v3276 = vpack.c.b16 %v3228, %v3224
    %v3277 = vpack.c.b16 %v3233, %v3229
    %v3278 = vpack.c.b16 %v3234, %v3230
    %v3279 = vpack.c.b16 %v3235, %v3231
    %v3280 = vpack.c.b16 %v3236, %v3232
    %v3281 = vpack.c.b16 %v3241, %v3237
    %v3282 = vpack.c.b16 %v3242, %v3238
    %v3283 = vpack.c.b16 %v3243, %v3239
    %v3284 = vpack.c.b16 %v3244, %v3240
    %v3285 = vpack.c.b16 %v3249, %v3245
    %v3286 = vpack.c.b16 %v3250, %v3246
    %v3287 = vpack.c.b16 %v3251, %v3247
    %v3288 = vpack.c.b16 %v3252, %v3248
    %v3289 = vpack.c.b16 %v3257, %v3253
    %v3290 = vpack.c.b16 %v3258, %v3254
    %v3291 = vpack.c.b16 %v3259, %v3255
    %v3292 = vpack.c.b16 %v3260, %v3256
    %3325 = vmatpush.bf16.msra.mxu0 %v3289
    %3326 = vmatpush.bf16.msra.mxu0 %v3285
    %3327 = vmatpush.bf16.msra.mxu0 %v3281
    %3328 = vmatpush.bf16.msra.mxu0 %v3277
    %3329 = vmatpush.bf16.msra.mxu0 %v3273
    %3330 = vmatpush.bf16.msra.mxu0 %v3269
    %3331 = vmatpush.bf16.msra.mxu0 %v3265
    %3332 = vmatpush.bf16.msra.mxu0 %v3261
    %3333 = vmatmul.bf16.gmra.mxu0 %v3129
    %v3334 = vpop.f32.mrf.mxu0
    %v3335 = vadd.f32 0.0, %v3334
    %v3336 = vpop.f32.mrf.mxu0
    %3337 = vdwg.mxu0
    %3338 = vmatpush.bf16.msra.mxu0 %v3290
    %3339 = vmatpush.bf16.msra.mxu0 %v3286
    %3340 = vmatpush.bf16.msra.mxu0 %v3282
    %3341 = vmatpush.bf16.msra.mxu0 %v3278
    %3342 = vmatpush.bf16.msra.mxu0 %v3274
    %3343 = vmatpush.bf16.msra.mxu0 %v3270
    %3344 = vmatpush.bf16.msra.mxu0 %v3266
    %3345 = vmatpush.bf16.msra.mxu0 %v3262
    %3346 = vmatmul.bf16.gmra.mxu0 %v3129
    %v3347 = vpop.f32.mrf.mxu0
    %v3348 = vadd.f32 0.0, %v3347
    %v3349 = vpop.f32.mrf.mxu0
    %3350 = vdwg.mxu0
    %3351 = vmatpush.bf16.msra.mxu0 %v3291
    %3352 = vmatpush.bf16.msra.mxu0 %v3287
    %3353 = vmatpush.bf16.msra.mxu0 %v3283
    %3354 = vmatpush.bf16.msra.mxu0 %v3279
    %3355 = vmatpush.bf16.msra.mxu0 %v3275
    %3356 = vmatpush.bf16.msra.mxu0 %v3271
    %3357 = vmatpush.bf16.msra.mxu0 %v3267
    %3358 = vmatpush.bf16.msra.mxu0 %v3263
    %3359 = vmatmul.bf16.gmra.mxu0 %v3129
    %v3360 = vpop.f32.mrf.mxu0
    %v3361 = vadd.f32 0.0, %v3360
    %v3362 = vpop.f32.mrf.mxu0
    %3363 = vdwg.mxu0
    %3364 = vmatpush.bf16.msra.mxu0 %v3292
    %3365 = vmatpush.bf16.msra.mxu0 %v3288
    %3366 = vmatpush.bf16.msra.mxu0 %v3284
    %3367 = vmatpush.bf16.msra.mxu0 %v3280
    %3368 = vmatpush.bf16.msra.mxu0 %v3276
    %3369 = vmatpush.bf16.msra.mxu0 %v3272
    %3370 = vmatpush.bf16.msra.mxu0 %v3268
    %3371 = vmatpush.bf16.msra.mxu0 %v3264
    %3372 = vmatmul.bf16.gmra.mxu0 %v3129
    %v3373 = vpop.f32.mrf.mxu0
    %v3374 = vadd.f32 0.0, %v3373
    %v3375 = vpop.f32.mrf.mxu0
    %3376 = vdwg.mxu0
    %v3377 = vld [vmem:[#allocation10] sm:$0xff]
    %v3378 = vld [vmem:[#allocation10 + $0x8] sm:$0xff]
    %v3379 = vld [vmem:[#allocation10 + $0x10] sm:$0xff]
    %v3380 = vld [vmem:[#allocation10 + $0x18] sm:$0xff]
    %v3381 = vld [vmem:[#allocation10 + $0x20] sm:$0xff]
    %v3382 = vld [vmem:[#allocation10 + $0x28] sm:$0xff]
    %v3383 = vld [vmem:[#allocation10 + $0x30] sm:$0xff]
    %v3384 = vld [vmem:[#allocation10 + $0x38] sm:$0xff]
    %v3385 = vld [vmem:[#allocation10 + $0x40] sm:$0xff]
    %v3386 = vld [vmem:[#allocation10 + $0x48] sm:$0xff]
    %v3387 = vld [vmem:[#allocation10 + $0x50] sm:$0xff]
    %v3388 = vld [vmem:[#allocation10 + $0x58] sm:$0xff]
    %v3389 = vld [vmem:[#allocation10 + $0x60] sm:$0xff]
    %v3390 = vld [vmem:[#allocation10 + $0x68] sm:$0xff]
    %v3391 = vld [vmem:[#allocation10 + $0x70] sm:$0xff]
    %v3392 = vld [vmem:[#allocation10 + $0x78] sm:$0xff]
    %v3393 = vld [vmem:[#allocation10 + $0x80] sm:$0xff]
    %v3394 = vld [vmem:[#allocation10 + $0x88] sm:$0xff]
    %v3395 = vld [vmem:[#allocation10 + $0x90] sm:$0xff]
    %v3396 = vld [vmem:[#allocation10 + $0x98] sm:$0xff]
    %v3397 = vld [vmem:[#allocation10 + $0xa0] sm:$0xff]
    %v3398 = vld [vmem:[#allocation10 + $0xa8] sm:$0xff]
    %v3399 = vld [vmem:[#allocation10 + $0xb0] sm:$0xff]
    %v3400 = vld [vmem:[#allocation10 + $0xb8] sm:$0xff]
    %v3401 = vld [vmem:[#allocation10 + $0xc0] sm:$0xff]
    %v3402 = vld [vmem:[#allocation10 + $0xc8] sm:$0xff]
    %v3403 = vld [vmem:[#allocation10 + $0xd0] sm:$0xff]
    %v3404 = vld [vmem:[#allocation10 + $0xd8] sm:$0xff]
    %v3405 = vld [vmem:[#allocation10 + $0xe0] sm:$0xff]
    %v3406 = vld [vmem:[#allocation10 + $0xe8] sm:$0xff]
    %v3407 = vld [vmem:[#allocation10 + $0xf0] sm:$0xff]
    %v3408 = vld [vmem:[#allocation10 + $0xf8] sm:$0xff]
    %v3441 = vunpack.c.l.b16 %v3377
    %v3442 = vunpack.c.h.b16 %v3377
    %v3443 = vunpack.c.l.b16 %v3378
    %v3444 = vunpack.c.h.b16 %v3378
    %v3445 = vunpack.c.l.b16 %v3379
    %v3446 = vunpack.c.h.b16 %v3379
    %v3447 = vunpack.c.l.b16 %v3380
    %v3448 = vunpack.c.h.b16 %v3380
    %v3449 = vunpack.c.l.b16 %v3381
    %v3450 = vunpack.c.h.b16 %v3381
    %v3451 = vunpack.c.l.b16 %v3382
    %v3452 = vunpack.c.h.b16 %v3382
    %v3453 = vunpack.c.l.b16 %v3383
    %v3454 = vunpack.c.h.b16 %v3383
    %v3455 = vunpack.c.l.b16 %v3384
    %v3456 = vunpack.c.h.b16 %v3384
    %v3457 = vunpack.c.l.b16 %v3385
    %v3458 = vunpack.c.h.b16 %v3385
    %v3459 = vunpack.c.l.b16 %v3386
    %v3460 = vunpack.c.h.b16 %v3386
    %v3461 = vunpack.c.l.b16 %v3387
    %v3462 = vunpack.c.h.b16 %v3387
    %v3463 = vunpack.c.l.b16 %v3388
    %v3464 = vunpack.c.h.b16 %v3388
    %v3465 = vunpack.c.l.b16 %v3389
    %v3466 = vunpack.c.h.b16 %v3389
    %v3467 = vunpack.c.l.b16 %v3390
    %v3468 = vunpack.c.h.b16 %v3390
    %v3469 = vunpack.c.l.b16 %v3391
    %v3470 = vunpack.c.h.b16 %v3391
    %v3471 = vunpack.c.l.b16 %v3392
    %v3472 = vunpack.c.h.b16 %v3392
    %v3473 = vunpack.c.l.b16 %v3393
    %v3474 = vunpack.c.h.b16 %v3393
    %v3475 = vunpack.c.l.b16 %v3394
    %v3476 = vunpack.c.h.b16 %v3394
    %v3477 = vunpack.c.l.b16 %v3395
    %v3478 = vunpack.c.h.b16 %v3395
    %v3479 = vunpack.c.l.b16 %v3396
    %v3480 = vunpack.c.h.b16 %v3396
    %v3481 = vunpack.c.l.b16 %v3397
    %v3482 = vunpack.c.h.b16 %v3397
    %v3483 = vunpack.c.l.b16 %v3398
    %v3484 = vunpack.c.h.b16 %v3398
    %v3485 = vunpack.c.l.b16 %v3399
    %v3486 = vunpack.c.h.b16 %v3399
    %v3487 = vunpack.c.l.b16 %v3400
    %v3488 = vunpack.c.h.b16 %v3400
    %v3489 = vunpack.c.l.b16 %v3401
    %v3490 = vunpack.c.h.b16 %v3401
    %v3491 = vunpack.c.l.b16 %v3402
    %v3492 = vunpack.c.h.b16 %v3402
    %v3493 = vunpack.c.l.b16 %v3403
    %v3494 = vunpack.c.h.b16 %v3403
    %v3495 = vunpack.c.l.b16 %v3404
    %v3496 = vunpack.c.h.b16 %v3404
    %v3497 = vunpack.c.l.b16 %v3405
    %v3498 = vunpack.c.h.b16 %v3405
    %v3499 = vunpack.c.l.b16 %v3406
    %v3500 = vunpack.c.h.b16 %v3406
    %v3501 = vunpack.c.l.b16 %v3407
    %v3502 = vunpack.c.h.b16 %v3407
    %v3503 = vunpack.c.l.b16 %v3408
    %v3504 = vunpack.c.h.b16 %v3408
    %v3505 = vpack.c.b16 %v3445, %v3441
    %v3506 = vpack.c.b16 %v3446, %v3442
    %v3507 = vpack.c.b16 %v3447, %v3443
    %v3508 = vpack.c.b16 %v3448, %v3444
    %v3509 = vpack.c.b16 %v3453, %v3449
    %v3510 = vpack.c.b16 %v3454, %v3450
    %v3511 = vpack.c.b16 %v3455, %v3451
    %v3512 = vpack.c.b16 %v3456, %v3452
    %v3513 = vpack.c.b16 %v3461, %v3457
    %v3514 = vpack.c.b16 %v3462, %v3458
    %v3515 = vpack.c.b16 %v3463, %v3459
    %v3516 = vpack.c.b16 %v3464, %v3460
    %v3517 = vpack.c.b16 %v3469, %v3465
    %v3518 = vpack.c.b16 %v3470, %v3466
    %v3519 = vpack.c.b16 %v3471, %v3467
    %v3520 = vpack.c.b16 %v3472, %v3468
    %v3521 = vpack.c.b16 %v3477, %v3473
    %v3522 = vpack.c.b16 %v3478, %v3474
    %v3523 = vpack.c.b16 %v3479, %v3475
    %v3524 = vpack.c.b16 %v3480, %v3476
    %v3525 = vpack.c.b16 %v3485, %v3481
    %v3526 = vpack.c.b16 %v3486, %v3482
    %v3527 = vpack.c.b16 %v3487, %v3483
    %v3528 = vpack.c.b16 %v3488, %v3484
    %v3529 = vpack.c.b16 %v3493, %v3489
    %v3530 = vpack.c.b16 %v3494, %v3490
    %v3531 = vpack.c.b16 %v3495, %v3491
    %v3532 = vpack.c.b16 %v3496, %v3492
    %v3533 = vpack.c.b16 %v3501, %v3497
    %v3534 = vpack.c.b16 %v3502, %v3498
    %v3535 = vpack.c.b16 %v3503, %v3499
    %v3536 = vpack.c.b16 %v3504, %v3500
    %3569 = vmatpush.bf16.msra.mxu0 %v3533
    %3570 = vmatpush.bf16.msra.mxu0 %v3529
    %3571 = vmatpush.bf16.msra.mxu0 %v3525
    %3572 = vmatpush.bf16.msra.mxu0 %v3521
    %3573 = vmatpush.bf16.msra.mxu0 %v3517
    %3574 = vmatpush.bf16.msra.mxu0 %v3513
    %3575 = vmatpush.bf16.msra.mxu0 %v3509
    %3576 = vmatpush.bf16.msra.mxu0 %v3505
    %3577 = vmatmul.bf16.gmra.mxu0 %v3130
    %v3578 = vpop.f32.mrf.mxu0
    %v3579 = vadd.f32 0.0, %v3578
    %v3580 = vpop.f32.mrf.mxu0
    %3581 = vdwg.mxu0
    %3582 = vmatpush.bf16.msra.mxu0 %v3534
    %3583 = vmatpush.bf16.msra.mxu0 %v3530
    %3584 = vmatpush.bf16.msra.mxu0 %v3526
    %3585 = vmatpush.bf16.msra.mxu0 %v3522
    %3586 = vmatpush.bf16.msra.mxu0 %v3518
    %3587 = vmatpush.bf16.msra.mxu0 %v3514
    %3588 = vmatpush.bf16.msra.mxu0 %v3510
    %3589 = vmatpush.bf16.msra.mxu0 %v3506
    %3590 = vmatmul.bf16.gmra.mxu0 %v3130
    %v3591 = vpop.f32.mrf.mxu0
    %v3592 = vadd.f32 0.0, %v3591
    %v3593 = vpop.f32.mrf.mxu0
    %3594 = vdwg.mxu0
    %3595 = vmatpush.bf16.msra.mxu0 %v3535
    %3596 = vmatpush.bf16.msra.mxu0 %v3531
    %3597 = vmatpush.bf16.msra.mxu0 %v3527
    %3598 = vmatpush.bf16.msra.mxu0 %v3523
    %3599 = vmatpush.bf16.msra.mxu0 %v3519
    %3600 = vmatpush.bf16.msra.mxu0 %v3515
    %3601 = vmatpush.bf16.msra.mxu0 %v3511
    %3602 = vmatpush.bf16.msra.mxu0 %v3507
    %3603 = vmatmul.bf16.gmra.mxu0 %v3130
    %v3604 = vpop.f32.mrf.mxu0
    %v3605 = vadd.f32 0.0, %v3604
    %v3606 = vpop.f32.mrf.mxu0
    %3607 = vdwg.mxu0
    %3608 = vmatpush.bf16.msra.mxu0 %v3536
    %3609 = vmatpush.bf16.msra.mxu0 %v3532
    %3610 = vmatpush.bf16.msra.mxu0 %v3528
    %3611 = vmatpush.bf16.msra.mxu0 %v3524
    %3612 = vmatpush.bf16.msra.mxu0 %v3520
    %3613 = vmatpush.bf16.msra.mxu0 %v3516
    %3614 = vmatpush.bf16.msra.mxu0 %v3512
    %3615 = vmatpush.bf16.msra.mxu0 %v3508
    %3616 = vmatmul.bf16.gmra.mxu0 %v3130
    %v3617 = vpop.f32.mrf.mxu0
    %v3618 = vadd.f32 0.0, %v3617
    %v3619 = vpop.f32.mrf.mxu0
    %3620 = vdwg.mxu0
    %v3621 = vld [vmem:[#allocation2 + $0x80] sm:$0xff]
    %v3622 = vld [vmem:[#allocation2 + $0x88] sm:$0xff]
    %v3623 = vld [vmem:[#allocation2 + $0x90] sm:$0xff]
    %v3624 = vld [vmem:[#allocation2 + $0x98] sm:$0xff]
    %v3625 = vadd.f32 %v3621, %v3335
    %v3626 = vadd.f32 %v3622, %v3348
    %v3627 = vadd.f32 %v3623, %v3361
    %v3628 = vadd.f32 %v3624, %v3374
    %v3629 = vxor.u32 %v3625, 2147483648
    %v3630 = vmul.f32 %v3629, 1.442695
    %v3631 = vpow.pop %v3630
    %v3632 = vadd.f32 %v3631, 1.0
    %v3633 = vrcp.pop %v3632
    %v3634 = vmul.f32 %v3632, %v3633
    %v3635 = vsub.f32 1.0, %v3634
    %v3636 = vmul.f32 %v3633, %v3635
    %v3637 = vadd.f32 %v3633, %v3636
    %vm3638 = vweird.f32 %v3632
    %vm3639 = vweird.f32 %v3633
    %vm3640 = vmor %vm3638, %vm3639
    %v3641 = vsel %vm3640, %v3633, %v3637
    %v3642 = vand.u32 2147483647, %v3632
    %vm3643 = vcmp.eq.f32.partialorder %v3642, 8.507059e+37
    %v3644 = vand.u32 %v3632, 2147483648
    %v3645 = vor.u32 1.1754944e-38, %v3644
    %v3646 = vsel %vm3643, %v3645, %v3641
    %v3647 = vmul.f32 1.0, %v3646
    %v3648 = vxor.u32 %v3626, 2147483648
    %v3649 = vmul.f32 %v3648, 1.442695
    %v3650 = vpow.pop %v3649
    %v3651 = vadd.f32 %v3650, 1.0
    %v3652 = vrcp.pop %v3651
    %v3653 = vmul.f32 %v3651, %v3652
    %v3654 = vsub.f32 1.0, %v3653
    %v3655 = vmul.f32 %v3652, %v3654
    %v3656 = vadd.f32 %v3652, %v3655
    %vm3657 = vweird.f32 %v3651
    %vm3658 = vweird.f32 %v3652
    %vm3659 = vmor %vm3657, %vm3658
    %v3660 = vsel %vm3659, %v3652, %v3656
    %v3661 = vand.u32 2147483647, %v3651
    %vm3662 = vcmp.eq.f32.partialorder %v3661, 8.507059e+37
    %v3663 = vand.u32 %v3651, 2147483648
    %v3664 = vor.u32 1.1754944e-38, %v3663
    %v3665 = vsel %vm3662, %v3664, %v3660
    %v3666 = vmul.f32 1.0, %v3665
    %v3667 = vtanh.pop %v3627
    %v3668 = vxor.u32 %v3628, 2147483648
    %v3669 = vmul.f32 %v3668, 1.442695
    %v3670 = vpow.pop %v3669
    %v3671 = vadd.f32 %v3670, 1.0
    %v3672 = vrcp.pop %v3671
    %v3673 = vmul.f32 %v3671, %v3672
    %v3674 = vsub.f32 1.0, %v3673
    %v3675 = vmul.f32 %v3672, %v3674
    %v3676 = vadd.f32 %v3672, %v3675
    %vm3677 = vweird.f32 %v3671
    %vm3678 = vweird.f32 %v3672
    %vm3679 = vmor %vm3677, %vm3678
    %v3680 = vsel %vm3679, %v3672, %v3676
    %v3681 = vand.u32 2147483647, %v3671
    %vm3682 = vcmp.eq.f32.partialorder %v3681, 8.507059e+37
    %v3683 = vand.u32 %v3671, 2147483648
    %v3684 = vor.u32 1.1754944e-38, %v3683
    %v3685 = vsel %vm3682, %v3684, %v3680
    %v3686 = vmul.f32 1.0, %v3685
    %v3687 = vmul.f32 %v3666, %v3055
    %v3688 = vmul.f32 %v3647, %v3667
    %v3689 = vadd.f32 %v3687, %v3688
    %v3690 = vtanh.pop %v3689
    %v3691 = vmul.f32 %v3686, %v3690
    %v3692 = vld [vmem:[#allocation3 + $0x60] sm:$0xff]
    %v3693 = vld [vmem:[#allocation3 + $0x68] sm:$0xff]
    %v3694 = vld [vmem:[#allocation3 + $0x70] sm:$0xff]
    %v3695 = vld [vmem:[#allocation3 + $0x78] sm:$0xff]
    %v3696 = vadd.f32 %v3692, %v3579
    %v3697 = vadd.f32 %v3693, %v3592
    %v3698 = vadd.f32 %v3694, %v3605
    %v3699 = vadd.f32 %v3695, %v3618
    %v3700 = vxor.u32 %v3696, 2147483648
    %v3701 = vmul.f32 %v3700, 1.442695
    %v3702 = vpow.pop %v3701
    %v3703 = vadd.f32 %v3702, 1.0
    %v3704 = vrcp.pop %v3703
    %v3705 = vmul.f32 %v3703, %v3704
    %v3706 = vsub.f32 1.0, %v3705
    %v3707 = vmul.f32 %v3704, %v3706
    %v3708 = vadd.f32 %v3704, %v3707
    %vm3709 = vweird.f32 %v3703
    %vm3710 = vweird.f32 %v3704
    %vm3711 = vmor %vm3709, %vm3710
    %v3712 = vsel %vm3711, %v3704, %v3708
    %v3713 = vand.u32 2147483647, %v3703
    %vm3714 = vcmp.eq.f32.partialorder %v3713, 8.507059e+37
    %v3715 = vand.u32 %v3703, 2147483648
    %v3716 = vor.u32 1.1754944e-38, %v3715
    %v3717 = vsel %vm3714, %v3716, %v3712
    %v3718 = vmul.f32 1.0, %v3717
    %v3719 = vxor.u32 %v3697, 2147483648
    %v3720 = vmul.f32 %v3719, 1.442695
    %v3721 = vpow.pop %v3720
    %v3722 = vadd.f32 %v3721, 1.0
    %v3723 = vrcp.pop %v3722
    %v3724 = vmul.f32 %v3722, %v3723
    %v3725 = vsub.f32 1.0, %v3724
    %v3726 = vmul.f32 %v3723, %v3725
    %v3727 = vadd.f32 %v3723, %v3726
    %vm3728 = vweird.f32 %v3722
    %vm3729 = vweird.f32 %v3723
    %vm3730 = vmor %vm3728, %vm3729
    %v3731 = vsel %vm3730, %v3723, %v3727
    %v3732 = vand.u32 2147483647, %v3722
    %vm3733 = vcmp.eq.f32.partialorder %v3732, 8.507059e+37
    %v3734 = vand.u32 %v3722, 2147483648
    %v3735 = vor.u32 1.1754944e-38, %v3734
    %v3736 = vsel %vm3733, %v3735, %v3731
    %v3737 = vmul.f32 1.0, %v3736
    %v3738 = vtanh.pop %v3698
    %v3739 = vxor.u32 %v3699, 2147483648
    %v3740 = vmul.f32 %v3739, 1.442695
    %v3741 = vpow.pop %v3740
    %v3742 = vadd.f32 %v3741, 1.0
    %v3743 = vrcp.pop %v3742
    %v3744 = vmul.f32 %v3742, %v3743
    %v3745 = vsub.f32 1.0, %v3744
    %v3746 = vmul.f32 %v3743, %v3745
    %v3747 = vadd.f32 %v3743, %v3746
    %vm3748 = vweird.f32 %v3742
    %vm3749 = vweird.f32 %v3743
    %vm3750 = vmor %vm3748, %vm3749
    %v3751 = vsel %vm3750, %v3743, %v3747
    %v3752 = vand.u32 2147483647, %v3742
    %vm3753 = vcmp.eq.f32.partialorder %v3752, 8.507059e+37
    %v3754 = vand.u32 %v3742, 2147483648
    %v3755 = vor.u32 1.1754944e-38, %v3754
    %v3756 = vsel %vm3753, %v3755, %v3751
    %v3757 = vmul.f32 1.0, %v3756
    %v3758 = vmul.f32 %v3737, %v3126
    %v3759 = vmul.f32 %v3718, %v3738
    %v3760 = vadd.f32 %v3758, %v3759
    %v3761 = vtanh.pop %v3760
    %v3762 = vmul.f32 %v3757, %v3761
    %v3763 = vpack.c.bf16 %v3691, %v3691
    %v3764 = vpack.c.bf16 %v3762, %v3762
    %3765 = vst [vmem:[#allocation4 + $0x20] sm:$0xf] %v3763
    %3766 = vst [vmem:[#allocation4 + $0x1c] sm:$0xf] %v3764
    %v3767 = vld [vmem:[#allocation9] sm:$0xff]
    %v3768 = vld [vmem:[#allocation9 + $0x8] sm:$0xff]
    %v3769 = vld [vmem:[#allocation9 + $0x10] sm:$0xff]
    %v3770 = vld [vmem:[#allocation9 + $0x18] sm:$0xff]
    %v3771 = vld [vmem:[#allocation9 + $0x20] sm:$0xff]
    %v3772 = vld [vmem:[#allocation9 + $0x28] sm:$0xff]
    %v3773 = vld [vmem:[#allocation9 + $0x30] sm:$0xff]
    %v3774 = vld [vmem:[#allocation9 + $0x38] sm:$0xff]
    %v3775 = vld [vmem:[#allocation9 + $0x40] sm:$0xff]
    %v3776 = vld [vmem:[#allocation9 + $0x48] sm:$0xff]
    %v3777 = vld [vmem:[#allocation9 + $0x50] sm:$0xff]
    %v3778 = vld [vmem:[#allocation9 + $0x58] sm:$0xff]
    %v3779 = vld [vmem:[#allocation9 + $0x60] sm:$0xff]
    %v3780 = vld [vmem:[#allocation9 + $0x68] sm:$0xff]
    %v3781 = vld [vmem:[#allocation9 + $0x70] sm:$0xff]
    %v3782 = vld [vmem:[#allocation9 + $0x78] sm:$0xff]
    %v3783 = vld [vmem:[#allocation9 + $0x80] sm:$0xff]
    %v3784 = vld [vmem:[#allocation9 + $0x88] sm:$0xff]
    %v3785 = vld [vmem:[#allocation9 + $0x90] sm:$0xff]
    %v3786 = vld [vmem:[#allocation9 + $0x98] sm:$0xff]
    %v3787 = vld [vmem:[#allocation9 + $0xa0] sm:$0xff]
    %v3788 = vld [vmem:[#allocation9 + $0xa8] sm:$0xff]
    %v3789 = vld [vmem:[#allocation9 + $0xb0] sm:$0xff]
    %v3790 = vld [vmem:[#allocation9 + $0xb8] sm:$0xff]
    %v3791 = vld [vmem:[#allocation9 + $0xc0] sm:$0xff]
    %v3792 = vld [vmem:[#allocation9 + $0xc8] sm:$0xff]
    %v3793 = vld [vmem:[#allocation9 + $0xd0] sm:$0xff]
    %v3794 = vld [vmem:[#allocation9 + $0xd8] sm:$0xff]
    %v3795 = vld [vmem:[#allocation9 + $0xe0] sm:$0xff]
    %v3796 = vld [vmem:[#allocation9 + $0xe8] sm:$0xff]
    %v3797 = vld [vmem:[#allocation9 + $0xf0] sm:$0xff]
    %v3798 = vld [vmem:[#allocation9 + $0xf8] sm:$0xff]
    %v3831 = vunpack.c.l.b16 %v3767
    %v3832 = vunpack.c.h.b16 %v3767
    %v3833 = vunpack.c.l.b16 %v3768
    %v3834 = vunpack.c.h.b16 %v3768
    %v3835 = vunpack.c.l.b16 %v3769
    %v3836 = vunpack.c.h.b16 %v3769
    %v3837 = vunpack.c.l.b16 %v3770
    %v3838 = vunpack.c.h.b16 %v3770
    %v3839 = vunpack.c.l.b16 %v3771
    %v3840 = vunpack.c.h.b16 %v3771
    %v3841 = vunpack.c.l.b16 %v3772
    %v3842 = vunpack.c.h.b16 %v3772
    %v3843 = vunpack.c.l.b16 %v3773
    %v3844 = vunpack.c.h.b16 %v3773
    %v3845 = vunpack.c.l.b16 %v3774
    %v3846 = vunpack.c.h.b16 %v3774
    %v3847 = vunpack.c.l.b16 %v3775
    %v3848 = vunpack.c.h.b16 %v3775
    %v3849 = vunpack.c.l.b16 %v3776
    %v3850 = vunpack.c.h.b16 %v3776
    %v3851 = vunpack.c.l.b16 %v3777
    %v3852 = vunpack.c.h.b16 %v3777
    %v3853 = vunpack.c.l.b16 %v3778
    %v3854 = vunpack.c.h.b16 %v3778
    %v3855 = vunpack.c.l.b16 %v3779
    %v3856 = vunpack.c.h.b16 %v3779
    %v3857 = vunpack.c.l.b16 %v3780
    %v3858 = vunpack.c.h.b16 %v3780
    %v3859 = vunpack.c.l.b16 %v3781
    %v3860 = vunpack.c.h.b16 %v3781
    %v3861 = vunpack.c.l.b16 %v3782
    %v3862 = vunpack.c.h.b16 %v3782
    %v3863 = vunpack.c.l.b16 %v3783
    %v3864 = vunpack.c.h.b16 %v3783
    %v3865 = vunpack.c.l.b16 %v3784
    %v3866 = vunpack.c.h.b16 %v3784
    %v3867 = vunpack.c.l.b16 %v3785
    %v3868 = vunpack.c.h.b16 %v3785
    %v3869 = vunpack.c.l.b16 %v3786
    %v3870 = vunpack.c.h.b16 %v3786
    %v3871 = vunpack.c.l.b16 %v3787
    %v3872 = vunpack.c.h.b16 %v3787
    %v3873 = vunpack.c.l.b16 %v3788
    %v3874 = vunpack.c.h.b16 %v3788
    %v3875 = vunpack.c.l.b16 %v3789
    %v3876 = vunpack.c.h.b16 %v3789
    %v3877 = vunpack.c.l.b16 %v3790
    %v3878 = vunpack.c.h.b16 %v3790
    %v3879 = vunpack.c.l.b16 %v3791
    %v3880 = vunpack.c.h.b16 %v3791
    %v3881 = vunpack.c.l.b16 %v3792
    %v3882 = vunpack.c.h.b16 %v3792
    %v3883 = vunpack.c.l.b16 %v3793
    %v3884 = vunpack.c.h.b16 %v3793
    %v3885 = vunpack.c.l.b16 %v3794
    %v3886 = vunpack.c.h.b16 %v3794
    %v3887 = vunpack.c.l.b16 %v3795
    %v3888 = vunpack.c.h.b16 %v3795
    %v3889 = vunpack.c.l.b16 %v3796
    %v3890 = vunpack.c.h.b16 %v3796
    %v3891 = vunpack.c.l.b16 %v3797
    %v3892 = vunpack.c.h.b16 %v3797
    %v3893 = vunpack.c.l.b16 %v3798
    %v3894 = vunpack.c.h.b16 %v3798
    %v3895 = vpack.c.b16 %v3835, %v3831
    %v3896 = vpack.c.b16 %v3836, %v3832
    %v3897 = vpack.c.b16 %v3837, %v3833
    %v3898 = vpack.c.b16 %v3838, %v3834
    %v3899 = vpack.c.b16 %v3843, %v3839
    %v3900 = vpack.c.b16 %v3844, %v3840
    %v3901 = vpack.c.b16 %v3845, %v3841
    %v3902 = vpack.c.b16 %v3846, %v3842
    %v3903 = vpack.c.b16 %v3851, %v3847
    %v3904 = vpack.c.b16 %v3852, %v3848
    %v3905 = vpack.c.b16 %v3853, %v3849
    %v3906 = vpack.c.b16 %v3854, %v3850
    %v3907 = vpack.c.b16 %v3859, %v3855
    %v3908 = vpack.c.b16 %v3860, %v3856
    %v3909 = vpack.c.b16 %v3861, %v3857
    %v3910 = vpack.c.b16 %v3862, %v3858
    %v3911 = vpack.c.b16 %v3867, %v3863
    %v3912 = vpack.c.b16 %v3868, %v3864
    %v3913 = vpack.c.b16 %v3869, %v3865
    %v3914 = vpack.c.b16 %v3870, %v3866
    %v3915 = vpack.c.b16 %v3875, %v3871
    %v3916 = vpack.c.b16 %v3876, %v3872
    %v3917 = vpack.c.b16 %v3877, %v3873
    %v3918 = vpack.c.b16 %v3878, %v3874
    %v3919 = vpack.c.b16 %v3883, %v3879
    %v3920 = vpack.c.b16 %v3884, %v3880
    %v3921 = vpack.c.b16 %v3885, %v3881
    %v3922 = vpack.c.b16 %v3886, %v3882
    %v3923 = vpack.c.b16 %v3891, %v3887
    %v3924 = vpack.c.b16 %v3892, %v3888
    %v3925 = vpack.c.b16 %v3893, %v3889
    %v3926 = vpack.c.b16 %v3894, %v3890
    %3959 = vmatpush.bf16.msra.mxu0 %v3923
    %3960 = vmatpush.bf16.msra.mxu0 %v3919
    %3961 = vmatpush.bf16.msra.mxu0 %v3915
    %3962 = vmatpush.bf16.msra.mxu0 %v3911
    %3963 = vmatpush.bf16.msra.mxu0 %v3907
    %3964 = vmatpush.bf16.msra.mxu0 %v3903
    %3965 = vmatpush.bf16.msra.mxu0 %v3899
    %3966 = vmatpush.bf16.msra.mxu0 %v3895
    %3967 = vmatmul.bf16.gmra.mxu0 %v3763
    %v3968 = vpop.f32.mrf.mxu0
    %v3969 = vadd.f32 0.0, %v3968
    %v3970 = vpop.f32.mrf.mxu0
    %3971 = vdwg.mxu0
    %3972 = vmatpush.bf16.msra.mxu0 %v3924
    %3973 = vmatpush.bf16.msra.mxu0 %v3920
    %3974 = vmatpush.bf16.msra.mxu0 %v3916
    %3975 = vmatpush.bf16.msra.mxu0 %v3912
    %3976 = vmatpush.bf16.msra.mxu0 %v3908
    %3977 = vmatpush.bf16.msra.mxu0 %v3904
    %3978 = vmatpush.bf16.msra.mxu0 %v3900
    %3979 = vmatpush.bf16.msra.mxu0 %v3896
    %3980 = vmatmul.bf16.gmra.mxu0 %v3763
    %v3981 = vpop.f32.mrf.mxu0
    %v3982 = vadd.f32 0.0, %v3981
    %v3983 = vpop.f32.mrf.mxu0
    %3984 = vdwg.mxu0
    %3985 = vmatpush.bf16.msra.mxu0 %v3925
    %3986 = vmatpush.bf16.msra.mxu0 %v3921
    %3987 = vmatpush.bf16.msra.mxu0 %v3917
    %3988 = vmatpush.bf16.msra.mxu0 %v3913
    %3989 = vmatpush.bf16.msra.mxu0 %v3909
    %3990 = vmatpush.bf16.msra.mxu0 %v3905
    %3991 = vmatpush.bf16.msra.mxu0 %v3901
    %3992 = vmatpush.bf16.msra.mxu0 %v3897
    %3993 = vmatmul.bf16.gmra.mxu0 %v3763
    %v3994 = vpop.f32.mrf.mxu0
    %v3995 = vadd.f32 0.0, %v3994
    %v3996 = vpop.f32.mrf.mxu0
    %3997 = vdwg.mxu0
    %3998 = vmatpush.bf16.msra.mxu0 %v3926
    %3999 = vmatpush.bf16.msra.mxu0 %v3922
    %4000 = vmatpush.bf16.msra.mxu0 %v3918
    %4001 = vmatpush.bf16.msra.mxu0 %v3914
    %4002 = vmatpush.bf16.msra.mxu0 %v3910
    %4003 = vmatpush.bf16.msra.mxu0 %v3906
    %4004 = vmatpush.bf16.msra.mxu0 %v3902
    %4005 = vmatpush.bf16.msra.mxu0 %v3898
    %4006 = vmatmul.bf16.gmra.mxu0 %v3763
    %v4007 = vpop.f32.mrf.mxu0
    %v4008 = vadd.f32 0.0, %v4007
    %v4009 = vpop.f32.mrf.mxu0
    %4010 = vdwg.mxu0
    %v4011 = vld [vmem:[#allocation10] sm:$0xff]
    %v4012 = vld [vmem:[#allocation10 + $0x8] sm:$0xff]
    %v4013 = vld [vmem:[#allocation10 + $0x10] sm:$0xff]
    %v4014 = vld [vmem:[#allocation10 + $0x18] sm:$0xff]
    %v4015 = vld [vmem:[#allocation10 + $0x20] sm:$0xff]
    %v4016 = vld [vmem:[#allocation10 + $0x28] sm:$0xff]
    %v4017 = vld [vmem:[#allocation10 + $0x30] sm:$0xff]
    %v4018 = vld [vmem:[#allocation10 + $0x38] sm:$0xff]
    %v4019 = vld [vmem:[#allocation10 + $0x40] sm:$0xff]
    %v4020 = vld [vmem:[#allocation10 + $0x48] sm:$0xff]
    %v4021 = vld [vmem:[#allocation10 + $0x50] sm:$0xff]
    %v4022 = vld [vmem:[#allocation10 + $0x58] sm:$0xff]
    %v4023 = vld [vmem:[#allocation10 + $0x60] sm:$0xff]
    %v4024 = vld [vmem:[#allocation10 + $0x68] sm:$0xff]
    %v4025 = vld [vmem:[#allocation10 + $0x70] sm:$0xff]
    %v4026 = vld [vmem:[#allocation10 + $0x78] sm:$0xff]
    %v4027 = vld [vmem:[#allocation10 + $0x80] sm:$0xff]
    %v4028 = vld [vmem:[#allocation10 + $0x88] sm:$0xff]
    %v4029 = vld [vmem:[#allocation10 + $0x90] sm:$0xff]
    %v4030 = vld [vmem:[#allocation10 + $0x98] sm:$0xff]
    %v4031 = vld [vmem:[#allocation10 + $0xa0] sm:$0xff]
    %v4032 = vld [vmem:[#allocation10 + $0xa8] sm:$0xff]
    %v4033 = vld [vmem:[#allocation10 + $0xb0] sm:$0xff]
    %v4034 = vld [vmem:[#allocation10 + $0xb8] sm:$0xff]
    %v4035 = vld [vmem:[#allocation10 + $0xc0] sm:$0xff]
    %v4036 = vld [vmem:[#allocation10 + $0xc8] sm:$0xff]
    %v4037 = vld [vmem:[#allocation10 + $0xd0] sm:$0xff]
    %v4038 = vld [vmem:[#allocation10 + $0xd8] sm:$0xff]
    %v4039 = vld [vmem:[#allocation10 + $0xe0] sm:$0xff]
    %v4040 = vld [vmem:[#allocation10 + $0xe8] sm:$0xff]
    %v4041 = vld [vmem:[#allocation10 + $0xf0] sm:$0xff]
    %v4042 = vld [vmem:[#allocation10 + $0xf8] sm:$0xff]
    %v4075 = vunpack.c.l.b16 %v4011
    %v4076 = vunpack.c.h.b16 %v4011
    %v4077 = vunpack.c.l.b16 %v4012
    %v4078 = vunpack.c.h.b16 %v4012
    %v4079 = vunpack.c.l.b16 %v4013
    %v4080 = vunpack.c.h.b16 %v4013
    %v4081 = vunpack.c.l.b16 %v4014
    %v4082 = vunpack.c.h.b16 %v4014
    %v4083 = vunpack.c.l.b16 %v4015
    %v4084 = vunpack.c.h.b16 %v4015
    %v4085 = vunpack.c.l.b16 %v4016
    %v4086 = vunpack.c.h.b16 %v4016
    %v4087 = vunpack.c.l.b16 %v4017
    %v4088 = vunpack.c.h.b16 %v4017
    %v4089 = vunpack.c.l.b16 %v4018
    %v4090 = vunpack.c.h.b16 %v4018
    %v4091 = vunpack.c.l.b16 %v4019
    %v4092 = vunpack.c.h.b16 %v4019
    %v4093 = vunpack.c.l.b16 %v4020
    %v4094 = vunpack.c.h.b16 %v4020
    %v4095 = vunpack.c.l.b16 %v4021
    %v4096 = vunpack.c.h.b16 %v4021
    %v4097 = vunpack.c.l.b16 %v4022
    %v4098 = vunpack.c.h.b16 %v4022
    %v4099 = vunpack.c.l.b16 %v4023
    %v4100 = vunpack.c.h.b16 %v4023
    %v4101 = vunpack.c.l.b16 %v4024
    %v4102 = vunpack.c.h.b16 %v4024
    %v4103 = vunpack.c.l.b16 %v4025
    %v4104 = vunpack.c.h.b16 %v4025
    %v4105 = vunpack.c.l.b16 %v4026
    %v4106 = vunpack.c.h.b16 %v4026
    %v4107 = vunpack.c.l.b16 %v4027
    %v4108 = vunpack.c.h.b16 %v4027
    %v4109 = vunpack.c.l.b16 %v4028
    %v4110 = vunpack.c.h.b16 %v4028
    %v4111 = vunpack.c.l.b16 %v4029
    %v4112 = vunpack.c.h.b16 %v4029
    %v4113 = vunpack.c.l.b16 %v4030
    %v4114 = vunpack.c.h.b16 %v4030
    %v4115 = vunpack.c.l.b16 %v4031
    %v4116 = vunpack.c.h.b16 %v4031
    %v4117 = vunpack.c.l.b16 %v4032
    %v4118 = vunpack.c.h.b16 %v4032
    %v4119 = vunpack.c.l.b16 %v4033
    %v4120 = vunpack.c.h.b16 %v4033
    %v4121 = vunpack.c.l.b16 %v4034
    %v4122 = vunpack.c.h.b16 %v4034
    %v4123 = vunpack.c.l.b16 %v4035
    %v4124 = vunpack.c.h.b16 %v4035
    %v4125 = vunpack.c.l.b16 %v4036
    %v4126 = vunpack.c.h.b16 %v4036
    %v4127 = vunpack.c.l.b16 %v4037
    %v4128 = vunpack.c.h.b16 %v4037
    %v4129 = vunpack.c.l.b16 %v4038
    %v4130 = vunpack.c.h.b16 %v4038
    %v4131 = vunpack.c.l.b16 %v4039
    %v4132 = vunpack.c.h.b16 %v4039
    %v4133 = vunpack.c.l.b16 %v4040
    %v4134 = vunpack.c.h.b16 %v4040
    %v4135 = vunpack.c.l.b16 %v4041
    %v4136 = vunpack.c.h.b16 %v4041
    %v4137 = vunpack.c.l.b16 %v4042
    %v4138 = vunpack.c.h.b16 %v4042
    %v4139 = vpack.c.b16 %v4079, %v4075
    %v4140 = vpack.c.b16 %v4080, %v4076
    %v4141 = vpack.c.b16 %v4081, %v4077
    %v4142 = vpack.c.b16 %v4082, %v4078
    %v4143 = vpack.c.b16 %v4087, %v4083
    %v4144 = vpack.c.b16 %v4088, %v4084
    %v4145 = vpack.c.b16 %v4089, %v4085
    %v4146 = vpack.c.b16 %v4090, %v4086
    %v4147 = vpack.c.b16 %v4095, %v4091
    %v4148 = vpack.c.b16 %v4096, %v4092
    %v4149 = vpack.c.b16 %v4097, %v4093
    %v4150 = vpack.c.b16 %v4098, %v4094
    %v4151 = vpack.c.b16 %v4103, %v4099
    %v4152 = vpack.c.b16 %v4104, %v4100
    %v4153 = vpack.c.b16 %v4105, %v4101
    %v4154 = vpack.c.b16 %v4106, %v4102
    %v4155 = vpack.c.b16 %v4111, %v4107
    %v4156 = vpack.c.b16 %v4112, %v4108
    %v4157 = vpack.c.b16 %v4113, %v4109
    %v4158 = vpack.c.b16 %v4114, %v4110
    %v4159 = vpack.c.b16 %v4119, %v4115
    %v4160 = vpack.c.b16 %v4120, %v4116
    %v4161 = vpack.c.b16 %v4121, %v4117
    %v4162 = vpack.c.b16 %v4122, %v4118
    %v4163 = vpack.c.b16 %v4127, %v4123
    %v4164 = vpack.c.b16 %v4128, %v4124
    %v4165 = vpack.c.b16 %v4129, %v4125
    %v4166 = vpack.c.b16 %v4130, %v4126
    %v4167 = vpack.c.b16 %v4135, %v4131
    %v4168 = vpack.c.b16 %v4136, %v4132
    %v4169 = vpack.c.b16 %v4137, %v4133
    %v4170 = vpack.c.b16 %v4138, %v4134
    %4203 = vmatpush.bf16.msra.mxu0 %v4167
    %4204 = vmatpush.bf16.msra.mxu0 %v4163
    %4205 = vmatpush.bf16.msra.mxu0 %v4159
    %4206 = vmatpush.bf16.msra.mxu0 %v4155
    %4207 = vmatpush.bf16.msra.mxu0 %v4151
    %4208 = vmatpush.bf16.msra.mxu0 %v4147
    %4209 = vmatpush.bf16.msra.mxu0 %v4143
    %4210 = vmatpush.bf16.msra.mxu0 %v4139
    %4211 = vmatmul.bf16.gmra.mxu0 %v3764
    %v4212 = vpop.f32.mrf.mxu0
    %v4213 = vadd.f32 0.0, %v4212
    %v4214 = vpop.f32.mrf.mxu0
    %4215 = vdwg.mxu0
    %4216 = vmatpush.bf16.msra.mxu0 %v4168
    %4217 = vmatpush.bf16.msra.mxu0 %v4164
    %4218 = vmatpush.bf16.msra.mxu0 %v4160
    %4219 = vmatpush.bf16.msra.mxu0 %v4156
    %4220 = vmatpush.bf16.msra.mxu0 %v4152
    %4221 = vmatpush.bf16.msra.mxu0 %v4148
    %4222 = vmatpush.bf16.msra.mxu0 %v4144
    %4223 = vmatpush.bf16.msra.mxu0 %v4140
    %4224 = vmatmul.bf16.gmra.mxu0 %v3764
    %v4225 = vpop.f32.mrf.mxu0
    %v4226 = vadd.f32 0.0, %v4225
    %v4227 = vpop.f32.mrf.mxu0
    %4228 = vdwg.mxu0
    %4229 = vmatpush.bf16.msra.mxu0 %v4169
    %4230 = vmatpush.bf16.msra.mxu0 %v4165
    %4231 = vmatpush.bf16.msra.mxu0 %v4161
    %4232 = vmatpush.bf16.msra.mxu0 %v4157
    %4233 = vmatpush.bf16.msra.mxu0 %v4153
    %4234 = vmatpush.bf16.msra.mxu0 %v4149
    %4235 = vmatpush.bf16.msra.mxu0 %v4145
    %4236 = vmatpush.bf16.msra.mxu0 %v4141
    %4237 = vmatmul.bf16.gmra.mxu0 %v3764
    %v4238 = vpop.f32.mrf.mxu0
    %v4239 = vadd.f32 0.0, %v4238
    %v4240 = vpop.f32.mrf.mxu0
    %4241 = vdwg.mxu0
    %4242 = vmatpush.bf16.msra.mxu0 %v4170
    %4243 = vmatpush.bf16.msra.mxu0 %v4166
    %4244 = vmatpush.bf16.msra.mxu0 %v4162
    %4245 = vmatpush.bf16.msra.mxu0 %v4158
    %4246 = vmatpush.bf16.msra.mxu0 %v4154
    %4247 = vmatpush.bf16.msra.mxu0 %v4150
    %4248 = vmatpush.bf16.msra.mxu0 %v4146
    %4249 = vmatpush.bf16.msra.mxu0 %v4142
    %4250 = vmatmul.bf16.gmra.mxu0 %v3764
    %v4251 = vpop.f32.mrf.mxu0
    %v4252 = vadd.f32 0.0, %v4251
    %v4253 = vpop.f32.mrf.mxu0
    %4254 = vdwg.mxu0
    %v4255 = vld [vmem:[#allocation2 + $0xa0] sm:$0xff]
    %v4256 = vld [vmem:[#allocation2 + $0xa8] sm:$0xff]
    %v4257 = vld [vmem:[#allocation2 + $0xb0] sm:$0xff]
    %v4258 = vld [vmem:[#allocation2 + $0xb8] sm:$0xff]
    %v4259 = vadd.f32 %v4255, %v3969
    %v4260 = vadd.f32 %v4256, %v3982
    %v4261 = vadd.f32 %v4257, %v3995
    %v4262 = vadd.f32 %v4258, %v4008
    %v4263 = vxor.u32 %v4259, 2147483648
    %v4264 = vmul.f32 %v4263, 1.442695
    %v4265 = vpow.pop %v4264
    %v4266 = vadd.f32 %v4265, 1.0
    %v4267 = vrcp.pop %v4266
    %v4268 = vmul.f32 %v4266, %v4267
    %v4269 = vsub.f32 1.0, %v4268
    %v4270 = vmul.f32 %v4267, %v4269
    %v4271 = vadd.f32 %v4267, %v4270
    %vm4272 = vweird.f32 %v4266
    %vm4273 = vweird.f32 %v4267
    %vm4274 = vmor %vm4272, %vm4273
    %v4275 = vsel %vm4274, %v4267, %v4271
    %v4276 = vand.u32 2147483647, %v4266
    %vm4277 = vcmp.eq.f32.partialorder %v4276, 8.507059e+37
    %v4278 = vand.u32 %v4266, 2147483648
    %v4279 = vor.u32 1.1754944e-38, %v4278
    %v4280 = vsel %vm4277, %v4279, %v4275
    %v4281 = vmul.f32 1.0, %v4280
    %v4282 = vxor.u32 %v4260, 2147483648
    %v4283 = vmul.f32 %v4282, 1.442695
    %v4284 = vpow.pop %v4283
    %v4285 = vadd.f32 %v4284, 1.0
    %v4286 = vrcp.pop %v4285
    %v4287 = vmul.f32 %v4285, %v4286
    %v4288 = vsub.f32 1.0, %v4287
    %v4289 = vmul.f32 %v4286, %v4288
    %v4290 = vadd.f32 %v4286, %v4289
    %vm4291 = vweird.f32 %v4285
    %vm4292 = vweird.f32 %v4286
    %vm4293 = vmor %vm4291, %vm4292
    %v4294 = vsel %vm4293, %v4286, %v4290
    %v4295 = vand.u32 2147483647, %v4285
    %vm4296 = vcmp.eq.f32.partialorder %v4295, 8.507059e+37
    %v4297 = vand.u32 %v4285, 2147483648
    %v4298 = vor.u32 1.1754944e-38, %v4297
    %v4299 = vsel %vm4296, %v4298, %v4294
    %v4300 = vmul.f32 1.0, %v4299
    %v4301 = vtanh.pop %v4261
    %v4302 = vxor.u32 %v4262, 2147483648
    %v4303 = vmul.f32 %v4302, 1.442695
    %v4304 = vpow.pop %v4303
    %v4305 = vadd.f32 %v4304, 1.0
    %v4306 = vrcp.pop %v4305
    %v4307 = vmul.f32 %v4305, %v4306
    %v4308 = vsub.f32 1.0, %v4307
    %v4309 = vmul.f32 %v4306, %v4308
    %v4310 = vadd.f32 %v4306, %v4309
    %vm4311 = vweird.f32 %v4305
    %vm4312 = vweird.f32 %v4306
    %vm4313 = vmor %vm4311, %vm4312
    %v4314 = vsel %vm4313, %v4306, %v4310
    %v4315 = vand.u32 2147483647, %v4305
    %vm4316 = vcmp.eq.f32.partialorder %v4315, 8.507059e+37
    %v4317 = vand.u32 %v4305, 2147483648
    %v4318 = vor.u32 1.1754944e-38, %v4317
    %v4319 = vsel %vm4316, %v4318, %v4314
    %v4320 = vmul.f32 1.0, %v4319
    %v4321 = vmul.f32 %v4300, %v3689
    %v4322 = vmul.f32 %v4281, %v4301
    %v4323 = vadd.f32 %v4321, %v4322
    %v4324 = vtanh.pop %v4323
    %v4325 = vmul.f32 %v4320, %v4324
    %v4326 = vld [vmem:[#allocation3 + $0x40] sm:$0xff]
    %v4327 = vld [vmem:[#allocation3 + $0x48] sm:$0xff]
    %v4328 = vld [vmem:[#allocation3 + $0x50] sm:$0xff]
    %v4329 = vld [vmem:[#allocation3 + $0x58] sm:$0xff]
    %v4330 = vadd.f32 %v4326, %v4213
    %v4331 = vadd.f32 %v4327, %v4226
    %v4332 = vadd.f32 %v4328, %v4239
    %v4333 = vadd.f32 %v4329, %v4252
    %v4334 = vxor.u32 %v4330, 2147483648
    %v4335 = vmul.f32 %v4334, 1.442695
    %v4336 = vpow.pop %v4335
    %v4337 = vadd.f32 %v4336, 1.0
    %v4338 = vrcp.pop %v4337
    %v4339 = vmul.f32 %v4337, %v4338
    %v4340 = vsub.f32 1.0, %v4339
    %v4341 = vmul.f32 %v4338, %v4340
    %v4342 = vadd.f32 %v4338, %v4341
    %vm4343 = vweird.f32 %v4337
    %vm4344 = vweird.f32 %v4338
    %vm4345 = vmor %vm4343, %vm4344
    %v4346 = vsel %vm4345, %v4338, %v4342
    %v4347 = vand.u32 2147483647, %v4337
    %vm4348 = vcmp.eq.f32.partialorder %v4347, 8.507059e+37
    %v4349 = vand.u32 %v4337, 2147483648
    %v4350 = vor.u32 1.1754944e-38, %v4349
    %v4351 = vsel %vm4348, %v4350, %v4346
    %v4352 = vmul.f32 1.0, %v4351
    %v4353 = vxor.u32 %v4331, 2147483648
    %v4354 = vmul.f32 %v4353, 1.442695
    %v4355 = vpow.pop %v4354
    %v4356 = vadd.f32 %v4355, 1.0
    %v4357 = vrcp.pop %v4356
    %v4358 = vmul.f32 %v4356, %v4357
    %v4359 = vsub.f32 1.0, %v4358
    %v4360 = vmul.f32 %v4357, %v4359
    %v4361 = vadd.f32 %v4357, %v4360
    %vm4362 = vweird.f32 %v4356
    %vm4363 = vweird.f32 %v4357
    %vm4364 = vmor %vm4362, %vm4363
    %v4365 = vsel %vm4364, %v4357, %v4361
    %v4366 = vand.u32 2147483647, %v4356
    %vm4367 = vcmp.eq.f32.partialorder %v4366, 8.507059e+37
    %v4368 = vand.u32 %v4356, 2147483648
    %v4369 = vor.u32 1.1754944e-38, %v4368
    %v4370 = vsel %vm4367, %v4369, %v4365
    %v4371 = vmul.f32 1.0, %v4370
    %v4372 = vtanh.pop %v4332
    %v4373 = vxor.u32 %v4333, 2147483648
    %v4374 = vmul.f32 %v4373, 1.442695
    %v4375 = vpow.pop %v4374
    %v4376 = vadd.f32 %v4375, 1.0
    %v4377 = vrcp.pop %v4376
    %v4378 = vmul.f32 %v4376, %v4377
    %v4379 = vsub.f32 1.0, %v4378
    %v4380 = vmul.f32 %v4377, %v4379
    %v4381 = vadd.f32 %v4377, %v4380
    %vm4382 = vweird.f32 %v4376
    %vm4383 = vweird.f32 %v4377
    %vm4384 = vmor %vm4382, %vm4383
    %v4385 = vsel %vm4384, %v4377, %v4381
    %v4386 = vand.u32 2147483647, %v4376
    %vm4387 = vcmp.eq.f32.partialorder %v4386, 8.507059e+37
    %v4388 = vand.u32 %v4376, 2147483648
    %v4389 = vor.u32 1.1754944e-38, %v4388
    %v4390 = vsel %vm4387, %v4389, %v4385
    %v4391 = vmul.f32 1.0, %v4390
    %v4392 = vmul.f32 %v4371, %v3760
    %v4393 = vmul.f32 %v4352, %v4372
    %v4394 = vadd.f32 %v4392, %v4393
    %v4395 = vtanh.pop %v4394
    %v4396 = vmul.f32 %v4391, %v4395
    %v4397 = vpack.c.bf16 %v4325, %v4325
    %v4398 = vpack.c.bf16 %v4396, %v4396
    %4399 = vst [vmem:[#allocation4 + $0x28] sm:$0xf] %v4397
    %4400 = vst [vmem:[#allocation4 + $0x14] sm:$0xf] %v4398
    %v4401 = vld [vmem:[#allocation9] sm:$0xff]
    %v4402 = vld [vmem:[#allocation9 + $0x8] sm:$0xff]
    %v4403 = vld [vmem:[#allocation9 + $0x10] sm:$0xff]
    %v4404 = vld [vmem:[#allocation9 + $0x18] sm:$0xff]
    %v4405 = vld [vmem:[#allocation9 + $0x20] sm:$0xff]
    %v4406 = vld [vmem:[#allocation9 + $0x28] sm:$0xff]
    %v4407 = vld [vmem:[#allocation9 + $0x30] sm:$0xff]
    %v4408 = vld [vmem:[#allocation9 + $0x38] sm:$0xff]
    %v4409 = vld [vmem:[#allocation9 + $0x40] sm:$0xff]
    %v4410 = vld [vmem:[#allocation9 + $0x48] sm:$0xff]
    %v4411 = vld [vmem:[#allocation9 + $0x50] sm:$0xff]
    %v4412 = vld [vmem:[#allocation9 + $0x58] sm:$0xff]
    %v4413 = vld [vmem:[#allocation9 + $0x60] sm:$0xff]
    %v4414 = vld [vmem:[#allocation9 + $0x68] sm:$0xff]
    %v4415 = vld [vmem:[#allocation9 + $0x70] sm:$0xff]
    %v4416 = vld [vmem:[#allocation9 + $0x78] sm:$0xff]
    %v4417 = vld [vmem:[#allocation9 + $0x80] sm:$0xff]
    %v4418 = vld [vmem:[#allocation9 + $0x88] sm:$0xff]
    %v4419 = vld [vmem:[#allocation9 + $0x90] sm:$0xff]
    %v4420 = vld [vmem:[#allocation9 + $0x98] sm:$0xff]
    %v4421 = vld [vmem:[#allocation9 + $0xa0] sm:$0xff]
    %v4422 = vld [vmem:[#allocation9 + $0xa8] sm:$0xff]
    %v4423 = vld [vmem:[#allocation9 + $0xb0] sm:$0xff]
    %v4424 = vld [vmem:[#allocation9 + $0xb8] sm:$0xff]
    %v4425 = vld [vmem:[#allocation9 + $0xc0] sm:$0xff]
    %v4426 = vld [vmem:[#allocation9 + $0xc8] sm:$0xff]
    %v4427 = vld [vmem:[#allocation9 + $0xd0] sm:$0xff]
    %v4428 = vld [vmem:[#allocation9 + $0xd8] sm:$0xff]
    %v4429 = vld [vmem:[#allocation9 + $0xe0] sm:$0xff]
    %v4430 = vld [vmem:[#allocation9 + $0xe8] sm:$0xff]
    %v4431 = vld [vmem:[#allocation9 + $0xf0] sm:$0xff]
    %v4432 = vld [vmem:[#allocation9 + $0xf8] sm:$0xff]
    %v4465 = vunpack.c.l.b16 %v4401
    %v4466 = vunpack.c.h.b16 %v4401
    %v4467 = vunpack.c.l.b16 %v4402
    %v4468 = vunpack.c.h.b16 %v4402
    %v4469 = vunpack.c.l.b16 %v4403
    %v4470 = vunpack.c.h.b16 %v4403
    %v4471 = vunpack.c.l.b16 %v4404
    %v4472 = vunpack.c.h.b16 %v4404
    %v4473 = vunpack.c.l.b16 %v4405
    %v4474 = vunpack.c.h.b16 %v4405
    %v4475 = vunpack.c.l.b16 %v4406
    %v4476 = vunpack.c.h.b16 %v4406
    %v4477 = vunpack.c.l.b16 %v4407
    %v4478 = vunpack.c.h.b16 %v4407
    %v4479 = vunpack.c.l.b16 %v4408
    %v4480 = vunpack.c.h.b16 %v4408
    %v4481 = vunpack.c.l.b16 %v4409
    %v4482 = vunpack.c.h.b16 %v4409
    %v4483 = vunpack.c.l.b16 %v4410
    %v4484 = vunpack.c.h.b16 %v4410
    %v4485 = vunpack.c.l.b16 %v4411
    %v4486 = vunpack.c.h.b16 %v4411
    %v4487 = vunpack.c.l.b16 %v4412
    %v4488 = vunpack.c.h.b16 %v4412
    %v4489 = vunpack.c.l.b16 %v4413
    %v4490 = vunpack.c.h.b16 %v4413
    %v4491 = vunpack.c.l.b16 %v4414
    %v4492 = vunpack.c.h.b16 %v4414
    %v4493 = vunpack.c.l.b16 %v4415
    %v4494 = vunpack.c.h.b16 %v4415
    %v4495 = vunpack.c.l.b16 %v4416
    %v4496 = vunpack.c.h.b16 %v4416
    %v4497 = vunpack.c.l.b16 %v4417
    %v4498 = vunpack.c.h.b16 %v4417
    %v4499 = vunpack.c.l.b16 %v4418
    %v4500 = vunpack.c.h.b16 %v4418
    %v4501 = vunpack.c.l.b16 %v4419
    %v4502 = vunpack.c.h.b16 %v4419
    %v4503 = vunpack.c.l.b16 %v4420
    %v4504 = vunpack.c.h.b16 %v4420
    %v4505 = vunpack.c.l.b16 %v4421
    %v4506 = vunpack.c.h.b16 %v4421
    %v4507 = vunpack.c.l.b16 %v4422
    %v4508 = vunpack.c.h.b16 %v4422
    %v4509 = vunpack.c.l.b16 %v4423
    %v4510 = vunpack.c.h.b16 %v4423
    %v4511 = vunpack.c.l.b16 %v4424
    %v4512 = vunpack.c.h.b16 %v4424
    %v4513 = vunpack.c.l.b16 %v4425
    %v4514 = vunpack.c.h.b16 %v4425
    %v4515 = vunpack.c.l.b16 %v4426
    %v4516 = vunpack.c.h.b16 %v4426
    %v4517 = vunpack.c.l.b16 %v4427
    %v4518 = vunpack.c.h.b16 %v4427
    %v4519 = vunpack.c.l.b16 %v4428
    %v4520 = vunpack.c.h.b16 %v4428
    %v4521 = vunpack.c.l.b16 %v4429
    %v4522 = vunpack.c.h.b16 %v4429
    %v4523 = vunpack.c.l.b16 %v4430
    %v4524 = vunpack.c.h.b16 %v4430
    %v4525 = vunpack.c.l.b16 %v4431
    %v4526 = vunpack.c.h.b16 %v4431
    %v4527 = vunpack.c.l.b16 %v4432
    %v4528 = vunpack.c.h.b16 %v4432
    %v4529 = vpack.c.b16 %v4469, %v4465
    %v4530 = vpack.c.b16 %v4470, %v4466
    %v4531 = vpack.c.b16 %v4471, %v4467
    %v4532 = vpack.c.b16 %v4472, %v4468
    %v4533 = vpack.c.b16 %v4477, %v4473
    %v4534 = vpack.c.b16 %v4478, %v4474
    %v4535 = vpack.c.b16 %v4479, %v4475
    %v4536 = vpack.c.b16 %v4480, %v4476
    %v4537 = vpack.c.b16 %v4485, %v4481
    %v4538 = vpack.c.b16 %v4486, %v4482
    %v4539 = vpack.c.b16 %v4487, %v4483
    %v4540 = vpack.c.b16 %v4488, %v4484
    %v4541 = vpack.c.b16 %v4493, %v4489
    %v4542 = vpack.c.b16 %v4494, %v4490
    %v4543 = vpack.c.b16 %v4495, %v4491
    %v4544 = vpack.c.b16 %v4496, %v4492
    %v4545 = vpack.c.b16 %v4501, %v4497
    %v4546 = vpack.c.b16 %v4502, %v4498
    %v4547 = vpack.c.b16 %v4503, %v4499
    %v4548 = vpack.c.b16 %v4504, %v4500
    %v4549 = vpack.c.b16 %v4509, %v4505
    %v4550 = vpack.c.b16 %v4510, %v4506
    %v4551 = vpack.c.b16 %v4511, %v4507
    %v4552 = vpack.c.b16 %v4512, %v4508
    %v4553 = vpack.c.b16 %v4517, %v4513
    %v4554 = vpack.c.b16 %v4518, %v4514
    %v4555 = vpack.c.b16 %v4519, %v4515
    %v4556 = vpack.c.b16 %v4520, %v4516
    %v4557 = vpack.c.b16 %v4525, %v4521
    %v4558 = vpack.c.b16 %v4526, %v4522
    %v4559 = vpack.c.b16 %v4527, %v4523
    %v4560 = vpack.c.b16 %v4528, %v4524
    %4593 = vmatpush.bf16.msra.mxu0 %v4557
    %4594 = vmatpush.bf16.msra.mxu0 %v4553
    %4595 = vmatpush.bf16.msra.mxu0 %v4549
    %4596 = vmatpush.bf16.msra.mxu0 %v4545
    %4597 = vmatpush.bf16.msra.mxu0 %v4541
    %4598 = vmatpush.bf16.msra.mxu0 %v4537
    %4599 = vmatpush.bf16.msra.mxu0 %v4533
    %4600 = vmatpush.bf16.msra.mxu0 %v4529
    %4601 = vmatmul.bf16.gmra.mxu0 %v4397
    %v4602 = vpop.f32.mrf.mxu0
    %v4603 = vadd.f32 0.0, %v4602
    %v4604 = vpop.f32.mrf.mxu0
    %4605 = vdwg.mxu0
    %4606 = vmatpush.bf16.msra.mxu0 %v4558
    %4607 = vmatpush.bf16.msra.mxu0 %v4554
    %4608 = vmatpush.bf16.msra.mxu0 %v4550
    %4609 = vmatpush.bf16.msra.mxu0 %v4546
    %4610 = vmatpush.bf16.msra.mxu0 %v4542
    %4611 = vmatpush.bf16.msra.mxu0 %v4538
    %4612 = vmatpush.bf16.msra.mxu0 %v4534
    %4613 = vmatpush.bf16.msra.mxu0 %v4530
    %4614 = vmatmul.bf16.gmra.mxu0 %v4397
    %v4615 = vpop.f32.mrf.mxu0
    %v4616 = vadd.f32 0.0, %v4615
    %v4617 = vpop.f32.mrf.mxu0
    %4618 = vdwg.mxu0
    %4619 = vmatpush.bf16.msra.mxu0 %v4559
    %4620 = vmatpush.bf16.msra.mxu0 %v4555
    %4621 = vmatpush.bf16.msra.mxu0 %v4551
    %4622 = vmatpush.bf16.msra.mxu0 %v4547
    %4623 = vmatpush.bf16.msra.mxu0 %v4543
    %4624 = vmatpush.bf16.msra.mxu0 %v4539
    %4625 = vmatpush.bf16.msra.mxu0 %v4535
    %4626 = vmatpush.bf16.msra.mxu0 %v4531
    %4627 = vmatmul.bf16.gmra.mxu0 %v4397
    %v4628 = vpop.f32.mrf.mxu0
    %v4629 = vadd.f32 0.0, %v4628
    %v4630 = vpop.f32.mrf.mxu0
    %4631 = vdwg.mxu0
    %4632 = vmatpush.bf16.msra.mxu0 %v4560
    %4633 = vmatpush.bf16.msra.mxu0 %v4556
    %4634 = vmatpush.bf16.msra.mxu0 %v4552
    %4635 = vmatpush.bf16.msra.mxu0 %v4548
    %4636 = vmatpush.bf16.msra.mxu0 %v4544
    %4637 = vmatpush.bf16.msra.mxu0 %v4540
    %4638 = vmatpush.bf16.msra.mxu0 %v4536
    %4639 = vmatpush.bf16.msra.mxu0 %v4532
    %4640 = vmatmul.bf16.gmra.mxu0 %v4397
    %v4641 = vpop.f32.mrf.mxu0
    %v4642 = vadd.f32 0.0, %v4641
    %v4643 = vpop.f32.mrf.mxu0
    %4644 = vdwg.mxu0
    %v4645 = vld [vmem:[#allocation10] sm:$0xff]
    %v4646 = vld [vmem:[#allocation10 + $0x8] sm:$0xff]
    %v4647 = vld [vmem:[#allocation10 + $0x10] sm:$0xff]
    %v4648 = vld [vmem:[#allocation10 + $0x18] sm:$0xff]
    %v4649 = vld [vmem:[#allocation10 + $0x20] sm:$0xff]
    %v4650 = vld [vmem:[#allocation10 + $0x28] sm:$0xff]
    %v4651 = vld [vmem:[#allocation10 + $0x30] sm:$0xff]
    %v4652 = vld [vmem:[#allocation10 + $0x38] sm:$0xff]
    %v4653 = vld [vmem:[#allocation10 + $0x40] sm:$0xff]
    %v4654 = vld [vmem:[#allocation10 + $0x48] sm:$0xff]
    %v4655 = vld [vmem:[#allocation10 + $0x50] sm:$0xff]
    %v4656 = vld [vmem:[#allocation10 + $0x58] sm:$0xff]
    %v4657 = vld [vmem:[#allocation10 + $0x60] sm:$0xff]
    %v4658 = vld [vmem:[#allocation10 + $0x68] sm:$0xff]
    %v4659 = vld [vmem:[#allocation10 + $0x70] sm:$0xff]
    %v4660 = vld [vmem:[#allocation10 + $0x78] sm:$0xff]
    %v4661 = vld [vmem:[#allocation10 + $0x80] sm:$0xff]
    %v4662 = vld [vmem:[#allocation10 + $0x88] sm:$0xff]
    %v4663 = vld [vmem:[#allocation10 + $0x90] sm:$0xff]
    %v4664 = vld [vmem:[#allocation10 + $0x98] sm:$0xff]
    %v4665 = vld [vmem:[#allocation10 + $0xa0] sm:$0xff]
    %v4666 = vld [vmem:[#allocation10 + $0xa8] sm:$0xff]
    %v4667 = vld [vmem:[#allocation10 + $0xb0] sm:$0xff]
    %v4668 = vld [vmem:[#allocation10 + $0xb8] sm:$0xff]
    %v4669 = vld [vmem:[#allocation10 + $0xc0] sm:$0xff]
    %v4670 = vld [vmem:[#allocation10 + $0xc8] sm:$0xff]
    %v4671 = vld [vmem:[#allocation10 + $0xd0] sm:$0xff]
    %v4672 = vld [vmem:[#allocation10 + $0xd8] sm:$0xff]
    %v4673 = vld [vmem:[#allocation10 + $0xe0] sm:$0xff]
    %v4674 = vld [vmem:[#allocation10 + $0xe8] sm:$0xff]
    %v4675 = vld [vmem:[#allocation10 + $0xf0] sm:$0xff]
    %v4676 = vld [vmem:[#allocation10 + $0xf8] sm:$0xff]
    %v4709 = vunpack.c.l.b16 %v4645
    %v4710 = vunpack.c.h.b16 %v4645
    %v4711 = vunpack.c.l.b16 %v4646
    %v4712 = vunpack.c.h.b16 %v4646
    %v4713 = vunpack.c.l.b16 %v4647
    %v4714 = vunpack.c.h.b16 %v4647
    %v4715 = vunpack.c.l.b16 %v4648
    %v4716 = vunpack.c.h.b16 %v4648
    %v4717 = vunpack.c.l.b16 %v4649
    %v4718 = vunpack.c.h.b16 %v4649
    %v4719 = vunpack.c.l.b16 %v4650
    %v4720 = vunpack.c.h.b16 %v4650
    %v4721 = vunpack.c.l.b16 %v4651
    %v4722 = vunpack.c.h.b16 %v4651
    %v4723 = vunpack.c.l.b16 %v4652
    %v4724 = vunpack.c.h.b16 %v4652
    %v4725 = vunpack.c.l.b16 %v4653
    %v4726 = vunpack.c.h.b16 %v4653
    %v4727 = vunpack.c.l.b16 %v4654
    %v4728 = vunpack.c.h.b16 %v4654
    %v4729 = vunpack.c.l.b16 %v4655
    %v4730 = vunpack.c.h.b16 %v4655
    %v4731 = vunpack.c.l.b16 %v4656
    %v4732 = vunpack.c.h.b16 %v4656
    %v4733 = vunpack.c.l.b16 %v4657
    %v4734 = vunpack.c.h.b16 %v4657
    %v4735 = vunpack.c.l.b16 %v4658
    %v4736 = vunpack.c.h.b16 %v4658
    %v4737 = vunpack.c.l.b16 %v4659
    %v4738 = vunpack.c.h.b16 %v4659
    %v4739 = vunpack.c.l.b16 %v4660
    %v4740 = vunpack.c.h.b16 %v4660
    %v4741 = vunpack.c.l.b16 %v4661
    %v4742 = vunpack.c.h.b16 %v4661
    %v4743 = vunpack.c.l.b16 %v4662
    %v4744 = vunpack.c.h.b16 %v4662
    %v4745 = vunpack.c.l.b16 %v4663
    %v4746 = vunpack.c.h.b16 %v4663
    %v4747 = vunpack.c.l.b16 %v4664
    %v4748 = vunpack.c.h.b16 %v4664
    %v4749 = vunpack.c.l.b16 %v4665
    %v4750 = vunpack.c.h.b16 %v4665
    %v4751 = vunpack.c.l.b16 %v4666
    %v4752 = vunpack.c.h.b16 %v4666
    %v4753 = vunpack.c.l.b16 %v4667
    %v4754 = vunpack.c.h.b16 %v4667
    %v4755 = vunpack.c.l.b16 %v4668
    %v4756 = vunpack.c.h.b16 %v4668
    %v4757 = vunpack.c.l.b16 %v4669
    %v4758 = vunpack.c.h.b16 %v4669
    %v4759 = vunpack.c.l.b16 %v4670
    %v4760 = vunpack.c.h.b16 %v4670
    %v4761 = vunpack.c.l.b16 %v4671
    %v4762 = vunpack.c.h.b16 %v4671
    %v4763 = vunpack.c.l.b16 %v4672
    %v4764 = vunpack.c.h.b16 %v4672
    %v4765 = vunpack.c.l.b16 %v4673
    %v4766 = vunpack.c.h.b16 %v4673
    %v4767 = vunpack.c.l.b16 %v4674
    %v4768 = vunpack.c.h.b16 %v4674
    %v4769 = vunpack.c.l.b16 %v4675
    %v4770 = vunpack.c.h.b16 %v4675
    %v4771 = vunpack.c.l.b16 %v4676
    %v4772 = vunpack.c.h.b16 %v4676
    %v4773 = vpack.c.b16 %v4713, %v4709
    %v4774 = vpack.c.b16 %v4714, %v4710
    %v4775 = vpack.c.b16 %v4715, %v4711
    %v4776 = vpack.c.b16 %v4716, %v4712
    %v4777 = vpack.c.b16 %v4721, %v4717
    %v4778 = vpack.c.b16 %v4722, %v4718
    %v4779 = vpack.c.b16 %v4723, %v4719
    %v4780 = vpack.c.b16 %v4724, %v4720
    %v4781 = vpack.c.b16 %v4729, %v4725
    %v4782 = vpack.c.b16 %v4730, %v4726
    %v4783 = vpack.c.b16 %v4731, %v4727
    %v4784 = vpack.c.b16 %v4732, %v4728
    %v4785 = vpack.c.b16 %v4737, %v4733
    %v4786 = vpack.c.b16 %v4738, %v4734
    %v4787 = vpack.c.b16 %v4739, %v4735
    %v4788 = vpack.c.b16 %v4740, %v4736
    %v4789 = vpack.c.b16 %v4745, %v4741
    %v4790 = vpack.c.b16 %v4746, %v4742
    %v4791 = vpack.c.b16 %v4747, %v4743
    %v4792 = vpack.c.b16 %v4748, %v4744
    %v4793 = vpack.c.b16 %v4753, %v4749
    %v4794 = vpack.c.b16 %v4754, %v4750
    %v4795 = vpack.c.b16 %v4755, %v4751
    %v4796 = vpack.c.b16 %v4756, %v4752
    %v4797 = vpack.c.b16 %v4761, %v4757
    %v4798 = vpack.c.b16 %v4762, %v4758
    %v4799 = vpack.c.b16 %v4763, %v4759
    %v4800 = vpack.c.b16 %v4764, %v4760
    %v4801 = vpack.c.b16 %v4769, %v4765
    %v4802 = vpack.c.b16 %v4770, %v4766
    %v4803 = vpack.c.b16 %v4771, %v4767
    %v4804 = vpack.c.b16 %v4772, %v4768
    %4837 = vmatpush.bf16.msra.mxu0 %v4801
    %4838 = vmatpush.bf16.msra.mxu0 %v4797
    %4839 = vmatpush.bf16.msra.mxu0 %v4793
    %4840 = vmatpush.bf16.msra.mxu0 %v4789
    %4841 = vmatpush.bf16.msra.mxu0 %v4785
    %4842 = vmatpush.bf16.msra.mxu0 %v4781
    %4843 = vmatpush.bf16.msra.mxu0 %v4777
    %4844 = vmatpush.bf16.msra.mxu0 %v4773
    %4845 = vmatmul.bf16.gmra.mxu0 %v4398
    %v4846 = vpop.f32.mrf.mxu0
    %v4847 = vadd.f32 0.0, %v4846
    %v4848 = vpop.f32.mrf.mxu0
    %4849 = vdwg.mxu0
    %4850 = vmatpush.bf16.msra.mxu0 %v4802
    %4851 = vmatpush.bf16.msra.mxu0 %v4798
    %4852 = vmatpush.bf16.msra.mxu0 %v4794
    %4853 = vmatpush.bf16.msra.mxu0 %v4790
    %4854 = vmatpush.bf16.msra.mxu0 %v4786
    %4855 = vmatpush.bf16.msra.mxu0 %v4782
    %4856 = vmatpush.bf16.msra.mxu0 %v4778
    %4857 = vmatpush.bf16.msra.mxu0 %v4774
    %4858 = vmatmul.bf16.gmra.mxu0 %v4398
    %v4859 = vpop.f32.mrf.mxu0
    %v4860 = vadd.f32 0.0, %v4859
    %v4861 = vpop.f32.mrf.mxu0
    %4862 = vdwg.mxu0
    %4863 = vmatpush.bf16.msra.mxu0 %v4803
    %4864 = vmatpush.bf16.msra.mxu0 %v4799
    %4865 = vmatpush.bf16.msra.mxu0 %v4795
    %4866 = vmatpush.bf16.msra.mxu0 %v4791
    %4867 = vmatpush.bf16.msra.mxu0 %v4787
    %4868 = vmatpush.bf16.msra.mxu0 %v4783
    %4869 = vmatpush.bf16.msra.mxu0 %v4779
    %4870 = vmatpush.bf16.msra.mxu0 %v4775
    %4871 = vmatmul.bf16.gmra.mxu0 %v4398
    %v4872 = vpop.f32.mrf.mxu0
    %v4873 = vadd.f32 0.0, %v4872
    %v4874 = vpop.f32.mrf.mxu0
    %4875 = vdwg.mxu0
    %4876 = vmatpush.bf16.msra.mxu0 %v4804
    %4877 = vmatpush.bf16.msra.mxu0 %v4800
    %4878 = vmatpush.bf16.msra.mxu0 %v4796
    %4879 = vmatpush.bf16.msra.mxu0 %v4792
    %4880 = vmatpush.bf16.msra.mxu0 %v4788
    %4881 = vmatpush.bf16.msra.mxu0 %v4784
    %4882 = vmatpush.bf16.msra.mxu0 %v4780
    %4883 = vmatpush.bf16.msra.mxu0 %v4776
    %4884 = vmatmul.bf16.gmra.mxu0 %v4398
    %v4885 = vpop.f32.mrf.mxu0
    %v4886 = vadd.f32 0.0, %v4885
    %v4887 = vpop.f32.mrf.mxu0
    %4888 = vdwg.mxu0
    %v4889 = vld [vmem:[#allocation2 + $0xc0] sm:$0xff]
    %v4890 = vld [vmem:[#allocation2 + $0xc8] sm:$0xff]
    %v4891 = vld [vmem:[#allocation2 + $0xd0] sm:$0xff]
    %v4892 = vld [vmem:[#allocation2 + $0xd8] sm:$0xff]
    %v4893 = vadd.f32 %v4889, %v4603
    %v4894 = vadd.f32 %v4890, %v4616
    %v4895 = vadd.f32 %v4891, %v4629
    %v4896 = vadd.f32 %v4892, %v4642
    %v4897 = vxor.u32 %v4893, 2147483648
    %v4898 = vmul.f32 %v4897, 1.442695
    %v4899 = vpow.pop %v4898
    %v4900 = vadd.f32 %v4899, 1.0
    %v4901 = vrcp.pop %v4900
    %v4902 = vmul.f32 %v4900, %v4901
    %v4903 = vsub.f32 1.0, %v4902
    %v4904 = vmul.f32 %v4901, %v4903
    %v4905 = vadd.f32 %v4901, %v4904
    %vm4906 = vweird.f32 %v4900
    %vm4907 = vweird.f32 %v4901
    %vm4908 = vmor %vm4906, %vm4907
    %v4909 = vsel %vm4908, %v4901, %v4905
    %v4910 = vand.u32 2147483647, %v4900
    %vm4911 = vcmp.eq.f32.partialorder %v4910, 8.507059e+37
    %v4912 = vand.u32 %v4900, 2147483648
    %v4913 = vor.u32 1.1754944e-38, %v4912
    %v4914 = vsel %vm4911, %v4913, %v4909
    %v4915 = vmul.f32 1.0, %v4914
    %v4916 = vxor.u32 %v4894, 2147483648
    %v4917 = vmul.f32 %v4916, 1.442695
    %v4918 = vpow.pop %v4917
    %v4919 = vadd.f32 %v4918, 1.0
    %v4920 = vrcp.pop %v4919
    %v4921 = vmul.f32 %v4919, %v4920
    %v4922 = vsub.f32 1.0, %v4921
    %v4923 = vmul.f32 %v4920, %v4922
    %v4924 = vadd.f32 %v4920, %v4923
    %vm4925 = vweird.f32 %v4919
    %vm4926 = vweird.f32 %v4920
    %vm4927 = vmor %vm4925, %vm4926
    %v4928 = vsel %vm4927, %v4920, %v4924
    %v4929 = vand.u32 2147483647, %v4919
    %vm4930 = vcmp.eq.f32.partialorder %v4929, 8.507059e+37
    %v4931 = vand.u32 %v4919, 2147483648
    %v4932 = vor.u32 1.1754944e-38, %v4931
    %v4933 = vsel %vm4930, %v4932, %v4928
    %v4934 = vmul.f32 1.0, %v4933
    %v4935 = vtanh.pop %v4895
    %v4936 = vxor.u32 %v4896, 2147483648
    %v4937 = vmul.f32 %v4936, 1.442695
    %v4938 = vpow.pop %v4937
    %v4939 = vadd.f32 %v4938, 1.0
    %v4940 = vrcp.pop %v4939
    %v4941 = vmul.f32 %v4939, %v4940
    %v4942 = vsub.f32 1.0, %v4941
    %v4943 = vmul.f32 %v4940, %v4942
    %v4944 = vadd.f32 %v4940, %v4943
    %vm4945 = vweird.f32 %v4939
    %vm4946 = vweird.f32 %v4940
    %vm4947 = vmor %vm4945, %vm4946
    %v4948 = vsel %vm4947, %v4940, %v4944
    %v4949 = vand.u32 2147483647, %v4939
    %vm4950 = vcmp.eq.f32.partialorder %v4949, 8.507059e+37
    %v4951 = vand.u32 %v4939, 2147483648
    %v4952 = vor.u32 1.1754944e-38, %v4951
    %v4953 = vsel %vm4950, %v4952, %v4948
    %v4954 = vmul.f32 1.0, %v4953
    %v4955 = vmul.f32 %v4934, %v4323
    %v4956 = vmul.f32 %v4915, %v4935
    %v4957 = vadd.f32 %v4955, %v4956
    %v4958 = vtanh.pop %v4957
    %v4959 = vmul.f32 %v4954, %v4958
    %v4960 = vld [vmem:[#allocation3 + $0x20] sm:$0xff]
    %v4961 = vld [vmem:[#allocation3 + $0x28] sm:$0xff]
    %v4962 = vld [vmem:[#allocation3 + $0x30] sm:$0xff]
    %v4963 = vld [vmem:[#allocation3 + $0x38] sm:$0xff]
    %v4964 = vadd.f32 %v4960, %v4847
    %v4965 = vadd.f32 %v4961, %v4860
    %v4966 = vadd.f32 %v4962, %v4873
    %v4967 = vadd.f32 %v4963, %v4886
    %v4968 = vxor.u32 %v4964, 2147483648
    %v4969 = vmul.f32 %v4968, 1.442695
    %v4970 = vpow.pop %v4969
    %v4971 = vadd.f32 %v4970, 1.0
    %v4972 = vrcp.pop %v4971
    %v4973 = vmul.f32 %v4971, %v4972
    %v4974 = vsub.f32 1.0, %v4973
    %v4975 = vmul.f32 %v4972, %v4974
    %v4976 = vadd.f32 %v4972, %v4975
    %vm4977 = vweird.f32 %v4971
    %vm4978 = vweird.f32 %v4972
    %vm4979 = vmor %vm4977, %vm4978
    %v4980 = vsel %vm4979, %v4972, %v4976
    %v4981 = vand.u32 2147483647, %v4971
    %vm4982 = vcmp.eq.f32.partialorder %v4981, 8.507059e+37
    %v4983 = vand.u32 %v4971, 2147483648
    %v4984 = vor.u32 1.1754944e-38, %v4983
    %v4985 = vsel %vm4982, %v4984, %v4980
    %v4986 = vmul.f32 1.0, %v4985
    %v4987 = vxor.u32 %v4965, 2147483648
    %v4988 = vmul.f32 %v4987, 1.442695
    %v4989 = vpow.pop %v4988
    %v4990 = vadd.f32 %v4989, 1.0
    %v4991 = vrcp.pop %v4990
    %v4992 = vmul.f32 %v4990, %v4991
    %v4993 = vsub.f32 1.0, %v4992
    %v4994 = vmul.f32 %v4991, %v4993
    %v4995 = vadd.f32 %v4991, %v4994
    %vm4996 = vweird.f32 %v4990
    %vm4997 = vweird.f32 %v4991
    %vm4998 = vmor %vm4996, %vm4997
    %v4999 = vsel %vm4998, %v4991, %v4995
    %v5000 = vand.u32 2147483647, %v4990
    %vm5001 = vcmp.eq.f32.partialorder %v5000, 8.507059e+37
    %v5002 = vand.u32 %v4990, 2147483648
    %v5003 = vor.u32 1.1754944e-38, %v5002
    %v5004 = vsel %vm5001, %v5003, %v4999
    %v5005 = vmul.f32 1.0, %v5004
    %v5006 = vtanh.pop %v4966
    %v5007 = vxor.u32 %v4967, 2147483648
    %v5008 = vmul.f32 %v5007, 1.442695
    %v5009 = vpow.pop %v5008
    %v5010 = vadd.f32 %v5009, 1.0
    %v5011 = vrcp.pop %v5010
    %v5012 = vmul.f32 %v5010, %v5011
    %v5013 = vsub.f32 1.0, %v5012
    %v5014 = vmul.f32 %v5011, %v5013
    %v5015 = vadd.f32 %v5011, %v5014
    %vm5016 = vweird.f32 %v5010
    %vm5017 = vweird.f32 %v5011
    %vm5018 = vmor %vm5016, %vm5017
    %v5019 = vsel %vm5018, %v5011, %v5015
    %v5020 = vand.u32 2147483647, %v5010
    %vm5021 = vcmp.eq.f32.partialorder %v5020, 8.507059e+37
    %v5022 = vand.u32 %v5010, 2147483648
    %v5023 = vor.u32 1.1754944e-38, %v5022
    %v5024 = vsel %vm5021, %v5023, %v5019
    %v5025 = vmul.f32 1.0, %v5024
    %v5026 = vmul.f32 %v5005, %v4394
    %v5027 = vmul.f32 %v4986, %v5006
    %v5028 = vadd.f32 %v5026, %v5027
    %v5029 = vtanh.pop %v5028
    %v5030 = vmul.f32 %v5025, %v5029
    %v5031 = vpack.c.bf16 %v4959, %v4959
    %v5032 = vpack.c.bf16 %v5030, %v5030
    %5033 = vst [vmem:[#allocation4 + $0x30] sm:$0xf] %v5031
    %5034 = vst [vmem:[#allocation4 + $0xc] sm:$0xf] %v5032
    %v5035 = vld [vmem:[#allocation9] sm:$0xff]
    %v5036 = vld [vmem:[#allocation9 + $0x8] sm:$0xff]
    %v5037 = vld [vmem:[#allocation9 + $0x10] sm:$0xff]
    %v5038 = vld [vmem:[#allocation9 + $0x18] sm:$0xff]
    %v5039 = vld [vmem:[#allocation9 + $0x20] sm:$0xff]
    %v5040 = vld [vmem:[#allocation9 + $0x28] sm:$0xff]
    %v5041 = vld [vmem:[#allocation9 + $0x30] sm:$0xff]
    %v5042 = vld [vmem:[#allocation9 + $0x38] sm:$0xff]
    %v5043 = vld [vmem:[#allocation9 + $0x40] sm:$0xff]
    %v5044 = vld [vmem:[#allocation9 + $0x48] sm:$0xff]
    %v5045 = vld [vmem:[#allocation9 + $0x50] sm:$0xff]
    %v5046 = vld [vmem:[#allocation9 + $0x58] sm:$0xff]
    %v5047 = vld [vmem:[#allocation9 + $0x60] sm:$0xff]
    %v5048 = vld [vmem:[#allocation9 + $0x68] sm:$0xff]
    %v5049 = vld [vmem:[#allocation9 + $0x70] sm:$0xff]
    %v5050 = vld [vmem:[#allocation9 + $0x78] sm:$0xff]
    %v5051 = vld [vmem:[#allocation9 + $0x80] sm:$0xff]
    %v5052 = vld [vmem:[#allocation9 + $0x88] sm:$0xff]
    %v5053 = vld [vmem:[#allocation9 + $0x90] sm:$0xff]
    %v5054 = vld [vmem:[#allocation9 + $0x98] sm:$0xff]
    %v5055 = vld [vmem:[#allocation9 + $0xa0] sm:$0xff]
    %v5056 = vld [vmem:[#allocation9 + $0xa8] sm:$0xff]
    %v5057 = vld [vmem:[#allocation9 + $0xb0] sm:$0xff]
    %v5058 = vld [vmem:[#allocation9 + $0xb8] sm:$0xff]
    %v5059 = vld [vmem:[#allocation9 + $0xc0] sm:$0xff]
    %v5060 = vld [vmem:[#allocation9 + $0xc8] sm:$0xff]
    %v5061 = vld [vmem:[#allocation9 + $0xd0] sm:$0xff]
    %v5062 = vld [vmem:[#allocation9 + $0xd8] sm:$0xff]
    %v5063 = vld [vmem:[#allocation9 + $0xe0] sm:$0xff]
    %v5064 = vld [vmem:[#allocation9 + $0xe8] sm:$0xff]
    %v5065 = vld [vmem:[#allocation9 + $0xf0] sm:$0xff]
    %v5066 = vld [vmem:[#allocation9 + $0xf8] sm:$0xff]
    %v5099 = vunpack.c.l.b16 %v5035
    %v5100 = vunpack.c.h.b16 %v5035
    %v5101 = vunpack.c.l.b16 %v5036
    %v5102 = vunpack.c.h.b16 %v5036
    %v5103 = vunpack.c.l.b16 %v5037
    %v5104 = vunpack.c.h.b16 %v5037
    %v5105 = vunpack.c.l.b16 %v5038
    %v5106 = vunpack.c.h.b16 %v5038
    %v5107 = vunpack.c.l.b16 %v5039
    %v5108 = vunpack.c.h.b16 %v5039
    %v5109 = vunpack.c.l.b16 %v5040
    %v5110 = vunpack.c.h.b16 %v5040
    %v5111 = vunpack.c.l.b16 %v5041
    %v5112 = vunpack.c.h.b16 %v5041
    %v5113 = vunpack.c.l.b16 %v5042
    %v5114 = vunpack.c.h.b16 %v5042
    %v5115 = vunpack.c.l.b16 %v5043
    %v5116 = vunpack.c.h.b16 %v5043
    %v5117 = vunpack.c.l.b16 %v5044
    %v5118 = vunpack.c.h.b16 %v5044
    %v5119 = vunpack.c.l.b16 %v5045
    %v5120 = vunpack.c.h.b16 %v5045
    %v5121 = vunpack.c.l.b16 %v5046
    %v5122 = vunpack.c.h.b16 %v5046
    %v5123 = vunpack.c.l.b16 %v5047
    %v5124 = vunpack.c.h.b16 %v5047
    %v5125 = vunpack.c.l.b16 %v5048
    %v5126 = vunpack.c.h.b16 %v5048
    %v5127 = vunpack.c.l.b16 %v5049
    %v5128 = vunpack.c.h.b16 %v5049
    %v5129 = vunpack.c.l.b16 %v5050
    %v5130 = vunpack.c.h.b16 %v5050
    %v5131 = vunpack.c.l.b16 %v5051
    %v5132 = vunpack.c.h.b16 %v5051
    %v5133 = vunpack.c.l.b16 %v5052
    %v5134 = vunpack.c.h.b16 %v5052
    %v5135 = vunpack.c.l.b16 %v5053
    %v5136 = vunpack.c.h.b16 %v5053
    %v5137 = vunpack.c.l.b16 %v5054
    %v5138 = vunpack.c.h.b16 %v5054
    %v5139 = vunpack.c.l.b16 %v5055
    %v5140 = vunpack.c.h.b16 %v5055
    %v5141 = vunpack.c.l.b16 %v5056
    %v5142 = vunpack.c.h.b16 %v5056
    %v5143 = vunpack.c.l.b16 %v5057
    %v5144 = vunpack.c.h.b16 %v5057
    %v5145 = vunpack.c.l.b16 %v5058
    %v5146 = vunpack.c.h.b16 %v5058
    %v5147 = vunpack.c.l.b16 %v5059
    %v5148 = vunpack.c.h.b16 %v5059
    %v5149 = vunpack.c.l.b16 %v5060
    %v5150 = vunpack.c.h.b16 %v5060
    %v5151 = vunpack.c.l.b16 %v5061
    %v5152 = vunpack.c.h.b16 %v5061
    %v5153 = vunpack.c.l.b16 %v5062
    %v5154 = vunpack.c.h.b16 %v5062
    %v5155 = vunpack.c.l.b16 %v5063
    %v5156 = vunpack.c.h.b16 %v5063
    %v5157 = vunpack.c.l.b16 %v5064
    %v5158 = vunpack.c.h.b16 %v5064
    %v5159 = vunpack.c.l.b16 %v5065
    %v5160 = vunpack.c.h.b16 %v5065
    %v5161 = vunpack.c.l.b16 %v5066
    %v5162 = vunpack.c.h.b16 %v5066
    %v5163 = vpack.c.b16 %v5103, %v5099
    %v5164 = vpack.c.b16 %v5104, %v5100
    %v5165 = vpack.c.b16 %v5105, %v5101
    %v5166 = vpack.c.b16 %v5106, %v5102
    %v5167 = vpack.c.b16 %v5111, %v5107
    %v5168 = vpack.c.b16 %v5112, %v5108
    %v5169 = vpack.c.b16 %v5113, %v5109
    %v5170 = vpack.c.b16 %v5114, %v5110
    %v5171 = vpack.c.b16 %v5119, %v5115
    %v5172 = vpack.c.b16 %v5120, %v5116
    %v5173 = vpack.c.b16 %v5121, %v5117
    %v5174 = vpack.c.b16 %v5122, %v5118
    %v5175 = vpack.c.b16 %v5127, %v5123
    %v5176 = vpack.c.b16 %v5128, %v5124
    %v5177 = vpack.c.b16 %v5129, %v5125
    %v5178 = vpack.c.b16 %v5130, %v5126
    %v5179 = vpack.c.b16 %v5135, %v5131
    %v5180 = vpack.c.b16 %v5136, %v5132
    %v5181 = vpack.c.b16 %v5137, %v5133
    %v5182 = vpack.c.b16 %v5138, %v5134
    %v5183 = vpack.c.b16 %v5143, %v5139
    %v5184 = vpack.c.b16 %v5144, %v5140
    %v5185 = vpack.c.b16 %v5145, %v5141
    %v5186 = vpack.c.b16 %v5146, %v5142
    %v5187 = vpack.c.b16 %v5151, %v5147
    %v5188 = vpack.c.b16 %v5152, %v5148
    %v5189 = vpack.c.b16 %v5153, %v5149
    %v5190 = vpack.c.b16 %v5154, %v5150
    %v5191 = vpack.c.b16 %v5159, %v5155
    %v5192 = vpack.c.b16 %v5160, %v5156
    %v5193 = vpack.c.b16 %v5161, %v5157
    %v5194 = vpack.c.b16 %v5162, %v5158
    %5227 = vmatpush.bf16.msra.mxu0 %v5191
    %5228 = vmatpush.bf16.msra.mxu0 %v5187
    %5229 = vmatpush.bf16.msra.mxu0 %v5183
    %5230 = vmatpush.bf16.msra.mxu0 %v5179
    %5231 = vmatpush.bf16.msra.mxu0 %v5175
    %5232 = vmatpush.bf16.msra.mxu0 %v5171
    %5233 = vmatpush.bf16.msra.mxu0 %v5167
    %5234 = vmatpush.bf16.msra.mxu0 %v5163
    %5235 = vmatmul.bf16.gmra.mxu0 %v5031
    %v5236 = vpop.f32.mrf.mxu0
    %v5237 = vadd.f32 0.0, %v5236
    %v5238 = vpop.f32.mrf.mxu0
    %5239 = vdwg.mxu0
    %5240 = vmatpush.bf16.msra.mxu0 %v5192
    %5241 = vmatpush.bf16.msra.mxu0 %v5188
    %5242 = vmatpush.bf16.msra.mxu0 %v5184
    %5243 = vmatpush.bf16.msra.mxu0 %v5180
    %5244 = vmatpush.bf16.msra.mxu0 %v5176
    %5245 = vmatpush.bf16.msra.mxu0 %v5172
    %5246 = vmatpush.bf16.msra.mxu0 %v5168
    %5247 = vmatpush.bf16.msra.mxu0 %v5164
    %5248 = vmatmul.bf16.gmra.mxu0 %v5031
    %v5249 = vpop.f32.mrf.mxu0
    %v5250 = vadd.f32 0.0, %v5249
    %v5251 = vpop.f32.mrf.mxu0
    %5252 = vdwg.mxu0
    %5253 = vmatpush.bf16.msra.mxu0 %v5193
    %5254 = vmatpush.bf16.msra.mxu0 %v5189
    %5255 = vmatpush.bf16.msra.mxu0 %v5185
    %5256 = vmatpush.bf16.msra.mxu0 %v5181
    %5257 = vmatpush.bf16.msra.mxu0 %v5177
    %5258 = vmatpush.bf16.msra.mxu0 %v5173
    %5259 = vmatpush.bf16.msra.mxu0 %v5169
    %5260 = vmatpush.bf16.msra.mxu0 %v5165
    %5261 = vmatmul.bf16.gmra.mxu0 %v5031
    %v5262 = vpop.f32.mrf.mxu0
    %v5263 = vadd.f32 0.0, %v5262
    %v5264 = vpop.f32.mrf.mxu0
    %5265 = vdwg.mxu0
    %5266 = vmatpush.bf16.msra.mxu0 %v5194
    %5267 = vmatpush.bf16.msra.mxu0 %v5190
    %5268 = vmatpush.bf16.msra.mxu0 %v5186
    %5269 = vmatpush.bf16.msra.mxu0 %v5182
    %5270 = vmatpush.bf16.msra.mxu0 %v5178
    %5271 = vmatpush.bf16.msra.mxu0 %v5174
    %5272 = vmatpush.bf16.msra.mxu0 %v5170
    %5273 = vmatpush.bf16.msra.mxu0 %v5166
    %5274 = vmatmul.bf16.gmra.mxu0 %v5031
    %v5275 = vpop.f32.mrf.mxu0
    %v5276 = vadd.f32 0.0, %v5275
    %v5277 = vpop.f32.mrf.mxu0
    %5278 = vdwg.mxu0
    %v5279 = vld [vmem:[#allocation10] sm:$0xff]
    %v5280 = vld [vmem:[#allocation10 + $0x8] sm:$0xff]
    %v5281 = vld [vmem:[#allocation10 + $0x10] sm:$0xff]
    %v5282 = vld [vmem:[#allocation10 + $0x18] sm:$0xff]
    %v5283 = vld [vmem:[#allocation10 + $0x20] sm:$0xff]
    %v5284 = vld [vmem:[#allocation10 + $0x28] sm:$0xff]
    %v5285 = vld [vmem:[#allocation10 + $0x30] sm:$0xff]
    %v5286 = vld [vmem:[#allocation10 + $0x38] sm:$0xff]
    %v5287 = vld [vmem:[#allocation10 + $0x40] sm:$0xff]
    %v5288 = vld [vmem:[#allocation10 + $0x48] sm:$0xff]
    %v5289 = vld [vmem:[#allocation10 + $0x50] sm:$0xff]
    %v5290 = vld [vmem:[#allocation10 + $0x58] sm:$0xff]
    %v5291 = vld [vmem:[#allocation10 + $0x60] sm:$0xff]
    %v5292 = vld [vmem:[#allocation10 + $0x68] sm:$0xff]
    %v5293 = vld [vmem:[#allocation10 + $0x70] sm:$0xff]
    %v5294 = vld [vmem:[#allocation10 + $0x78] sm:$0xff]
    %v5295 = vld [vmem:[#allocation10 + $0x80] sm:$0xff]
    %v5296 = vld [vmem:[#allocation10 + $0x88] sm:$0xff]
    %v5297 = vld [vmem:[#allocation10 + $0x90] sm:$0xff]
    %v5298 = vld [vmem:[#allocation10 + $0x98] sm:$0xff]
    %v5299 = vld [vmem:[#allocation10 + $0xa0] sm:$0xff]
    %v5300 = vld [vmem:[#allocation10 + $0xa8] sm:$0xff]
    %v5301 = vld [vmem:[#allocation10 + $0xb0] sm:$0xff]
    %v5302 = vld [vmem:[#allocation10 + $0xb8] sm:$0xff]
    %v5303 = vld [vmem:[#allocation10 + $0xc0] sm:$0xff]
    %v5304 = vld [vmem:[#allocation10 + $0xc8] sm:$0xff]
    %v5305 = vld [vmem:[#allocation10 + $0xd0] sm:$0xff]
    %v5306 = vld [vmem:[#allocation10 + $0xd8] sm:$0xff]
    %v5307 = vld [vmem:[#allocation10 + $0xe0] sm:$0xff]
    %v5308 = vld [vmem:[#allocation10 + $0xe8] sm:$0xff]
    %v5309 = vld [vmem:[#allocation10 + $0xf0] sm:$0xff]
    %v5310 = vld [vmem:[#allocation10 + $0xf8] sm:$0xff]
    %v5343 = vunpack.c.l.b16 %v5279
    %v5344 = vunpack.c.h.b16 %v5279
    %v5345 = vunpack.c.l.b16 %v5280
    %v5346 = vunpack.c.h.b16 %v5280
    %v5347 = vunpack.c.l.b16 %v5281
    %v5348 = vunpack.c.h.b16 %v5281
    %v5349 = vunpack.c.l.b16 %v5282
    %v5350 = vunpack.c.h.b16 %v5282
    %v5351 = vunpack.c.l.b16 %v5283
    %v5352 = vunpack.c.h.b16 %v5283
    %v5353 = vunpack.c.l.b16 %v5284
    %v5354 = vunpack.c.h.b16 %v5284
    %v5355 = vunpack.c.l.b16 %v5285
    %v5356 = vunpack.c.h.b16 %v5285
    %v5357 = vunpack.c.l.b16 %v5286
    %v5358 = vunpack.c.h.b16 %v5286
    %v5359 = vunpack.c.l.b16 %v5287
    %v5360 = vunpack.c.h.b16 %v5287
    %v5361 = vunpack.c.l.b16 %v5288
    %v5362 = vunpack.c.h.b16 %v5288
    %v5363 = vunpack.c.l.b16 %v5289
    %v5364 = vunpack.c.h.b16 %v5289
    %v5365 = vunpack.c.l.b16 %v5290
    %v5366 = vunpack.c.h.b16 %v5290
    %v5367 = vunpack.c.l.b16 %v5291
    %v5368 = vunpack.c.h.b16 %v5291
    %v5369 = vunpack.c.l.b16 %v5292
    %v5370 = vunpack.c.h.b16 %v5292
    %v5371 = vunpack.c.l.b16 %v5293
    %v5372 = vunpack.c.h.b16 %v5293
    %v5373 = vunpack.c.l.b16 %v5294
    %v5374 = vunpack.c.h.b16 %v5294
    %v5375 = vunpack.c.l.b16 %v5295
    %v5376 = vunpack.c.h.b16 %v5295
    %v5377 = vunpack.c.l.b16 %v5296
    %v5378 = vunpack.c.h.b16 %v5296
    %v5379 = vunpack.c.l.b16 %v5297
    %v5380 = vunpack.c.h.b16 %v5297
    %v5381 = vunpack.c.l.b16 %v5298
    %v5382 = vunpack.c.h.b16 %v5298
    %v5383 = vunpack.c.l.b16 %v5299
    %v5384 = vunpack.c.h.b16 %v5299
    %v5385 = vunpack.c.l.b16 %v5300
    %v5386 = vunpack.c.h.b16 %v5300
    %v5387 = vunpack.c.l.b16 %v5301
    %v5388 = vunpack.c.h.b16 %v5301
    %v5389 = vunpack.c.l.b16 %v5302
    %v5390 = vunpack.c.h.b16 %v5302
    %v5391 = vunpack.c.l.b16 %v5303
    %v5392 = vunpack.c.h.b16 %v5303
    %v5393 = vunpack.c.l.b16 %v5304
    %v5394 = vunpack.c.h.b16 %v5304
    %v5395 = vunpack.c.l.b16 %v5305
    %v5396 = vunpack.c.h.b16 %v5305
    %v5397 = vunpack.c.l.b16 %v5306
    %v5398 = vunpack.c.h.b16 %v5306
    %v5399 = vunpack.c.l.b16 %v5307
    %v5400 = vunpack.c.h.b16 %v5307
    %v5401 = vunpack.c.l.b16 %v5308
    %v5402 = vunpack.c.h.b16 %v5308
    %v5403 = vunpack.c.l.b16 %v5309
    %v5404 = vunpack.c.h.b16 %v5309
    %v5405 = vunpack.c.l.b16 %v5310
    %v5406 = vunpack.c.h.b16 %v5310
    %v5407 = vpack.c.b16 %v5347, %v5343
    %v5408 = vpack.c.b16 %v5348, %v5344
    %v5409 = vpack.c.b16 %v5349, %v5345
    %v5410 = vpack.c.b16 %v5350, %v5346
    %v5411 = vpack.c.b16 %v5355, %v5351
    %v5412 = vpack.c.b16 %v5356, %v5352
    %v5413 = vpack.c.b16 %v5357, %v5353
    %v5414 = vpack.c.b16 %v5358, %v5354
    %v5415 = vpack.c.b16 %v5363, %v5359
    %v5416 = vpack.c.b16 %v5364, %v5360
    %v5417 = vpack.c.b16 %v5365, %v5361
    %v5418 = vpack.c.b16 %v5366, %v5362
    %v5419 = vpack.c.b16 %v5371, %v5367
    %v5420 = vpack.c.b16 %v5372, %v5368
    %v5421 = vpack.c.b16 %v5373, %v5369
    %v5422 = vpack.c.b16 %v5374, %v5370
    %v5423 = vpack.c.b16 %v5379, %v5375
    %v5424 = vpack.c.b16 %v5380, %v5376
    %v5425 = vpack.c.b16 %v5381, %v5377
    %v5426 = vpack.c.b16 %v5382, %v5378
    %v5427 = vpack.c.b16 %v5387, %v5383
    %v5428 = vpack.c.b16 %v5388, %v5384
    %v5429 = vpack.c.b16 %v5389, %v5385
    %v5430 = vpack.c.b16 %v5390, %v5386
    %v5431 = vpack.c.b16 %v5395, %v5391
    %v5432 = vpack.c.b16 %v5396, %v5392
    %v5433 = vpack.c.b16 %v5397, %v5393
    %v5434 = vpack.c.b16 %v5398, %v5394
    %v5435 = vpack.c.b16 %v5403, %v5399
    %v5436 = vpack.c.b16 %v5404, %v5400
    %v5437 = vpack.c.b16 %v5405, %v5401
    %v5438 = vpack.c.b16 %v5406, %v5402
    %5471 = vmatpush.bf16.msra.mxu0 %v5435
    %5472 = vmatpush.bf16.msra.mxu0 %v5431
    %5473 = vmatpush.bf16.msra.mxu0 %v5427
    %5474 = vmatpush.bf16.msra.mxu0 %v5423
    %5475 = vmatpush.bf16.msra.mxu0 %v5419
    %5476 = vmatpush.bf16.msra.mxu0 %v5415
    %5477 = vmatpush.bf16.msra.mxu0 %v5411
    %5478 = vmatpush.bf16.msra.mxu0 %v5407
    %5479 = vmatmul.bf16.gmra.mxu0 %v5032
    %v5480 = vpop.f32.mrf.mxu0
    %v5481 = vadd.f32 0.0, %v5480
    %v5482 = vpop.f32.mrf.mxu0
    %5483 = vdwg.mxu0
    %5484 = vmatpush.bf16.msra.mxu0 %v5436
    %5485 = vmatpush.bf16.msra.mxu0 %v5432
    %5486 = vmatpush.bf16.msra.mxu0 %v5428
    %5487 = vmatpush.bf16.msra.mxu0 %v5424
    %5488 = vmatpush.bf16.msra.mxu0 %v5420
    %5489 = vmatpush.bf16.msra.mxu0 %v5416
    %5490 = vmatpush.bf16.msra.mxu0 %v5412
    %5491 = vmatpush.bf16.msra.mxu0 %v5408
    %5492 = vmatmul.bf16.gmra.mxu0 %v5032
    %v5493 = vpop.f32.mrf.mxu0
    %v5494 = vadd.f32 0.0, %v5493
    %v5495 = vpop.f32.mrf.mxu0
    %5496 = vdwg.mxu0
    %5497 = vmatpush.bf16.msra.mxu0 %v5437
    %5498 = vmatpush.bf16.msra.mxu0 %v5433
    %5499 = vmatpush.bf16.msra.mxu0 %v5429
    %5500 = vmatpush.bf16.msra.mxu0 %v5425
    %5501 = vmatpush.bf16.msra.mxu0 %v5421
    %5502 = vmatpush.bf16.msra.mxu0 %v5417
    %5503 = vmatpush.bf16.msra.mxu0 %v5413
    %5504 = vmatpush.bf16.msra.mxu0 %v5409
    %5505 = vmatmul.bf16.gmra.mxu0 %v5032
    %v5506 = vpop.f32.mrf.mxu0
    %v5507 = vadd.f32 0.0, %v5506
    %v5508 = vpop.f32.mrf.mxu0
    %5509 = vdwg.mxu0
    %5510 = vmatpush.bf16.msra.mxu0 %v5438
    %5511 = vmatpush.bf16.msra.mxu0 %v5434
    %5512 = vmatpush.bf16.msra.mxu0 %v5430
    %5513 = vmatpush.bf16.msra.mxu0 %v5426
    %5514 = vmatpush.bf16.msra.mxu0 %v5422
    %5515 = vmatpush.bf16.msra.mxu0 %v5418
    %5516 = vmatpush.bf16.msra.mxu0 %v5414
    %5517 = vmatpush.bf16.msra.mxu0 %v5410
    %5518 = vmatmul.bf16.gmra.mxu0 %v5032
    %v5519 = vpop.f32.mrf.mxu0
    %v5520 = vadd.f32 0.0, %v5519
    %v5521 = vpop.f32.mrf.mxu0
    %5522 = vdwg.mxu0
    %v5523 = vld [vmem:[#allocation2 + $0xe0] sm:$0xff]
    %v5524 = vld [vmem:[#allocation2 + $0xe8] sm:$0xff]
    %v5525 = vld [vmem:[#allocation2 + $0xf0] sm:$0xff]
    %v5526 = vld [vmem:[#allocation2 + $0xf8] sm:$0xff]
    %v5527 = vadd.f32 %v5523, %v5237
    %v5528 = vadd.f32 %v5524, %v5250
    %v5529 = vadd.f32 %v5525, %v5263
    %v5530 = vadd.f32 %v5526, %v5276
    %v5531 = vxor.u32 %v5527, 2147483648
    %v5532 = vmul.f32 %v5531, 1.442695
    %v5533 = vpow.pop %v5532
    %v5534 = vadd.f32 %v5533, 1.0
    %v5535 = vrcp.pop %v5534
    %v5536 = vmul.f32 %v5534, %v5535
    %v5537 = vsub.f32 1.0, %v5536
    %v5538 = vmul.f32 %v5535, %v5537
    %v5539 = vadd.f32 %v5535, %v5538
    %vm5540 = vweird.f32 %v5534
    %vm5541 = vweird.f32 %v5535
    %vm5542 = vmor %vm5540, %vm5541
    %v5543 = vsel %vm5542, %v5535, %v5539
    %v5544 = vand.u32 2147483647, %v5534
    %vm5545 = vcmp.eq.f32.partialorder %v5544, 8.507059e+37
    %v5546 = vand.u32 %v5534, 2147483648
    %v5547 = vor.u32 1.1754944e-38, %v5546
    %v5548 = vsel %vm5545, %v5547, %v5543
    %v5549 = vmul.f32 1.0, %v5548
    %v5550 = vxor.u32 %v5528, 2147483648
    %v5551 = vmul.f32 %v5550, 1.442695
    %v5552 = vpow.pop %v5551
    %v5553 = vadd.f32 %v5552, 1.0
    %v5554 = vrcp.pop %v5553
    %v5555 = vmul.f32 %v5553, %v5554
    %v5556 = vsub.f32 1.0, %v5555
    %v5557 = vmul.f32 %v5554, %v5556
    %v5558 = vadd.f32 %v5554, %v5557
    %vm5559 = vweird.f32 %v5553
    %vm5560 = vweird.f32 %v5554
    %vm5561 = vmor %vm5559, %vm5560
    %v5562 = vsel %vm5561, %v5554, %v5558
    %v5563 = vand.u32 2147483647, %v5553
    %vm5564 = vcmp.eq.f32.partialorder %v5563, 8.507059e+37
    %v5565 = vand.u32 %v5553, 2147483648
    %v5566 = vor.u32 1.1754944e-38, %v5565
    %v5567 = vsel %vm5564, %v5566, %v5562
    %v5568 = vmul.f32 1.0, %v5567
    %v5569 = vtanh.pop %v5529
    %v5570 = vxor.u32 %v5530, 2147483648
    %v5571 = vmul.f32 %v5570, 1.442695
    %v5572 = vpow.pop %v5571
    %v5573 = vadd.f32 %v5572, 1.0
    %v5574 = vrcp.pop %v5573
    %v5575 = vmul.f32 %v5573, %v5574
    %v5576 = vsub.f32 1.0, %v5575
    %v5577 = vmul.f32 %v5574, %v5576
    %v5578 = vadd.f32 %v5574, %v5577
    %vm5579 = vweird.f32 %v5573
    %vm5580 = vweird.f32 %v5574
    %vm5581 = vmor %vm5579, %vm5580
    %v5582 = vsel %vm5581, %v5574, %v5578
    %v5583 = vand.u32 2147483647, %v5573
    %vm5584 = vcmp.eq.f32.partialorder %v5583, 8.507059e+37
    %v5585 = vand.u32 %v5573, 2147483648
    %v5586 = vor.u32 1.1754944e-38, %v5585
    %v5587 = vsel %vm5584, %v5586, %v5582
    %v5588 = vmul.f32 1.0, %v5587
    %v5589 = vmul.f32 %v5568, %v4957
    %v5590 = vmul.f32 %v5549, %v5569
    %v5591 = vadd.f32 %v5589, %v5590
    %v5592 = vtanh.pop %v5591
    %v5593 = vmul.f32 %v5588, %v5592
    %v5594 = vld [vmem:[#allocation3] sm:$0xff]
    %v5595 = vld [vmem:[#allocation3 + $0x8] sm:$0xff]
    %v5596 = vld [vmem:[#allocation3 + $0x10] sm:$0xff]
    %v5597 = vld [vmem:[#allocation3 + $0x18] sm:$0xff]
    %v5598 = vadd.f32 %v5594, %v5481
    %v5599 = vadd.f32 %v5595, %v5494
    %v5600 = vadd.f32 %v5596, %v5507
    %v5601 = vadd.f32 %v5597, %v5520
    %v5602 = vxor.u32 %v5598, 2147483648
    %v5603 = vmul.f32 %v5602, 1.442695
    %v5604 = vpow.pop %v5603
    %v5605 = vadd.f32 %v5604, 1.0
    %v5606 = vrcp.pop %v5605
    %v5607 = vmul.f32 %v5605, %v5606
    %v5608 = vsub.f32 1.0, %v5607
    %v5609 = vmul.f32 %v5606, %v5608
    %v5610 = vadd.f32 %v5606, %v5609
    %vm5611 = vweird.f32 %v5605
    %vm5612 = vweird.f32 %v5606
    %vm5613 = vmor %vm5611, %vm5612
    %v5614 = vsel %vm5613, %v5606, %v5610
    %v5615 = vand.u32 2147483647, %v5605
    %vm5616 = vcmp.eq.f32.partialorder %v5615, 8.507059e+37
    %v5617 = vand.u32 %v5605, 2147483648
    %v5618 = vor.u32 1.1754944e-38, %v5617
    %v5619 = vsel %vm5616, %v5618, %v5614
    %v5620 = vmul.f32 1.0, %v5619
    %v5621 = vxor.u32 %v5599, 2147483648
    %v5622 = vmul.f32 %v5621, 1.442695
    %v5623 = vpow.pop %v5622
    %v5624 = vadd.f32 %v5623, 1.0
    %v5625 = vrcp.pop %v5624
    %v5626 = vmul.f32 %v5624, %v5625
    %v5627 = vsub.f32 1.0, %v5626
    %v5628 = vmul.f32 %v5625, %v5627
    %v5629 = vadd.f32 %v5625, %v5628
    %vm5630 = vweird.f32 %v5624
    %vm5631 = vweird.f32 %v5625
    %vm5632 = vmor %vm5630, %vm5631
    %v5633 = vsel %vm5632, %v5625, %v5629
    %v5634 = vand.u32 2147483647, %v5624
    %vm5635 = vcmp.eq.f32.partialorder %v5634, 8.507059e+37
    %v5636 = vand.u32 %v5624, 2147483648
    %v5637 = vor.u32 1.1754944e-38, %v5636
    %v5638 = vsel %vm5635, %v5637, %v5633
    %v5639 = vmul.f32 1.0, %v5638
    %v5640 = vtanh.pop %v5600
    %v5641 = vxor.u32 %v5601, 2147483648
    %v5642 = vmul.f32 %v5641, 1.442695
    %v5643 = vpow.pop %v5642
    %v5644 = vadd.f32 %v5643, 1.0
    %v5645 = vrcp.pop %v5644
    %v5646 = vmul.f32 %v5644, %v5645
    %v5647 = vsub.f32 1.0, %v5646
    %v5648 = vmul.f32 %v5645, %v5647
    %v5649 = vadd.f32 %v5645, %v5648
    %vm5650 = vweird.f32 %v5644
    %vm5651 = vweird.f32 %v5645
    %vm5652 = vmor %vm5650, %vm5651
    %v5653 = vsel %vm5652, %v5645, %v5649
    %v5654 = vand.u32 2147483647, %v5644
    %vm5655 = vcmp.eq.f32.partialorder %v5654, 8.507059e+37
    %v5656 = vand.u32 %v5644, 2147483648
    %v5657 = vor.u32 1.1754944e-38, %v5656
    %v5658 = vsel %vm5655, %v5657, %v5653
    %v5659 = vmul.f32 1.0, %v5658
    %v5660 = vmul.f32 %v5639, %v5028
    %v5661 = vmul.f32 %v5620, %v5640
    %v5662 = vadd.f32 %v5660, %v5661
    %v5663 = vtanh.pop %v5662
    %v5664 = vmul.f32 %v5659, %v5663
    %v5665 = vpack.c.bf16 %v5593, %v5593
    %v5666 = vpack.c.bf16 %v5664, %v5664
    %5667 = vst [vmem:[#allocation4 + $0x38] sm:$0xf] %v5665
    %5668 = vst [vmem:[#allocation4 + $0x4] sm:$0xf] %v5666
    %v5669 = vld [vmem:[#allocation4] sm:$0xff]
    %v5670 = vld [vmem:[#allocation4 + $0x8] sm:$0xff]
    %v5671 = vld [vmem:[#allocation4 + $0x10] sm:$0xff]
    %v5672 = vld [vmem:[#allocation4 + $0x18] sm:$0xff]
    %v5673 = vld [vmem:[#allocation4 + $0x20] sm:$0xff]
    %v5674 = vld [vmem:[#allocation4 + $0x28] sm:$0xff]
    %v5675 = vld [vmem:[#allocation4 + $0x30] sm:$0xff]
    %v5676 = vld [vmem:[#allocation4 + $0x38] sm:$0xff]
    %v5677 = vld [vmem:[%s7] sm:$0xf]
    %v5678 = vld [vmem:[%s7 + $0x4] sm:$0xf]
    %v5679 = vld [vmem:[%s7 + $0x8] sm:$0xf]
    %v5680 = vld [vmem:[%s7 + $0xc] sm:$0xf]
    %v5681 = vld [vmem:[%s7 + $0x10] sm:$0xf]
    %v5682 = vld [vmem:[%s7 + $0x14] sm:$0xf]
    %v5683 = vld [vmem:[%s7 + $0x18] sm:$0xf]
    %v5684 = vld [vmem:[%s7 + $0x1c] sm:$0xf]
    %v5685 = vld [vmem:[%s7 + $0x20] sm:$0xf]
    %v5686 = vld [vmem:[%s7 + $0x24] sm:$0xf]
    %v5687 = vld [vmem:[%s7 + $0x28] sm:$0xf]
    %v5688 = vld [vmem:[%s7 + $0x2c] sm:$0xf]
    %v5689 = vld [vmem:[%s7 + $0x30] sm:$0xf]
    %v5690 = vld [vmem:[%s7 + $0x34] sm:$0xf]
    %v5691 = vld [vmem:[%s7 + $0x38] sm:$0xf]
    %v5692 = vld [vmem:[%s7 + $0x3c] sm:$0xf]
    %v5693 = vld [vmem:[%s7 + $0x40] sm:$0xf]
    %v5694 = vld [vmem:[%s7 + $0x44] sm:$0xf]
    %v5695 = vld [vmem:[%s7 + $0x48] sm:$0xf]
    %v5696 = vld [vmem:[%s7 + $0x4c] sm:$0xf]
    %v5697 = vld [vmem:[%s7 + $0x50] sm:$0xf]
    %v5698 = vld [vmem:[%s7 + $0x54] sm:$0xf]
    %v5699 = vld [vmem:[%s7 + $0x58] sm:$0xf]
    %v5700 = vld [vmem:[%s7 + $0x5c] sm:$0xf]
    %v5701 = vld [vmem:[%s7 + $0x60] sm:$0xf]
    %v5702 = vld [vmem:[%s7 + $0x64] sm:$0xf]
    %v5703 = vld [vmem:[%s7 + $0x68] sm:$0xf]
    %v5704 = vld [vmem:[%s7 + $0x6c] sm:$0xf]
    %v5705 = vld [vmem:[%s7 + $0x70] sm:$0xf]
    %v5706 = vld [vmem:[%s7 + $0x74] sm:$0xf]
    %v5707 = vld [vmem:[%s7 + $0x78] sm:$0xf]
    %v5708 = vld [vmem:[%s7 + $0x7c] sm:$0xf]
    %v5709 = vld [vmem:[%s8] sm:$0x1]
    %v5711 = vperm.slane %v5709, 0
    %v5721 = vunpack.c.l.b16 %v5669
    %v5722 = vunpack.c.h.b16 %v5669
    %v5723 = vunpack.c.l.b16 %v5670
    %v5724 = vunpack.c.h.b16 %v5670
    %v5725 = vunpack.c.l.b16 %v5671
    %v5726 = vunpack.c.h.b16 %v5671
    %v5727 = vunpack.c.l.b16 %v5672
    %v5728 = vunpack.c.h.b16 %v5672
    %v5729 = vunpack.c.l.b16 %v5673
    %v5730 = vunpack.c.h.b16 %v5673
    %v5731 = vunpack.c.l.b16 %v5674
    %v5732 = vunpack.c.h.b16 %v5674
    %v5733 = vunpack.c.l.b16 %v5675
    %v5734 = vunpack.c.h.b16 %v5675
    %v5735 = vunpack.c.l.b16 %v5676
    %v5736 = vunpack.c.h.b16 %v5676
    %v5737 = vpack.c.b16 %v5723, %v5721
    %v5738 = vpack.c.b16 %v5724, %v5722
    %v5739 = vpack.c.b16 %v5727, %v5725
    %v5740 = vpack.c.b16 %v5728, %v5726
    %v5741 = vpack.c.b16 %v5731, %v5729
    %v5742 = vpack.c.b16 %v5732, %v5730
    %v5743 = vpack.c.b16 %v5735, %v5733
    %v5744 = vpack.c.b16 %v5736, %v5734
    %v5785 = vunpack.c.l.b16 %v5677
    %v5786 = vunpack.c.l.b16 %v5678
    %v5787 = vunpack.c.l.b16 %v5679
    %v5788 = vunpack.c.l.b16 %v5680
    %v5789 = vunpack.c.l.b16 %v5681
    %v5790 = vunpack.c.l.b16 %v5682
    %v5791 = vunpack.c.l.b16 %v5683
    %v5792 = vunpack.c.l.b16 %v5684
    %v5793 = vunpack.c.l.b16 %v5685
    %v5794 = vunpack.c.l.b16 %v5686
    %v5795 = vunpack.c.l.b16 %v5687
    %v5796 = vunpack.c.l.b16 %v5688
    %v5797 = vunpack.c.l.b16 %v5689
    %v5798 = vunpack.c.l.b16 %v5690
    %v5799 = vunpack.c.l.b16 %v5691
    %v5800 = vunpack.c.l.b16 %v5692
    %v5801 = vunpack.c.l.b16 %v5693
    %v5802 = vunpack.c.l.b16 %v5694
    %v5803 = vunpack.c.l.b16 %v5695
    %v5804 = vunpack.c.l.b16 %v5696
    %v5805 = vunpack.c.l.b16 %v5697
    %v5806 = vunpack.c.l.b16 %v5698
    %v5807 = vunpack.c.l.b16 %v5699
    %v5808 = vunpack.c.l.b16 %v5700
    %v5809 = vunpack.c.l.b16 %v5701
    %v5810 = vunpack.c.l.b16 %v5702
    %v5811 = vunpack.c.l.b16 %v5703
    %v5812 = vunpack.c.l.b16 %v5704
    %v5813 = vunpack.c.l.b16 %v5705
    %v5814 = vunpack.c.l.b16 %v5706
    %v5815 = vunpack.c.l.b16 %v5707
    %v5816 = vunpack.c.l.b16 %v5708
    %v5817 = vpack.c.b16 %v5786, %v5785
    %v5818 = vpack.c.b16 %v5788, %v5787
    %v5819 = vpack.c.b16 %v5790, %v5789
    %v5820 = vpack.c.b16 %v5792, %v5791
    %v5821 = vpack.c.b16 %v5794, %v5793
    %v5822 = vpack.c.b16 %v5796, %v5795
    %v5823 = vpack.c.b16 %v5798, %v5797
    %v5824 = vpack.c.b16 %v5800, %v5799
    %v5825 = vpack.c.b16 %v5802, %v5801
    %v5826 = vpack.c.b16 %v5804, %v5803
    %v5827 = vpack.c.b16 %v5806, %v5805
    %v5828 = vpack.c.b16 %v5808, %v5807
    %v5829 = vpack.c.b16 %v5810, %v5809
    %v5830 = vpack.c.b16 %v5812, %v5811
    %v5831 = vpack.c.b16 %v5814, %v5813
    %v5832 = vpack.c.b16 %v5816, %v5815
    %5849 = vmatpush.bf16.msra.mxu0 %v5824
    %5850 = vmatpush.bf16.msra.mxu0 %v5823
    %5851 = vmatpush.bf16.msra.mxu0 %v5822
    %5852 = vmatpush.bf16.msra.mxu0 %v5821
    %5853 = vmatpush.bf16.msra.mxu0 %v5820
    %5854 = vmatpush.bf16.msra.mxu0 %v5819
    %5855 = vmatpush.bf16.msra.mxu0 %v5818
    %5856 = vmatpush.bf16.msra.mxu0 %v5817
    %5857 = vmatmul.bf16.gmra.mxu0 %v5737
    %v5858 = vpop.f32.mrf.mxu0
    %v5859 = vadd.f32 %v5711, %v5858
    %v5860 = vpop.f32.mrf.mxu0
    %v5861 = vadd.f32 %v5711, %v5860
    %5862 = vmatmul.bf16.gmra.mxu0 %v5739
    %v5863 = vpop.f32.mrf.mxu0
    %v5864 = vadd.f32 %v5711, %v5863
    %v5865 = vpop.f32.mrf.mxu0
    %v5866 = vadd.f32 %v5711, %v5865
    %5867 = vmatmul.bf16.gmra.mxu0 %v5741
    %v5868 = vpop.f32.mrf.mxu0
    %v5869 = vadd.f32 %v5711, %v5868
    %v5870 = vpop.f32.mrf.mxu0
    %v5871 = vadd.f32 %v5711, %v5870
    %5872 = vmatmul.bf16.gmra.mxu0 %v5743
    %v5873 = vpop.f32.mrf.mxu0
    %v5874 = vadd.f32 %v5711, %v5873
    %v5875 = vpop.f32.mrf.mxu0
    %v5876 = vadd.f32 %v5711, %v5875
    %5877 = vdwg.mxu0
    %5878 = vmatpush.bf16.msra.mxu0 %v5832
    %5879 = vmatpush.bf16.msra.mxu0 %v5831
    %5880 = vmatpush.bf16.msra.mxu0 %v5830
    %5881 = vmatpush.bf16.msra.mxu0 %v5829
    %5882 = vmatpush.bf16.msra.mxu0 %v5828
    %5883 = vmatpush.bf16.msra.mxu0 %v5827
    %5884 = vmatpush.bf16.msra.mxu0 %v5826
    %5885 = vmatpush.bf16.msra.mxu0 %v5825
    %5886 = vmatmul.bf16.gmra.mxu0 %v5738
    %v5887 = vpop.f32.mrf.mxu0
    %v5888 = vadd.f32 %v5859, %v5887
    %v5889 = vpop.f32.mrf.mxu0
    %v5890 = vadd.f32 %v5861, %v5889
    %5891 = vmatmul.bf16.gmra.mxu0 %v5740
    %v5892 = vpop.f32.mrf.mxu0
    %v5893 = vadd.f32 %v5864, %v5892
    %v5894 = vpop.f32.mrf.mxu0
    %v5895 = vadd.f32 %v5866, %v5894
    %5896 = vmatmul.bf16.gmra.mxu0 %v5742
    %v5897 = vpop.f32.mrf.mxu0
    %v5898 = vadd.f32 %v5869, %v5897
    %v5899 = vpop.f32.mrf.mxu0
    %v5900 = vadd.f32 %v5871, %v5899
    %5901 = vmatmul.bf16.gmra.mxu0 %v5744
    %v5902 = vpop.f32.mrf.mxu0
    %v5903 = vadd.f32 %v5874, %v5902
    %v5904 = vpop.f32.mrf.mxu0
    %v5905 = vadd.f32 %v5876, %v5904
    %5906 = vdwg.mxu0
    %5907 = vst [vmem:[%s9] sm:$0xff] %v5888
    %5908 = vst [vmem:[%s9 + $0x8] sm:$0xff] %v5890
    %5909 = vst [vmem:[%s9 + $0x10] sm:$0xff] %v5893
    %5910 = vst [vmem:[%s9 + $0x18] sm:$0xff] %v5895
    %5911 = vst [vmem:[%s9 + $0x20] sm:$0xff] %v5898
    %5912 = vst [vmem:[%s9 + $0x28] sm:$0xff] %v5900
    %5913 = vst [vmem:[%s9 + $0x30] sm:$0xff] %v5903
    %5914 = vst [vmem:[%s9 + $0x38] sm:$0xff] %v5905
    // Predicated region
    $region54: #{forward.1} parent=1 // pred_check
      _
    $region55: #{forward.1} parent=1 // pred_check_branch
      %5916 = sbr.rel (0) target = $region57
    $region56: #{forward.1} parent=1 // pred_region
      _
    $region57: #{forward.1} parent=1 // pred_fallthru
      _
    // Predicated region
    $region58: #{forward.1} parent=1 // pred_check
      _
    $region59: #{forward.1} parent=1 // pred_check_branch
      %5918 = sbr.rel (0) target = $region61
    $region60: #{forward.1} parent=1 // pred_region
      _
    $region61: #{forward.1} parent=1 // pred_fallthru
      _
    %5919 = vsyncpa [#allocation6], 1
    %5920 = vsyncpa [#allocation8], 1
    %5921 = vsyncpa [#allocation11], 1

</llo_original>
